<compile_context>
chip_gen: v5e
topology: v5e:2x2
jax: 0.10.0
libtpu: 0.0.40
codegen_flags: <defaults>
</compile_context>

<pallas_src>
import functools
import math

import jax
import jax.numpy as jnp
from jax import lax
from jax.experimental import pallas as pl
from jax.experimental.pallas import tpu as pltpu


def _round_up(x, m):
    return (x + m - 1) // m * m


def _pick_time_chunk(T, cap=64):
    """Timesteps processed per grid step; must divide T."""
    if T <= cap:
        return T
    for d in range(cap, 7, -1):
        if T % d == 0:
            return d
    return T  # fall back: whole sequence resident in VMEM


def _lstm_kernel(x_ref, w_ih0_ref, w_hh_ref, b_ref, w_ih_d_ref,
                 w_fc_ref, b_fc_ref, out_ref,
                 h_scr, c_scr, gx_scr, hs_scr,
                 *, num_layers, tc, b_pad, h_pad, compute_dtype):
    L, Tc, Bp, Hp = num_layers, tc, b_pad, h_pad
    chunk = pl.program_id(0)

    @pl.when(chunk == 0)
    def _init():
        h_scr[...] = jnp.zeros_like(h_scr)
        c_scr[...] = jnp.zeros_like(c_scr)

    # ---- Phase 1: layer-0 input projection for the whole chunk, one big matmul.
    ip = x_ref.shape[-1]
    x_flat = x_ref[...].reshape(Tc * Bp, ip).astype(compute_dtype)
    gx0 = jnp.dot(x_flat, w_ih0_ref[...],
                  preferred_element_type=jnp.float32) + b_ref[0]
    gx_scr[...] = gx0.reshape(Tc, Bp, 4 * Hp)

    # ---- Phase 2: layer-by-layer over the chunk; only h @ W_hh is recurrent.
    for l in range(L):                                   # static unrolled
        w_hh_l = w_hh_ref[l]                             # (Hp, 4Hp) compute_dtype

        def step(t, carry):
            h_prev = h_scr[l].astype(compute_dtype)      # (Bp, Hp)
            c_prev = c_scr[l]                            # (Bp, Hp) f32
            gates = gx_scr[t] + jnp.dot(h_prev, w_hh_l,
                                        preferred_element_type=jnp.float32)
            # Hp % 128 == 0 -> gate slices are 128-lane aligned.
            i_g = jax.nn.sigmoid(gates[:, 0 * Hp:1 * Hp])
            f_g = jax.nn.sigmoid(gates[:, 1 * Hp:2 * Hp])
            g_g = jnp.tanh(gates[:, 2 * Hp:3 * Hp])
            o_g = jax.nn.sigmoid(gates[:, 3 * Hp:4 * Hp])
            c_new = f_g * c_prev + i_g * g_g
            h_new = o_g * jnp.tanh(c_new)
            c_scr[l] = c_new
            h_scr[l] = h_new
            hs_scr[t] = h_new
            return carry

        lax.fori_loop(0, Tc, step, 0, unroll=(Tc <= 16))

        if l + 1 < L:
            # Next layer's input projection for the whole chunk (big matmul).
            hs_flat = hs_scr[...].reshape(Tc * Bp, Hp).astype(compute_dtype)
            gxn = jnp.dot(hs_flat, w_ih_d_ref[l],
                          preferred_element_type=jnp.float32) + b_ref[l + 1]
            gx_scr[...] = gxn.reshape(Tc, Bp, 4 * Hp)

    # ---- Phase 3: final Linear on the last hidden state (last chunk only).
    @pl.when(chunk == pl.num_programs(0) - 1)
    def _final():
        h_last = h_scr[L - 1].astype(compute_dtype)
        out_ref[...] = (jnp.dot(h_last, w_fc_ref[...],
                                preferred_element_type=jnp.float32)
                        + b_fc_ref[...]).astype(out_ref.dtype)


def _pad_gate_cols(w, H, Hp):
    """(..., 4H) -> (..., 4*Hp): move gate g's H columns to offset g*Hp."""
    lead = w.shape[:-1]
    out = jnp.zeros(lead + (4 * Hp,), w.dtype)
    for g in range(4):
        out = out.at[..., g * Hp:g * Hp + H].set(w[..., g * H:(g + 1) * H])
    return out


def _pad_dim(a, axis, new):
    pad = [(0, 0)] * a.ndim
    pad[axis] = (0, new - a.shape[axis])
    return jnp.pad(a, pad)


def lstm_forward(x, params, *, num_layers, hidden_size,
                 compute_dtype=jnp.bfloat16):
    """x: (batch, seq, input_size) float32 -> (batch, output_size)."""
    (w_ih0, w_hh0, b0, w_ih_d, w_hh_d, b_d, w_fc, b_fc) = params
    B, T, I = x.shape
    O = w_fc.shape[1]
    L, H = num_layers, hidden_size

    Bp = _round_up(B, 8)
    Hp = _round_up(H, 128)
    Ip = _round_up(I, 128)
    Op = _round_up(O, 128)
    Tc = _pick_time_chunk(T)
    num_chunks = T // Tc

    # ---- pack / pad weights (gate order [i,f,g,o]); matmul operands -> compute_dtype.
    w_ih0_p = _pad_dim(_pad_gate_cols(w_ih0, H, Hp), 0, Ip).astype(compute_dtype)

    if L > 1:
        w_hh_all = jnp.concatenate([w_hh0[None], w_hh_d], axis=0)   # (L, H, 4H)
        b_all = jnp.concatenate([b0[None], b_d], axis=0)            # (L, 1, 4H)
    else:
        w_hh_all = w_hh0[None]
        b_all = b0[None]
    w_hh_p = _pad_dim(_pad_gate_cols(w_hh_all, H, Hp), 1, Hp).astype(compute_dtype)
    b_p = _pad_gate_cols(b_all, H, Hp).astype(jnp.float32)          # (L, 1, 4Hp)

    w_ih_d_p = _pad_dim(_pad_gate_cols(w_ih_d, H, Hp), 1, Hp).astype(compute_dtype)

    w_fc_p = _pad_dim(_pad_dim(w_fc, 0, Hp), 1, Op).astype(compute_dtype)
    b_fc_p = _pad_dim(b_fc, 1, Op).astype(jnp.float32)

    # x: (B,T,I) -> (T, Bp, Ip) f32 (cast to compute_dtype inside the kernel).
    x_p = _pad_dim(_pad_dim(jnp.transpose(x, (1, 0, 2)), 1, Bp), 2, Ip)
    x_p = x_p.astype(jnp.float32)

    def const_spec(a):
        nd = a.ndim
        return pl.BlockSpec(a.shape, lambda c, _nd=nd: (0,) * _nd)

    kernel = functools.partial(_lstm_kernel, num_layers=L, tc=Tc,
                               b_pad=Bp, h_pad=Hp, compute_dtype=compute_dtype)

    out_p = pl.pallas_call(
        kernel,
        out_shape=jax.ShapeDtypeStruct((Bp, Op), jnp.float32),
        grid_spec=pltpu.PrefetchScalarGridSpec(
            num_scalar_prefetch=0,
            grid=(num_chunks,),
            in_specs=[
                pl.BlockSpec((Tc, Bp, Ip), lambda c: (c, 0, 0)),   # x chunk
                const_spec(w_ih0_p), const_spec(w_hh_p), const_spec(b_p),
                const_spec(w_ih_d_p), const_spec(w_fc_p), const_spec(b_fc_p),
            ],
            out_specs=pl.BlockSpec((Bp, Op), lambda c: (0, 0)),
            scratch_shapes=[
                pltpu.VMEM((L, Bp, Hp), jnp.float32),         # h state
                pltpu.VMEM((L, Bp, Hp), jnp.float32),         # c state
                pltpu.VMEM((Tc, Bp, 4 * Hp), jnp.float32),    # hoisted gate pre-acts
                pltpu.VMEM((Tc, Bp, Hp), jnp.float32),        # per-chunk hidden seq
            ],
        ),
        compiler_params=pltpu.CompilerParams(
            dimension_semantics=("arbitrary",),
            vmem_limit_bytes=32 * 1024 * 1024),
    )(x_p, w_ih0_p, w_hh_p, b_p, w_ih_d_p, w_fc_p, b_fc_p)

    return out_p[:B, :O].astype(x.dtype)


def init_params(key, input_size, hidden_size, num_layers, output_size):
    """Deterministic init mirroring nn.LSTM/nn.Linear shapes (U(-k,k), k=1/sqrt(H))."""
    H, L = hidden_size, num_layers
    k = 1.0 / math.sqrt(H)
    keys = jax.random.split(key, 4 * L + 2)
    u = lambda kk, shp: jax.random.uniform(kk, shp, jnp.float32, -k, k)

    # layer 0 (input_size -> hidden)
    w_ih0 = u(keys[0], (input_size, 4 * H))
    w_hh0 = u(keys[1], (H, 4 * H))
    b0 = u(keys[2], (1, 4 * H)) + u(keys[3], (1, 4 * H))   # b_ih + b_hh

    # deeper layers (hidden -> hidden), stacked
    n_deep = max(L - 1, 1)
    w_ih_d = jnp.zeros((n_deep, H, 4 * H), jnp.float32)
    w_hh_d = jnp.zeros((n_deep, H, 4 * H), jnp.float32)
    b_d = jnp.zeros((n_deep, 1, 4 * H), jnp.float32)
    for l in range(1, L):
        base = 4 * l
        w_ih_d = w_ih_d.at[l - 1].set(u(keys[base + 0], (H, 4 * H)))
        w_hh_d = w_hh_d.at[l - 1].set(u(keys[base + 1], (H, 4 * H)))
        b_d = b_d.at[l - 1].set(u(keys[base + 2], (1, 4 * H))
                                + u(keys[base + 3], (1, 4 * H)))

    # fc: hidden -> output
    kf = 1.0 / math.sqrt(H)
    w_fc = jax.random.uniform(keys[-2], (H, output_size), jnp.float32, -kf, kf)
    b_fc = jax.random.uniform(keys[-1], (1, output_size), jnp.float32, -kf, kf)
    return (w_ih0, w_hh0, b0, w_ih_d, w_hh_d, b_d, w_fc, b_fc)


def lstm_reference(x, params, *, num_layers, hidden_size):
    """Pure-JAX f32 reference matching PyTorch LSTM semantics (validation)."""
    (w_ih0, w_hh0, b0, w_ih_d, w_hh_d, b_d, w_fc, b_fc) = params
    B, T, _ = x.shape
    H, L = hidden_size, num_layers
    h = [jnp.zeros((B, H), jnp.float32) for _ in range(L)]
    c = [jnp.zeros((B, H), jnp.float32) for _ in range(L)]
    for t in range(T):
        inp = x[:, t, :]
        for l in range(L):
            if l == 0:
                w_ih, w_hh, b = w_ih0, w_hh0, b0
            else:
                w_ih, w_hh, b = w_ih_d[l - 1], w_hh_d[l - 1], b_d[l - 1]
            g = inp @ w_ih + h[l] @ w_hh + b
            i_g = jax.nn.sigmoid(g[:, 0 * H:1 * H])
            f_g = jax.nn.sigmoid(g[:, 1 * H:2 * H])
            g_g = jnp.tanh(g[:, 2 * H:3 * H])
            o_g = jax.nn.sigmoid(g[:, 3 * H:4 * H])
            c[l] = f_g * c[l] + i_g * g_g
            h[l] = o_g * jnp.tanh(c[l])
            inp = h[l]
    return h[L - 1] @ w_fc + b_fc


if __name__ == "__main__":
    batch, seq = 2, 8
    input_size, hidden_size, num_layers, output_size = 8, 32, 2, 4

    key = jax.random.PRNGKey(0)
    kx, kp = jax.random.split(key)
    x = jax.random.normal(kx, (batch, seq, input_size), jnp.float32)
    params = init_params(kp, input_size, hidden_size, num_layers, output_size)

    ref = lstm_reference(x, params, num_layers=num_layers, hidden_size=hidden_size)

    # Exact path (f32 matmul operands) — tight tolerance.
    out_f32 = lstm_forward(x, params, num_layers=num_layers,
                           hidden_size=hidden_size, compute_dtype=jnp.float32)
    out_f32 = jax.block_until_ready(out_f32)
    assert out_f32.shape == (batch, output_size)
    assert jnp.allclose(out_f32, ref, atol=1e-4, rtol=1e-4), (out_f32, ref)

    # Fast path (bf16 weights / matmul operands, f32 accumulation + gate math).
    out_bf16 = lstm_forward(x, params, num_layers=num_layers,
                            hidden_size=hidden_size, compute_dtype=jnp.bfloat16)
    out_bf16 = jax.block_until_ready(out_bf16)
    assert out_bf16.shape == (batch, output_size)
    assert jnp.allclose(out_bf16, ref, atol=3e-2, rtol=3e-2), (out_bf16, ref)

    print("KERNEL_OK")
</pallas_src>

<mosaic_0001>
module attributes {stable_mosaic.version = 11 : i64} {
  func.func @_lstm_kernel(%arg0: i32, %arg1: memref<8x8x128xf32, #tpu.memory_space<vmem>>, %arg2: memref<128x512xf32, #tpu.memory_space<vmem>>, %arg3: memref<2x128x512xf32, #tpu.memory_space<vmem>>, %arg4: memref<2x1x512xf32, #tpu.memory_space<vmem>>, %arg5: memref<1x128x512xf32, #tpu.memory_space<vmem>>, %arg6: memref<128x128xf32, #tpu.memory_space<vmem>>, %arg7: memref<1x128xf32, #tpu.memory_space<vmem>>, %arg8: memref<8x128xf32, #tpu.memory_space<vmem>>, %arg9: memref<2x8x128xf32, #tpu.memory_space<vmem>>, %arg10: memref<2x8x128xf32, #tpu.memory_space<vmem>>, %arg11: memref<8x8x512xf32, #tpu.memory_space<vmem>>, %arg12: memref<8x8x128xf32, #tpu.memory_space<vmem>>) attributes {dimension_semantics = [#tpu.dimension_semantics<arbitrary>], iteration_bounds = array<i64: 1>, scalar_prefetch = 0 : i64, scratch_operands = 4 : i64, tpu.core_type = #tpu.core_type<tc>, window_params = [{transform_indices = @transform_0, window_bounds = array<i64: 8, 8, 128>}, {pipeline_mode = #tpu.pipeline_mode<synchronous>, transform_indices = @transform_1, window_bounds = array<i64: 128, 512>}, {pipeline_mode = #tpu.pipeline_mode<synchronous>, transform_indices = @transform_2, window_bounds = array<i64: 2, 128, 512>}, {pipeline_mode = #tpu.pipeline_mode<synchronous>, transform_indices = @transform_3, window_bounds = array<i64: 2, 1, 512>}, {pipeline_mode = #tpu.pipeline_mode<synchronous>, transform_indices = @transform_4, window_bounds = array<i64: 1, 128, 512>}, {pipeline_mode = #tpu.pipeline_mode<synchronous>, transform_indices = @transform_5, window_bounds = array<i64: 128, 128>}, {pipeline_mode = #tpu.pipeline_mode<synchronous>, transform_indices = @transform_6, window_bounds = array<i64: 1, 128>}, {pipeline_mode = #tpu.pipeline_mode<synchronous>, transform_indices = @transform_7, window_bounds = array<i64: 8, 128>}]} {
    %c0_i32 = arith.constant 0 : i32
    %0 = arith.cmpi eq, %arg0, %c0_i32 : i32
    %1 = arith.extui %0 : i1 to i32
    %c0_i32_0 = arith.constant 0 : i32
    %2 = arith.cmpi ne, %1, %c0_i32_0 : i32
    scf.if %2 {
      %cst_361 = arith.constant 0.000000e+00 : f32
      %735 = vector.broadcast %cst_361 : f32 to vector<2x8x128xf32>
      %c0_362 = arith.constant 0 : index
      %c0_363 = arith.constant 0 : index
      %c0_364 = arith.constant 0 : index
      %736 = vector.load %arg9[%c0_362, %c0_363, %c0_364] : memref<2x8x128xf32, #tpu.memory_space<vmem>>, vector<2x8x128xf32>
      tpu.vector_store %arg9[%c0_362, %c0_363, %c0_364], %735 {strides = array<i32>} : memref<2x8x128xf32, #tpu.memory_space<vmem>>, vector<2x8x128xf32>,
      %cst_365 = arith.constant 0.000000e+00 : f32
      %737 = vector.broadcast %cst_365 : f32 to vector<2x8x128xf32>
      %c0_366 = arith.constant 0 : index
      %c0_367 = arith.constant 0 : index
      %c0_368 = arith.constant 0 : index
      %738 = vector.load %arg10[%c0_366, %c0_367, %c0_368] : memref<2x8x128xf32, #tpu.memory_space<vmem>>, vector<2x8x128xf32>
      tpu.vector_store %arg10[%c0_366, %c0_367, %c0_368], %737 {strides = array<i32>} : memref<2x8x128xf32, #tpu.memory_space<vmem>>, vector<2x8x128xf32>,
    } else {
    }
    %c0 = arith.constant 0 : index
    %c0_1 = arith.constant 0 : index
    %c0_2 = arith.constant 0 : index
    %3 = vector.load %arg1[%c0, %c0_1, %c0_2] : memref<8x8x128xf32, #tpu.memory_space<vmem>>, vector<8x8x128xf32>
    %4 = vector.shape_cast %3 : vector<8x8x128xf32> to vector<64x128xf32>
    %c0_3 = arith.constant 0 : index
    %c0_4 = arith.constant 0 : index
    %5 = vector.load %arg2[%c0_3, %c0_4] : memref<128x512xf32, #tpu.memory_space<vmem>>, vector<128x512xf32>
    %cst = arith.constant dense<0.000000e+00> : vector<64x512xf32>
    %6 = tpu.matmul %4, %5, %cst {dimension_numbers = #tpu.dot_dimension_numbers<[1], [0], [0], [1], [0, 0, 1, 1], [], []>} : vector<64x128xf32>, vector<128x512xf32>, vector<64x512xf32> -> vector<64x512xf32>
    %c0_5 = arith.constant 0 : index
    %c0_6 = arith.constant 0 : index
    %c0_7 = arith.constant 0 : index
    %7 = vector.load %arg4[%c0_5, %c0_6, %c0_7] : memref<2x1x512xf32, #tpu.memory_space<vmem>>, vector<1x1x512xf32>
    %8 = vector.shape_cast %7 : vector<1x1x512xf32> to vector<1x512xf32>
    %9 = vector.broadcast %8 : vector<1x512xf32> to vector<64x512xf32>
    %10 = arith.addf %6, %9 : vector<64x512xf32>
    %11 = vector.shape_cast %10 : vector<64x512xf32> to vector<8x8x512xf32>
    %c0_8 = arith.constant 0 : index
    %c0_9 = arith.constant 0 : index
    %c0_10 = arith.constant 0 : index
    %12 = vector.load %arg11[%c0_8, %c0_9, %c0_10] : memref<8x8x512xf32, #tpu.memory_space<vmem>>, vector<8x8x512xf32>
    tpu.vector_store %arg11[%c0_8, %c0_9, %c0_10], %11 {strides = array<i32>} : memref<8x8x512xf32, #tpu.memory_space<vmem>>, vector<8x8x512xf32>,
    %c0_11 = arith.constant 0 : index
    %c0_12 = arith.constant 0 : index
    %c0_13 = arith.constant 0 : index
    %13 = vector.load %arg3[%c0_11, %c0_12, %c0_13] : memref<2x128x512xf32, #tpu.memory_space<vmem>>, vector<1x128x512xf32>
    %14 = vector.shape_cast %13 : vector<1x128x512xf32> to vector<128x512xf32>
    %c0_i32_14 = arith.constant 0 : i32
    %c0_15 = arith.constant 0 : index
    %c0_16 = arith.constant 0 : index
    %c0_17 = arith.constant 0 : index
    %15 = vector.load %arg9[%c0_15, %c0_16, %c0_17] : memref<2x8x128xf32, #tpu.memory_space<vmem>>, vector<1x8x128xf32>
    %16 = vector.shape_cast %15 : vector<1x8x128xf32> to vector<8x128xf32>
    %c0_18 = arith.constant 0 : index
    %c0_19 = arith.constant 0 : index
    %c0_20 = arith.constant 0 : index
    %17 = vector.load %arg10[%c0_18, %c0_19, %c0_20] : memref<2x8x128xf32, #tpu.memory_space<vmem>>, vector<1x8x128xf32>
    %18 = vector.shape_cast %17 : vector<1x8x128xf32> to vector<8x128xf32>
    %19 = arith.index_cast %c0_i32_14 : i32 to index
    %c0_21 = arith.constant 0 : index
    %c0_22 = arith.constant 0 : index
    %20 = vector.load %arg11[%19, %c0_21, %c0_22] : memref<8x8x512xf32, #tpu.memory_space<vmem>>, vector<1x8x512xf32>
    %21 = vector.shape_cast %20 : vector<1x8x512xf32> to vector<8x512xf32>
    %cst_23 = arith.constant dense<0.000000e+00> : vector<8x512xf32>
    %22 = tpu.matmul %16, %14, %cst_23 {dimension_numbers = #tpu.dot_dimension_numbers<[1], [0], [0], [1], [0, 0, 1, 1], [], []>} : vector<8x128xf32>, vector<128x512xf32>, vector<8x512xf32> -> vector<8x512xf32>
    %23 = arith.addf %21, %22 : vector<8x512xf32>
    %24 = vector.extract_strided_slice %23 {offsets = [0, 0], sizes = [8, 128], strides = [1, 1]} : vector<8x512xf32> to vector<8x128xf32>
    %25 = arith.negf %24 : vector<8x128xf32>
    %26 = math.exp %25 : vector<8x128xf32>
    %cst_24 = arith.constant 1.000000e+00 : f32
    %27 = vector.broadcast %cst_24 : f32 to vector<8x128xf32>
    %28 = arith.addf %27, %26 : vector<8x128xf32>
    %29 = arith.divf %27, %28 : vector<8x128xf32>
    %30 = vector.extract_strided_slice %23 {offsets = [0, 128], sizes = [8, 128], strides = [1, 1]} : vector<8x512xf32> to vector<8x128xf32>
    %31 = arith.negf %30 : vector<8x128xf32>
    %32 = math.exp %31 : vector<8x128xf32>
    %cst_25 = arith.constant 1.000000e+00 : f32
    %33 = vector.broadcast %cst_25 : f32 to vector<8x128xf32>
    %34 = arith.addf %33, %32 : vector<8x128xf32>
    %35 = arith.divf %33, %34 : vector<8x128xf32>
    %36 = vector.extract_strided_slice %23 {offsets = [0, 256], sizes = [8, 128], strides = [1, 1]} : vector<8x512xf32> to vector<8x128xf32>
    %37 = math.tanh %36 : vector<8x128xf32>
    %38 = vector.extract_strided_slice %23 {offsets = [0, 384], sizes = [8, 128], strides = [1, 1]} : vector<8x512xf32> to vector<8x128xf32>
    %39 = arith.negf %38 : vector<8x128xf32>
    %40 = math.exp %39 : vector<8x128xf32>
    %cst_26 = arith.constant 1.000000e+00 : f32
    %41 = vector.broadcast %cst_26 : f32 to vector<8x128xf32>
    %42 = arith.addf %41, %40 : vector<8x128xf32>
    %43 = arith.divf %41, %42 : vector<8x128xf32>
    %44 = arith.mulf %35, %18 : vector<8x128xf32>
    %45 = arith.mulf %29, %37 : vector<8x128xf32>
    %46 = arith.addf %44, %45 : vector<8x128xf32>
    %47 = math.tanh %46 : vector<8x128xf32>
    %48 = arith.mulf %43, %47 : vector<8x128xf32>
    %c0_27 = arith.constant 0 : index
    %c0_28 = arith.constant 0 : index
    %c0_29 = arith.constant 0 : index
    %49 = vector.load %arg10[%c0_27, %c0_28, %c0_29] : memref<2x8x128xf32, #tpu.memory_space<vmem>>, vector<1x8x128xf32>
    %50 = vector.shape_cast %49 : vector<1x8x128xf32> to vector<8x128xf32>
    %51 = vector.shape_cast %46 : vector<8x128xf32> to vector<1x8x128xf32>
    tpu.vector_store %arg10[%c0_27, %c0_28, %c0_29], %51 {strides = array<i32>} : memref<2x8x128xf32, #tpu.memory_space<vmem>>, vector<1x8x128xf32>,
    %c0_30 = arith.constant 0 : index
    %c0_31 = arith.constant 0 : index
    %c0_32 = arith.constant 0 : index
    %52 = vector.load %arg9[%c0_30, %c0_31, %c0_32] : memref<2x8x128xf32, #tpu.memory_space<vmem>>, vector<1x8x128xf32>
    %53 = vector.shape_cast %52 : vector<1x8x128xf32> to vector<8x128xf32>
    %54 = vector.shape_cast %48 : vector<8x128xf32> to vector<1x8x128xf32>
    tpu.vector_store %arg9[%c0_30, %c0_31, %c0_32], %54 {strides = array<i32>} : memref<2x8x128xf32, #tpu.memory_space<vmem>>, vector<1x8x128xf32>,
    %55 = arith.index_cast %c0_i32_14 : i32 to index
    %c0_33 = arith.constant 0 : index
    %c0_34 = arith.constant 0 : index
    %56 = vector.load %arg12[%55, %c0_33, %c0_34] : memref<8x8x128xf32, #tpu.memory_space<vmem>>, vector<1x8x128xf32>
    %57 = vector.shape_cast %56 : vector<1x8x128xf32> to vector<8x128xf32>
    %58 = vector.shape_cast %48 : vector<8x128xf32> to vector<1x8x128xf32>
    tpu.vector_store %arg12[%55, %c0_33, %c0_34], %58 {strides = array<i32>} : memref<8x8x128xf32, #tpu.memory_space<vmem>>, vector<1x8x128xf32>,
    %c1_i32 = arith.constant 1 : i32
    %c0_35 = arith.constant 0 : index
    %c0_36 = arith.constant 0 : index
    %c0_37 = arith.constant 0 : index
    %59 = vector.load %arg9[%c0_35, %c0_36, %c0_37] : memref<2x8x128xf32, #tpu.memory_space<vmem>>, vector<1x8x128xf32>
    %60 = vector.shape_cast %59 : vector<1x8x128xf32> to vector<8x128xf32>
    %c0_38 = arith.constant 0 : index
    %c0_39 = arith.constant 0 : index
    %c0_40 = arith.constant 0 : index
    %61 = vector.load %arg10[%c0_38, %c0_39, %c0_40] : memref<2x8x128xf32, #tpu.memory_space<vmem>>, vector<1x8x128xf32>
    %62 = vector.shape_cast %61 : vector<1x8x128xf32> to vector<8x128xf32>
    %63 = arith.index_cast %c1_i32 : i32 to index
    %c0_41 = arith.constant 0 : index
    %c0_42 = arith.constant 0 : index
    %64 = vector.load %arg11[%63, %c0_41, %c0_42] : memref<8x8x512xf32, #tpu.memory_space<vmem>>, vector<1x8x512xf32>
    %65 = vector.shape_cast %64 : vector<1x8x512xf32> to vector<8x512xf32>
    %cst_43 = arith.constant dense<0.000000e+00> : vector<8x512xf32>
    %66 = tpu.matmul %60, %14, %cst_43 {dimension_numbers = #tpu.dot_dimension_numbers<[1], [0], [0], [1], [0, 0, 1, 1], [], []>} : vector<8x128xf32>, vector<128x512xf32>, vector<8x512xf32> -> vector<8x512xf32>
    %67 = arith.addf %65, %66 : vector<8x512xf32>
    %68 = vector.extract_strided_slice %67 {offsets = [0, 0], sizes = [8, 128], strides = [1, 1]} : vector<8x512xf32> to vector<8x128xf32>
    %69 = arith.negf %68 : vector<8x128xf32>
    %70 = math.exp %69 : vector<8x128xf32>
    %cst_44 = arith.constant 1.000000e+00 : f32
    %71 = vector.broadcast %cst_44 : f32 to vector<8x128xf32>
    %72 = arith.addf %71, %70 : vector<8x128xf32>
    %73 = arith.divf %71, %72 : vector<8x128xf32>
    %74 = vector.extract_strided_slice %67 {offsets = [0, 128], sizes = [8, 128], strides = [1, 1]} : vector<8x512xf32> to vector<8x128xf32>
    %75 = arith.negf %74 : vector<8x128xf32>
    %76 = math.exp %75 : vector<8x128xf32>
    %cst_45 = arith.constant 1.000000e+00 : f32
    %77 = vector.broadcast %cst_45 : f32 to vector<8x128xf32>
    %78 = arith.addf %77, %76 : vector<8x128xf32>
    %79 = arith.divf %77, %78 : vector<8x128xf32>
    %80 = vector.extract_strided_slice %67 {offsets = [0, 256], sizes = [8, 128], strides = [1, 1]} : vector<8x512xf32> to vector<8x128xf32>
    %81 = math.tanh %80 : vector<8x128xf32>
    %82 = vector.extract_strided_slice %67 {offsets = [0, 384], sizes = [8, 128], strides = [1, 1]} : vector<8x512xf32> to vector<8x128xf32>
    %83 = arith.negf %82 : vector<8x128xf32>
    %84 = math.exp %83 : vector<8x128xf32>
    %cst_46 = arith.constant 1.000000e+00 : f32
    %85 = vector.broadcast %cst_46 : f32 to vector<8x128xf32>
    %86 = arith.addf %85, %84 : vector<8x128xf32>
    %87 = arith.divf %85, %86 : vector<8x128xf32>
    %88 = arith.mulf %79, %62 : vector<8x128xf32>
    %89 = arith.mulf %73, %81 : vector<8x128xf32>
    %90 = arith.addf %88, %89 : vector<8x128xf32>
    %91 = math.tanh %90 : vector<8x128xf32>
    %92 = arith.mulf %87, %91 : vector<8x128xf32>
    %c0_47 = arith.constant 0 : index
    %c0_48 = arith.constant 0 : index
    %c0_49 = arith.constant 0 : index
    %93 = vector.load %arg10[%c0_47, %c0_48, %c0_49] : memref<2x8x128xf32, #tpu.memory_space<vmem>>, vector<1x8x128xf32>
    %94 = vector.shape_cast %93 : vector<1x8x128xf32> to vector<8x128xf32>
    %95 = vector.shape_cast %90 : vector<8x128xf32> to vector<1x8x128xf32>
    tpu.vector_store %arg10[%c0_47, %c0_48, %c0_49], %95 {strides = array<i32>} : memref<2x8x128xf32, #tpu.memory_space<vmem>>, vector<1x8x128xf32>,
    %c0_50 = arith.constant 0 : index
    %c0_51 = arith.constant 0 : index
    %c0_52 = arith.constant 0 : index
    %96 = vector.load %arg9[%c0_50, %c0_51, %c0_52] : memref<2x8x128xf32, #tpu.memory_space<vmem>>, vector<1x8x128xf32>
    %97 = vector.shape_cast %96 : vector<1x8x128xf32> to vector<8x128xf32>
    %98 = vector.shape_cast %92 : vector<8x128xf32> to vector<1x8x128xf32>
    tpu.vector_store %arg9[%c0_50, %c0_51, %c0_52], %98 {strides = array<i32>} : memref<2x8x128xf32, #tpu.memory_space<vmem>>, vector<1x8x128xf32>,
    %99 = arith.index_cast %c1_i32 : i32 to index
    %c0_53 = arith.constant 0 : index
    %c0_54 = arith.constant 0 : index
    %100 = vector.load %arg12[%99, %c0_53, %c0_54] : memref<8x8x128xf32, #tpu.memory_space<vmem>>, vector<1x8x128xf32>
    %101 = vector.shape_cast %100 : vector<1x8x128xf32> to vector<8x128xf32>
    %102 = vector.shape_cast %92 : vector<8x128xf32> to vector<1x8x128xf32>
    tpu.vector_store %arg12[%99, %c0_53, %c0_54], %102 {strides = array<i32>} : memref<8x8x128xf32, #tpu.memory_space<vmem>>, vector<1x8x128xf32>,
    %c2_i32 = arith.constant 2 : i32
    %c0_55 = arith.constant 0 : index
    %c0_56 = arith.constant 0 : index
    %c0_57 = arith.constant 0 : index
    %103 = vector.load %arg9[%c0_55, %c0_56, %c0_57] : memref<2x8x128xf32, #tpu.memory_space<vmem>>, vector<1x8x128xf32>
    %104 = vector.shape_cast %103 : vector<1x8x128xf32> to vector<8x128xf32>
    %c0_58 = arith.constant 0 : index
    %c0_59 = arith.constant 0 : index
    %c0_60 = arith.constant 0 : index
    %105 = vector.load %arg10[%c0_58, %c0_59, %c0_60] : memref<2x8x128xf32, #tpu.memory_space<vmem>>, vector<1x8x128xf32>
    %106 = vector.shape_cast %105 : vector<1x8x128xf32> to vector<8x128xf32>
    %107 = arith.index_cast %c2_i32 : i32 to index
    %c0_61 = arith.constant 0 : index
    %c0_62 = arith.constant 0 : index
    %108 = vector.load %arg11[%107, %c0_61, %c0_62] : memref<8x8x512xf32, #tpu.memory_space<vmem>>, vector<1x8x512xf32>
    %109 = vector.shape_cast %108 : vector<1x8x512xf32> to vector<8x512xf32>
    %cst_63 = arith.constant dense<0.000000e+00> : vector<8x512xf32>
    %110 = tpu.matmul %104, %14, %cst_63 {dimension_numbers = #tpu.dot_dimension_numbers<[1], [0], [0], [1], [0, 0, 1, 1], [], []>} : vector<8x128xf32>, vector<128x512xf32>, vector<8x512xf32> -> vector<8x512xf32>
    %111 = arith.addf %109, %110 : vector<8x512xf32>
    %112 = vector.extract_strided_slice %111 {offsets = [0, 0], sizes = [8, 128], strides = [1, 1]} : vector<8x512xf32> to vector<8x128xf32>
    %113 = arith.negf %112 : vector<8x128xf32>
    %114 = math.exp %113 : vector<8x128xf32>
    %cst_64 = arith.constant 1.000000e+00 : f32
    %115 = vector.broadcast %cst_64 : f32 to vector<8x128xf32>
    %116 = arith.addf %115, %114 : vector<8x128xf32>
    %117 = arith.divf %115, %116 : vector<8x128xf32>
    %118 = vector.extract_strided_slice %111 {offsets = [0, 128], sizes = [8, 128], strides = [1, 1]} : vector<8x512xf32> to vector<8x128xf32>
    %119 = arith.negf %118 : vector<8x128xf32>
    %120 = math.exp %119 : vector<8x128xf32>
    %cst_65 = arith.constant 1.000000e+00 : f32
    %121 = vector.broadcast %cst_65 : f32 to vector<8x128xf32>
    %122 = arith.addf %121, %120 : vector<8x128xf32>
    %123 = arith.divf %121, %122 : vector<8x128xf32>
    %124 = vector.extract_strided_slice %111 {offsets = [0, 256], sizes = [8, 128], strides = [1, 1]} : vector<8x512xf32> to vector<8x128xf32>
    %125 = math.tanh %124 : vector<8x128xf32>
    %126 = vector.extract_strided_slice %111 {offsets = [0, 384], sizes = [8, 128], strides = [1, 1]} : vector<8x512xf32> to vector<8x128xf32>
    %127 = arith.negf %126 : vector<8x128xf32>
    %128 = math.exp %127 : vector<8x128xf32>
    %cst_66 = arith.constant 1.000000e+00 : f32
    %129 = vector.broadcast %cst_66 : f32 to vector<8x128xf32>
    %130 = arith.addf %129, %128 : vector<8x128xf32>
    %131 = arith.divf %129, %130 : vector<8x128xf32>
    %132 = arith.mulf %123, %106 : vector<8x128xf32>
    %133 = arith.mulf %117, %125 : vector<8x128xf32>
    %134 = arith.addf %132, %133 : vector<8x128xf32>
    %135 = math.tanh %134 : vector<8x128xf32>
    %136 = arith.mulf %131, %135 : vector<8x128xf32>
    %c0_67 = arith.constant 0 : index
    %c0_68 = arith.constant 0 : index
    %c0_69 = arith.constant 0 : index
    %137 = vector.load %arg10[%c0_67, %c0_68, %c0_69] : memref<2x8x128xf32, #tpu.memory_space<vmem>>, vector<1x8x128xf32>
    %138 = vector.shape_cast %137 : vector<1x8x128xf32> to vector<8x128xf32>
    %139 = vector.shape_cast %134 : vector<8x128xf32> to vector<1x8x128xf32>
    tpu.vector_store %arg10[%c0_67, %c0_68, %c0_69], %139 {strides = array<i32>} : memref<2x8x128xf32, #tpu.memory_space<vmem>>, vector<1x8x128xf32>,
    %c0_70 = arith.constant 0 : index
    %c0_71 = arith.constant 0 : index
    %c0_72 = arith.constant 0 : index
    %140 = vector.load %arg9[%c0_70, %c0_71, %c0_72] : memref<2x8x128xf32, #tpu.memory_space<vmem>>, vector<1x8x128xf32>
    %141 = vector.shape_cast %140 : vector<1x8x128xf32> to vector<8x128xf32>
    %142 = vector.shape_cast %136 : vector<8x128xf32> to vector<1x8x128xf32>
    tpu.vector_store %arg9[%c0_70, %c0_71, %c0_72], %142 {strides = array<i32>} : memref<2x8x128xf32, #tpu.memory_space<vmem>>, vector<1x8x128xf32>,
    %143 = arith.index_cast %c2_i32 : i32 to index
    %c0_73 = arith.constant 0 : index
    %c0_74 = arith.constant 0 : index
    %144 = vector.load %arg12[%143, %c0_73, %c0_74] : memref<8x8x128xf32, #tpu.memory_space<vmem>>, vector<1x8x128xf32>
    %145 = vector.shape_cast %144 : vector<1x8x128xf32> to vector<8x128xf32>
    %146 = vector.shape_cast %136 : vector<8x128xf32> to vector<1x8x128xf32>
    tpu.vector_store %arg12[%143, %c0_73, %c0_74], %146 {strides = array<i32>} : memref<8x8x128xf32, #tpu.memory_space<vmem>>, vector<1x8x128xf32>,
    %c3_i32 = arith.constant 3 : i32
    %c0_75 = arith.constant 0 : index
    %c0_76 = arith.constant 0 : index
    %c0_77 = arith.constant 0 : index
    %147 = vector.load %arg9[%c0_75, %c0_76, %c0_77] : memref<2x8x128xf32, #tpu.memory_space<vmem>>, vector<1x8x128xf32>
    %148 = vector.shape_cast %147 : vector<1x8x128xf32> to vector<8x128xf32>
    %c0_78 = arith.constant 0 : index
    %c0_79 = arith.constant 0 : index
    %c0_80 = arith.constant 0 : index
    %149 = vector.load %arg10[%c0_78, %c0_79, %c0_80] : memref<2x8x128xf32, #tpu.memory_space<vmem>>, vector<1x8x128xf32>
    %150 = vector.shape_cast %149 : vector<1x8x128xf32> to vector<8x128xf32>
    %151 = arith.index_cast %c3_i32 : i32 to index
    %c0_81 = arith.constant 0 : index
    %c0_82 = arith.constant 0 : index
    %152 = vector.load %arg11[%151, %c0_81, %c0_82] : memref<8x8x512xf32, #tpu.memory_space<vmem>>, vector<1x8x512xf32>
    %153 = vector.shape_cast %152 : vector<1x8x512xf32> to vector<8x512xf32>
    %cst_83 = arith.constant dense<0.000000e+00> : vector<8x512xf32>
    %154 = tpu.matmul %148, %14, %cst_83 {dimension_numbers = #tpu.dot_dimension_numbers<[1], [0], [0], [1], [0, 0, 1, 1], [], []>} : vector<8x128xf32>, vector<128x512xf32>, vector<8x512xf32> -> vector<8x512xf32>
    %155 = arith.addf %153, %154 : vector<8x512xf32>
    %156 = vector.extract_strided_slice %155 {offsets = [0, 0], sizes = [8, 128], strides = [1, 1]} : vector<8x512xf32> to vector<8x128xf32>
    %157 = arith.negf %156 : vector<8x128xf32>
    %158 = math.exp %157 : vector<8x128xf32>
    %cst_84 = arith.constant 1.000000e+00 : f32
    %159 = vector.broadcast %cst_84 : f32 to vector<8x128xf32>
    %160 = arith.addf %159, %158 : vector<8x128xf32>
    %161 = arith.divf %159, %160 : vector<8x128xf32>
    %162 = vector.extract_strided_slice %155 {offsets = [0, 128], sizes = [8, 128], strides = [1, 1]} : vector<8x512xf32> to vector<8x128xf32>
    %163 = arith.negf %162 : vector<8x128xf32>
    %164 = math.exp %163 : vector<8x128xf32>
    %cst_85 = arith.constant 1.000000e+00 : f32
    %165 = vector.broadcast %cst_85 : f32 to vector<8x128xf32>
    %166 = arith.addf %165, %164 : vector<8x128xf32>
    %167 = arith.divf %165, %166 : vector<8x128xf32>
    %168 = vector.extract_strided_slice %155 {offsets = [0, 256], sizes = [8, 128], strides = [1, 1]} : vector<8x512xf32> to vector<8x128xf32>
    %169 = math.tanh %168 : vector<8x128xf32>
    %170 = vector.extract_strided_slice %155 {offsets = [0, 384], sizes = [8, 128], strides = [1, 1]} : vector<8x512xf32> to vector<8x128xf32>
    %171 = arith.negf %170 : vector<8x128xf32>
    %172 = math.exp %171 : vector<8x128xf32>
    %cst_86 = arith.constant 1.000000e+00 : f32
    %173 = vector.broadcast %cst_86 : f32 to vector<8x128xf32>
    %174 = arith.addf %173, %172 : vector<8x128xf32>
    %175 = arith.divf %173, %174 : vector<8x128xf32>
    %176 = arith.mulf %167, %150 : vector<8x128xf32>
    %177 = arith.mulf %161, %169 : vector<8x128xf32>
    %178 = arith.addf %176, %177 : vector<8x128xf32>
    %179 = math.tanh %178 : vector<8x128xf32>
    %180 = arith.mulf %175, %179 : vector<8x128xf32>
    %c0_87 = arith.constant 0 : index
    %c0_88 = arith.constant 0 : index
    %c0_89 = arith.constant 0 : index
    %181 = vector.load %arg10[%c0_87, %c0_88, %c0_89] : memref<2x8x128xf32, #tpu.memory_space<vmem>>, vector<1x8x128xf32>
    %182 = vector.shape_cast %181 : vector<1x8x128xf32> to vector<8x128xf32>
    %183 = vector.shape_cast %178 : vector<8x128xf32> to vector<1x8x128xf32>
    tpu.vector_store %arg10[%c0_87, %c0_88, %c0_89], %183 {strides = array<i32>} : memref<2x8x128xf32, #tpu.memory_space<vmem>>, vector<1x8x128xf32>,
    %c0_90 = arith.constant 0 : index
    %c0_91 = arith.constant 0 : index
    %c0_92 = arith.constant 0 : index
    %184 = vector.load %arg9[%c0_90, %c0_91, %c0_92] : memref<2x8x128xf32, #tpu.memory_space<vmem>>, vector<1x8x128xf32>
    %185 = vector.shape_cast %184 : vector<1x8x128xf32> to vector<8x128xf32>
    %186 = vector.shape_cast %180 : vector<8x128xf32> to vector<1x8x128xf32>
    tpu.vector_store %arg9[%c0_90, %c0_91, %c0_92], %186 {strides = array<i32>} : memref<2x8x128xf32, #tpu.memory_space<vmem>>, vector<1x8x128xf32>,
    %187 = arith.index_cast %c3_i32 : i32 to index
    %c0_93 = arith.constant 0 : index
    %c0_94 = arith.constant 0 : index
    %188 = vector.load %arg12[%187, %c0_93, %c0_94] : memref<8x8x128xf32, #tpu.memory_space<vmem>>, vector<1x8x128xf32>
    %189 = vector.shape_cast %188 : vector<1x8x128xf32> to vector<8x128xf32>
    %190 = vector.shape_cast %180 : vector<8x128xf32> to vector<1x8x128xf32>
    tpu.vector_store %arg12[%187, %c0_93, %c0_94], %190 {strides = array<i32>} : memref<8x8x128xf32, #tpu.memory_space<vmem>>, vector<1x8x128xf32>,
    %c4_i32 = arith.constant 4 : i32
    %c0_95 = arith.constant 0 : index
    %c0_96 = arith.constant 0 : index
    %c0_97 = arith.constant 0 : index
    %191 = vector.load %arg9[%c0_95, %c0_96, %c0_97] : memref<2x8x128xf32, #tpu.memory_space<vmem>>, vector<1x8x128xf32>
    %192 = vector.shape_cast %191 : vector<1x8x128xf32> to vector<8x128xf32>
    %c0_98 = arith.constant 0 : index
    %c0_99 = arith.constant 0 : index
    %c0_100 = arith.constant 0 : index
    %193 = vector.load %arg10[%c0_98, %c0_99, %c0_100] : memref<2x8x128xf32, #tpu.memory_space<vmem>>, vector<1x8x128xf32>
    %194 = vector.shape_cast %193 : vector<1x8x128xf32> to vector<8x128xf32>
    %195 = arith.index_cast %c4_i32 : i32 to index
    %c0_101 = arith.constant 0 : index
    %c0_102 = arith.constant 0 : index
    %196 = vector.load %arg11[%195, %c0_101, %c0_102] : memref<8x8x512xf32, #tpu.memory_space<vmem>>, vector<1x8x512xf32>
    %197 = vector.shape_cast %196 : vector<1x8x512xf32> to vector<8x512xf32>
    %cst_103 = arith.constant dense<0.000000e+00> : vector<8x512xf32>
    %198 = tpu.matmul %192, %14, %cst_103 {dimension_numbers = #tpu.dot_dimension_numbers<[1], [0], [0], [1], [0, 0, 1, 1], [], []>} : vector<8x128xf32>, vector<128x512xf32>, vector<8x512xf32> -> vector<8x512xf32>
    %199 = arith.addf %197, %198 : vector<8x512xf32>
    %200 = vector.extract_strided_slice %199 {offsets = [0, 0], sizes = [8, 128], strides = [1, 1]} : vector<8x512xf32> to vector<8x128xf32>
    %201 = arith.negf %200 : vector<8x128xf32>
    %202 = math.exp %201 : vector<8x128xf32>
    %cst_104 = arith.constant 1.000000e+00 : f32
    %203 = vector.broadcast %cst_104 : f32 to vector<8x128xf32>
    %204 = arith.addf %203, %202 : vector<8x128xf32>
    %205 = arith.divf %203, %204 : vector<8x128xf32>
    %206 = vector.extract_strided_slice %199 {offsets = [0, 128], sizes = [8, 128], strides = [1, 1]} : vector<8x512xf32> to vector<8x128xf32>
    %207 = arith.negf %206 : vector<8x128xf32>
    %208 = math.exp %207 : vector<8x128xf32>
    %cst_105 = arith.constant 1.000000e+00 : f32
    %209 = vector.broadcast %cst_105 : f32 to vector<8x128xf32>
    %210 = arith.addf %209, %208 : vector<8x128xf32>
    %211 = arith.divf %209, %210 : vector<8x128xf32>
    %212 = vector.extract_strided_slice %199 {offsets = [0, 256], sizes = [8, 128], strides = [1, 1]} : vector<8x512xf32> to vector<8x128xf32>
    %213 = math.tanh %212 : vector<8x128xf32>
    %214 = vector.extract_strided_slice %199 {offsets = [0, 384], sizes = [8, 128], strides = [1, 1]} : vector<8x512xf32> to vector<8x128xf32>
    %215 = arith.negf %214 : vector<8x128xf32>
    %216 = math.exp %215 : vector<8x128xf32>
    %cst_106 = arith.constant 1.000000e+00 : f32
    %217 = vector.broadcast %cst_106 : f32 to vector<8x128xf32>
    %218 = arith.addf %217, %216 : vector<8x128xf32>
    %219 = arith.divf %217, %218 : vector<8x128xf32>
    %220 = arith.mulf %211, %194 : vector<8x128xf32>
    %221 = arith.mulf %205, %213 : vector<8x128xf32>
    %222 = arith.addf %220, %221 : vector<8x128xf32>
    %223 = math.tanh %222 : vector<8x128xf32>
    %224 = arith.mulf %219, %223 : vector<8x128xf32>
    %c0_107 = arith.constant 0 : index
    %c0_108 = arith.constant 0 : index
    %c0_109 = arith.constant 0 : index
    %225 = vector.load %arg10[%c0_107, %c0_108, %c0_109] : memref<2x8x128xf32, #tpu.memory_space<vmem>>, vector<1x8x128xf32>
    %226 = vector.shape_cast %225 : vector<1x8x128xf32> to vector<8x128xf32>
    %227 = vector.shape_cast %222 : vector<8x128xf32> to vector<1x8x128xf32>
    tpu.vector_store %arg10[%c0_107, %c0_108, %c0_109], %227 {strides = array<i32>} : memref<2x8x128xf32, #tpu.memory_space<vmem>>, vector<1x8x128xf32>,
    %c0_110 = arith.constant 0 : index
    %c0_111 = arith.constant 0 : index
    %c0_112 = arith.constant 0 : index
    %228 = vector.load %arg9[%c0_110, %c0_111, %c0_112] : memref<2x8x128xf32, #tpu.memory_space<vmem>>, vector<1x8x128xf32>
    %229 = vector.shape_cast %228 : vector<1x8x128xf32> to vector<8x128xf32>
    %230 = vector.shape_cast %224 : vector<8x128xf32> to vector<1x8x128xf32>
    tpu.vector_store %arg9[%c0_110, %c0_111, %c0_112], %230 {strides = array<i32>} : memref<2x8x128xf32, #tpu.memory_space<vmem>>, vector<1x8x128xf32>,
    %231 = arith.index_cast %c4_i32 : i32 to index
    %c0_113 = arith.constant 0 : index
    %c0_114 = arith.constant 0 : index
    %232 = vector.load %arg12[%231, %c0_113, %c0_114] : memref<8x8x128xf32, #tpu.memory_space<vmem>>, vector<1x8x128xf32>
    %233 = vector.shape_cast %232 : vector<1x8x128xf32> to vector<8x128xf32>
    %234 = vector.shape_cast %224 : vector<8x128xf32> to vector<1x8x128xf32>
    tpu.vector_store %arg12[%231, %c0_113, %c0_114], %234 {strides = array<i32>} : memref<8x8x128xf32, #tpu.memory_space<vmem>>, vector<1x8x128xf32>,
    %c5_i32 = arith.constant 5 : i32
    %c0_115 = arith.constant 0 : index
    %c0_116 = arith.constant 0 : index
    %c0_117 = arith.constant 0 : index
    %235 = vector.load %arg9[%c0_115, %c0_116, %c0_117] : memref<2x8x128xf32, #tpu.memory_space<vmem>>, vector<1x8x128xf32>
    %236 = vector.shape_cast %235 : vector<1x8x128xf32> to vector<8x128xf32>
    %c0_118 = arith.constant 0 : index
    %c0_119 = arith.constant 0 : index
    %c0_120 = arith.constant 0 : index
    %237 = vector.load %arg10[%c0_118, %c0_119, %c0_120] : memref<2x8x128xf32, #tpu.memory_space<vmem>>, vector<1x8x128xf32>
    %238 = vector.shape_cast %237 : vector<1x8x128xf32> to vector<8x128xf32>
    %239 = arith.index_cast %c5_i32 : i32 to index
    %c0_121 = arith.constant 0 : index
    %c0_122 = arith.constant 0 : index
    %240 = vector.load %arg11[%239, %c0_121, %c0_122] : memref<8x8x512xf32, #tpu.memory_space<vmem>>, vector<1x8x512xf32>
    %241 = vector.shape_cast %240 : vector<1x8x512xf32> to vector<8x512xf32>
    %cst_123 = arith.constant dense<0.000000e+00> : vector<8x512xf32>
    %242 = tpu.matmul %236, %14, %cst_123 {dimension_numbers = #tpu.dot_dimension_numbers<[1], [0], [0], [1], [0, 0, 1, 1], [], []>} : vector<8x128xf32>, vector<128x512xf32>, vector<8x512xf32> -> vector<8x512xf32>
    %243 = arith.addf %241, %242 : vector<8x512xf32>
    %244 = vector.extract_strided_slice %243 {offsets = [0, 0], sizes = [8, 128], strides = [1, 1]} : vector<8x512xf32> to vector<8x128xf32>
    %245 = arith.negf %244 : vector<8x128xf32>
    %246 = math.exp %245 : vector<8x128xf32>
    %cst_124 = arith.constant 1.000000e+00 : f32
    %247 = vector.broadcast %cst_124 : f32 to vector<8x128xf32>
    %248 = arith.addf %247, %246 : vector<8x128xf32>
    %249 = arith.divf %247, %248 : vector<8x128xf32>
    %250 = vector.extract_strided_slice %243 {offsets = [0, 128], sizes = [8, 128], strides = [1, 1]} : vector<8x512xf32> to vector<8x128xf32>
    %251 = arith.negf %250 : vector<8x128xf32>
    %252 = math.exp %251 : vector<8x128xf32>
    %cst_125 = arith.constant 1.000000e+00 : f32
    %253 = vector.broadcast %cst_125 : f32 to vector<8x128xf32>
    %254 = arith.addf %253, %252 : vector<8x128xf32>
    %255 = arith.divf %253, %254 : vector<8x128xf32>
    %256 = vector.extract_strided_slice %243 {offsets = [0, 256], sizes = [8, 128], strides = [1, 1]} : vector<8x512xf32> to vector<8x128xf32>
    %257 = math.tanh %256 : vector<8x128xf32>
    %258 = vector.extract_strided_slice %243 {offsets = [0, 384], sizes = [8, 128], strides = [1, 1]} : vector<8x512xf32> to vector<8x128xf32>
    %259 = arith.negf %258 : vector<8x128xf32>
    %260 = math.exp %259 : vector<8x128xf32>
    %cst_126 = arith.constant 1.000000e+00 : f32
    %261 = vector.broadcast %cst_126 : f32 to vector<8x128xf32>
    %262 = arith.addf %261, %260 : vector<8x128xf32>
    %263 = arith.divf %261, %262 : vector<8x128xf32>
    %264 = arith.mulf %255, %238 : vector<8x128xf32>
    %265 = arith.mulf %249, %257 : vector<8x128xf32>
    %266 = arith.addf %264, %265 : vector<8x128xf32>
    %267 = math.tanh %266 : vector<8x128xf32>
    %268 = arith.mulf %263, %267 : vector<8x128xf32>
    %c0_127 = arith.constant 0 : index
    %c0_128 = arith.constant 0 : index
    %c0_129 = arith.constant 0 : index
    %269 = vector.load %arg10[%c0_127, %c0_128, %c0_129] : memref<2x8x128xf32, #tpu.memory_space<vmem>>, vector<1x8x128xf32>
    %270 = vector.shape_cast %269 : vector<1x8x128xf32> to vector<8x128xf32>
    %271 = vector.shape_cast %266 : vector<8x128xf32> to vector<1x8x128xf32>
    tpu.vector_store %arg10[%c0_127, %c0_128, %c0_129], %271 {strides = array<i32>} : memref<2x8x128xf32, #tpu.memory_space<vmem>>, vector<1x8x128xf32>,
    %c0_130 = arith.constant 0 : index
    %c0_131 = arith.constant 0 : index
    %c0_132 = arith.constant 0 : index
    %272 = vector.load %arg9[%c0_130, %c0_131, %c0_132] : memref<2x8x128xf32, #tpu.memory_space<vmem>>, vector<1x8x128xf32>
    %273 = vector.shape_cast %272 : vector<1x8x128xf32> to vector<8x128xf32>
    %274 = vector.shape_cast %268 : vector<8x128xf32> to vector<1x8x128xf32>
    tpu.vector_store %arg9[%c0_130, %c0_131, %c0_132], %274 {strides = array<i32>} : memref<2x8x128xf32, #tpu.memory_space<vmem>>, vector<1x8x128xf32>,
    %275 = arith.index_cast %c5_i32 : i32 to index
    %c0_133 = arith.constant 0 : index
    %c0_134 = arith.constant 0 : index
    %276 = vector.load %arg12[%275, %c0_133, %c0_134] : memref<8x8x128xf32, #tpu.memory_space<vmem>>, vector<1x8x128xf32>
    %277 = vector.shape_cast %276 : vector<1x8x128xf32> to vector<8x128xf32>
    %278 = vector.shape_cast %268 : vector<8x128xf32> to vector<1x8x128xf32>
    tpu.vector_store %arg12[%275, %c0_133, %c0_134], %278 {strides = array<i32>} : memref<8x8x128xf32, #tpu.memory_space<vmem>>, vector<1x8x128xf32>,
    %c6_i32 = arith.constant 6 : i32
    %c0_135 = arith.constant 0 : index
    %c0_136 = arith.constant 0 : index
    %c0_137 = arith.constant 0 : index
    %279 = vector.load %arg9[%c0_135, %c0_136, %c0_137] : memref<2x8x128xf32, #tpu.memory_space<vmem>>, vector<1x8x128xf32>
    %280 = vector.shape_cast %279 : vector<1x8x128xf32> to vector<8x128xf32>
    %c0_138 = arith.constant 0 : index
    %c0_139 = arith.constant 0 : index
    %c0_140 = arith.constant 0 : index
    %281 = vector.load %arg10[%c0_138, %c0_139, %c0_140] : memref<2x8x128xf32, #tpu.memory_space<vmem>>, vector<1x8x128xf32>
    %282 = vector.shape_cast %281 : vector<1x8x128xf32> to vector<8x128xf32>
    %283 = arith.index_cast %c6_i32 : i32 to index
    %c0_141 = arith.constant 0 : index
    %c0_142 = arith.constant 0 : index
    %284 = vector.load %arg11[%283, %c0_141, %c0_142] : memref<8x8x512xf32, #tpu.memory_space<vmem>>, vector<1x8x512xf32>
    %285 = vector.shape_cast %284 : vector<1x8x512xf32> to vector<8x512xf32>
    %cst_143 = arith.constant dense<0.000000e+00> : vector<8x512xf32>
    %286 = tpu.matmul %280, %14, %cst_143 {dimension_numbers = #tpu.dot_dimension_numbers<[1], [0], [0], [1], [0, 0, 1, 1], [], []>} : vector<8x128xf32>, vector<128x512xf32>, vector<8x512xf32> -> vector<8x512xf32>
    %287 = arith.addf %285, %286 : vector<8x512xf32>
    %288 = vector.extract_strided_slice %287 {offsets = [0, 0], sizes = [8, 128], strides = [1, 1]} : vector<8x512xf32> to vector<8x128xf32>
    %289 = arith.negf %288 : vector<8x128xf32>
    %290 = math.exp %289 : vector<8x128xf32>
    %cst_144 = arith.constant 1.000000e+00 : f32
    %291 = vector.broadcast %cst_144 : f32 to vector<8x128xf32>
    %292 = arith.addf %291, %290 : vector<8x128xf32>
    %293 = arith.divf %291, %292 : vector<8x128xf32>
    %294 = vector.extract_strided_slice %287 {offsets = [0, 128], sizes = [8, 128], strides = [1, 1]} : vector<8x512xf32> to vector<8x128xf32>
    %295 = arith.negf %294 : vector<8x128xf32>
    %296 = math.exp %295 : vector<8x128xf32>
    %cst_145 = arith.constant 1.000000e+00 : f32
    %297 = vector.broadcast %cst_145 : f32 to vector<8x128xf32>
    %298 = arith.addf %297, %296 : vector<8x128xf32>
    %299 = arith.divf %297, %298 : vector<8x128xf32>
    %300 = vector.extract_strided_slice %287 {offsets = [0, 256], sizes = [8, 128], strides = [1, 1]} : vector<8x512xf32> to vector<8x128xf32>
    %301 = math.tanh %300 : vector<8x128xf32>
    %302 = vector.extract_strided_slice %287 {offsets = [0, 384], sizes = [8, 128], strides = [1, 1]} : vector<8x512xf32> to vector<8x128xf32>
    %303 = arith.negf %302 : vector<8x128xf32>
    %304 = math.exp %303 : vector<8x128xf32>
    %cst_146 = arith.constant 1.000000e+00 : f32
    %305 = vector.broadcast %cst_146 : f32 to vector<8x128xf32>
    %306 = arith.addf %305, %304 : vector<8x128xf32>
    %307 = arith.divf %305, %306 : vector<8x128xf32>
    %308 = arith.mulf %299, %282 : vector<8x128xf32>
    %309 = arith.mulf %293, %301 : vector<8x128xf32>
    %310 = arith.addf %308, %309 : vector<8x128xf32>
    %311 = math.tanh %310 : vector<8x128xf32>
    %312 = arith.mulf %307, %311 : vector<8x128xf32>
    %c0_147 = arith.constant 0 : index
    %c0_148 = arith.constant 0 : index
    %c0_149 = arith.constant 0 : index
    %313 = vector.load %arg10[%c0_147, %c0_148, %c0_149] : memref<2x8x128xf32, #tpu.memory_space<vmem>>, vector<1x8x128xf32>
    %314 = vector.shape_cast %313 : vector<1x8x128xf32> to vector<8x128xf32>
    %315 = vector.shape_cast %310 : vector<8x128xf32> to vector<1x8x128xf32>
    tpu.vector_store %arg10[%c0_147, %c0_148, %c0_149], %315 {strides = array<i32>} : memref<2x8x128xf32, #tpu.memory_space<vmem>>, vector<1x8x128xf32>,
    %c0_150 = arith.constant 0 : index
    %c0_151 = arith.constant 0 : index
    %c0_152 = arith.constant 0 : index
    %316 = vector.load %arg9[%c0_150, %c0_151, %c0_152] : memref<2x8x128xf32, #tpu.memory_space<vmem>>, vector<1x8x128xf32>
    %317 = vector.shape_cast %316 : vector<1x8x128xf32> to vector<8x128xf32>
    %318 = vector.shape_cast %312 : vector<8x128xf32> to vector<1x8x128xf32>
    tpu.vector_store %arg9[%c0_150, %c0_151, %c0_152], %318 {strides = array<i32>} : memref<2x8x128xf32, #tpu.memory_space<vmem>>, vector<1x8x128xf32>,
    %319 = arith.index_cast %c6_i32 : i32 to index
    %c0_153 = arith.constant 0 : index
    %c0_154 = arith.constant 0 : index
    %320 = vector.load %arg12[%319, %c0_153, %c0_154] : memref<8x8x128xf32, #tpu.memory_space<vmem>>, vector<1x8x128xf32>
    %321 = vector.shape_cast %320 : vector<1x8x128xf32> to vector<8x128xf32>
    %322 = vector.shape_cast %312 : vector<8x128xf32> to vector<1x8x128xf32>
    tpu.vector_store %arg12[%319, %c0_153, %c0_154], %322 {strides = array<i32>} : memref<8x8x128xf32, #tpu.memory_space<vmem>>, vector<1x8x128xf32>,
    %c7_i32 = arith.constant 7 : i32
    %c0_155 = arith.constant 0 : index
    %c0_156 = arith.constant 0 : index
    %c0_157 = arith.constant 0 : index
    %323 = vector.load %arg9[%c0_155, %c0_156, %c0_157] : memref<2x8x128xf32, #tpu.memory_space<vmem>>, vector<1x8x128xf32>
    %324 = vector.shape_cast %323 : vector<1x8x128xf32> to vector<8x128xf32>
    %c0_158 = arith.constant 0 : index
    %c0_159 = arith.constant 0 : index
    %c0_160 = arith.constant 0 : index
    %325 = vector.load %arg10[%c0_158, %c0_159, %c0_160] : memref<2x8x128xf32, #tpu.memory_space<vmem>>, vector<1x8x128xf32>
    %326 = vector.shape_cast %325 : vector<1x8x128xf32> to vector<8x128xf32>
    %327 = arith.index_cast %c7_i32 : i32 to index
    %c0_161 = arith.constant 0 : index
    %c0_162 = arith.constant 0 : index
    %328 = vector.load %arg11[%327, %c0_161, %c0_162] : memref<8x8x512xf32, #tpu.memory_space<vmem>>, vector<1x8x512xf32>
    %329 = vector.shape_cast %328 : vector<1x8x512xf32> to vector<8x512xf32>
    %cst_163 = arith.constant dense<0.000000e+00> : vector<8x512xf32>
    %330 = tpu.matmul %324, %14, %cst_163 {dimension_numbers = #tpu.dot_dimension_numbers<[1], [0], [0], [1], [0, 0, 1, 1], [], []>} : vector<8x128xf32>, vector<128x512xf32>, vector<8x512xf32> -> vector<8x512xf32>
    %331 = arith.addf %329, %330 : vector<8x512xf32>
    %332 = vector.extract_strided_slice %331 {offsets = [0, 0], sizes = [8, 128], strides = [1, 1]} : vector<8x512xf32> to vector<8x128xf32>
    %333 = arith.negf %332 : vector<8x128xf32>
    %334 = math.exp %333 : vector<8x128xf32>
    %cst_164 = arith.constant 1.000000e+00 : f32
    %335 = vector.broadcast %cst_164 : f32 to vector<8x128xf32>
    %336 = arith.addf %335, %334 : vector<8x128xf32>
    %337 = arith.divf %335, %336 : vector<8x128xf32>
    %338 = vector.extract_strided_slice %331 {offsets = [0, 128], sizes = [8, 128], strides = [1, 1]} : vector<8x512xf32> to vector<8x128xf32>
    %339 = arith.negf %338 : vector<8x128xf32>
    %340 = math.exp %339 : vector<8x128xf32>
    %cst_165 = arith.constant 1.000000e+00 : f32
    %341 = vector.broadcast %cst_165 : f32 to vector<8x128xf32>
    %342 = arith.addf %341, %340 : vector<8x128xf32>
    %343 = arith.divf %341, %342 : vector<8x128xf32>
    %344 = vector.extract_strided_slice %331 {offsets = [0, 256], sizes = [8, 128], strides = [1, 1]} : vector<8x512xf32> to vector<8x128xf32>
    %345 = math.tanh %344 : vector<8x128xf32>
    %346 = vector.extract_strided_slice %331 {offsets = [0, 384], sizes = [8, 128], strides = [1, 1]} : vector<8x512xf32> to vector<8x128xf32>
    %347 = arith.negf %346 : vector<8x128xf32>
    %348 = math.exp %347 : vector<8x128xf32>
    %cst_166 = arith.constant 1.000000e+00 : f32
    %349 = vector.broadcast %cst_166 : f32 to vector<8x128xf32>
    %350 = arith.addf %349, %348 : vector<8x128xf32>
    %351 = arith.divf %349, %350 : vector<8x128xf32>
    %352 = arith.mulf %343, %326 : vector<8x128xf32>
    %353 = arith.mulf %337, %345 : vector<8x128xf32>
    %354 = arith.addf %352, %353 : vector<8x128xf32>
    %355 = math.tanh %354 : vector<8x128xf32>
    %356 = arith.mulf %351, %355 : vector<8x128xf32>
    %c0_167 = arith.constant 0 : index
    %c0_168 = arith.constant 0 : index
    %c0_169 = arith.constant 0 : index
    %357 = vector.load %arg10[%c0_167, %c0_168, %c0_169] : memref<2x8x128xf32, #tpu.memory_space<vmem>>, vector<1x8x128xf32>
    %358 = vector.shape_cast %357 : vector<1x8x128xf32> to vector<8x128xf32>
    %359 = vector.shape_cast %354 : vector<8x128xf32> to vector<1x8x128xf32>
    tpu.vector_store %arg10[%c0_167, %c0_168, %c0_169], %359 {strides = array<i32>} : memref<2x8x128xf32, #tpu.memory_space<vmem>>, vector<1x8x128xf32>,
    %c0_170 = arith.constant 0 : index
    %c0_171 = arith.constant 0 : index
    %c0_172 = arith.constant 0 : index
    %360 = vector.load %arg9[%c0_170, %c0_171, %c0_172] : memref<2x8x128xf32, #tpu.memory_space<vmem>>, vector<1x8x128xf32>
    %361 = vector.shape_cast %360 : vector<1x8x128xf32> to vector<8x128xf32>
    %362 = vector.shape_cast %356 : vector<8x128xf32> to vector<1x8x128xf32>
    tpu.vector_store %arg9[%c0_170, %c0_171, %c0_172], %362 {strides = array<i32>} : memref<2x8x128xf32, #tpu.memory_space<vmem>>, vector<1x8x128xf32>,
    %363 = arith.index_cast %c7_i32 : i32 to index
    %c0_173 = arith.constant 0 : index
    %c0_174 = arith.constant 0 : index
    %364 = vector.load %arg12[%363, %c0_173, %c0_174] : memref<8x8x128xf32, #tpu.memory_space<vmem>>, vector<1x8x128xf32>
    %365 = vector.shape_cast %364 : vector<1x8x128xf32> to vector<8x128xf32>
    %366 = vector.shape_cast %356 : vector<8x128xf32> to vector<1x8x128xf32>
    tpu.vector_store %arg12[%363, %c0_173, %c0_174], %366 {strides = array<i32>} : memref<8x8x128xf32, #tpu.memory_space<vmem>>, vector<1x8x128xf32>,
    %c8_i32 = arith.constant 8 : i32
    %c0_175 = arith.constant 0 : index
    %c0_176 = arith.constant 0 : index
    %c0_177 = arith.constant 0 : index
    %367 = vector.load %arg12[%c0_175, %c0_176, %c0_177] : memref<8x8x128xf32, #tpu.memory_space<vmem>>, vector<8x8x128xf32>
    %368 = vector.shape_cast %367 : vector<8x8x128xf32> to vector<64x128xf32>
    %c0_178 = arith.constant 0 : index
    %c0_179 = arith.constant 0 : index
    %c0_180 = arith.constant 0 : index
    %369 = vector.load %arg5[%c0_178, %c0_179, %c0_180] : memref<1x128x512xf32, #tpu.memory_space<vmem>>, vector<1x128x512xf32>
    %370 = vector.shape_cast %369 : vector<1x128x512xf32> to vector<128x512xf32>
    %cst_181 = arith.constant dense<0.000000e+00> : vector<64x512xf32>
    %371 = tpu.matmul %368, %370, %cst_181 {dimension_numbers = #tpu.dot_dimension_numbers<[1], [0], [0], [1], [0, 0, 1, 1], [], []>} : vector<64x128xf32>, vector<128x512xf32>, vector<64x512xf32> -> vector<64x512xf32>
    %c1 = arith.constant 1 : index
    %c0_182 = arith.constant 0 : index
    %c0_183 = arith.constant 0 : index
    %372 = vector.load %arg4[%c1, %c0_182, %c0_183] : memref<2x1x512xf32, #tpu.memory_space<vmem>>, vector<1x1x512xf32>
    %373 = vector.shape_cast %372 : vector<1x1x512xf32> to vector<1x512xf32>
    %374 = vector.broadcast %373 : vector<1x512xf32> to vector<64x512xf32>
    %375 = arith.addf %371, %374 : vector<64x512xf32>
    %376 = vector.shape_cast %375 : vector<64x512xf32> to vector<8x8x512xf32>
    %c0_184 = arith.constant 0 : index
    %c0_185 = arith.constant 0 : index
    %c0_186 = arith.constant 0 : index
    %377 = vector.load %arg11[%c0_184, %c0_185, %c0_186] : memref<8x8x512xf32, #tpu.memory_space<vmem>>, vector<8x8x512xf32>
    tpu.vector_store %arg11[%c0_184, %c0_185, %c0_186], %376 {strides = array<i32>} : memref<8x8x512xf32, #tpu.memory_space<vmem>>, vector<8x8x512xf32>,
    %c1_187 = arith.constant 1 : index
    %c0_188 = arith.constant 0 : index
    %c0_189 = arith.constant 0 : index
    %378 = vector.load %arg3[%c1_187, %c0_188, %c0_189] : memref<2x128x512xf32, #tpu.memory_space<vmem>>, vector<1x128x512xf32>
    %379 = vector.shape_cast %378 : vector<1x128x512xf32> to vector<128x512xf32>
    %c0_i32_190 = arith.constant 0 : i32
    %c1_191 = arith.constant 1 : index
    %c0_192 = arith.constant 0 : index
    %c0_193 = arith.constant 0 : index
    %380 = vector.load %arg9[%c1_191, %c0_192, %c0_193] : memref<2x8x128xf32, #tpu.memory_space<vmem>>, vector<1x8x128xf32>
    %381 = vector.shape_cast %380 : vector<1x8x128xf32> to vector<8x128xf32>
    %c1_194 = arith.constant 1 : index
    %c0_195 = arith.constant 0 : index
    %c0_196 = arith.constant 0 : index
    %382 = vector.load %arg10[%c1_194, %c0_195, %c0_196] : memref<2x8x128xf32, #tpu.memory_space<vmem>>, vector<1x8x128xf32>
    %383 = vector.shape_cast %382 : vector<1x8x128xf32> to vector<8x128xf32>
    %384 = arith.index_cast %c0_i32_190 : i32 to index
    %c0_197 = arith.constant 0 : index
    %c0_198 = arith.constant 0 : index
    %385 = vector.load %arg11[%384, %c0_197, %c0_198] : memref<8x8x512xf32, #tpu.memory_space<vmem>>, vector<1x8x512xf32>
    %386 = vector.shape_cast %385 : vector<1x8x512xf32> to vector<8x512xf32>
    %cst_199 = arith.constant dense<0.000000e+00> : vector<8x512xf32>
    %387 = tpu.matmul %381, %379, %cst_199 {dimension_numbers = #tpu.dot_dimension_numbers<[1], [0], [0], [1], [0, 0, 1, 1], [], []>} : vector<8x128xf32>, vector<128x512xf32>, vector<8x512xf32> -> vector<8x512xf32>
    %388 = arith.addf %386, %387 : vector<8x512xf32>
    %389 = vector.extract_strided_slice %388 {offsets = [0, 0], sizes = [8, 128], strides = [1, 1]} : vector<8x512xf32> to vector<8x128xf32>
    %390 = arith.negf %389 : vector<8x128xf32>
    %391 = math.exp %390 : vector<8x128xf32>
    %cst_200 = arith.constant 1.000000e+00 : f32
    %392 = vector.broadcast %cst_200 : f32 to vector<8x128xf32>
    %393 = arith.addf %392, %391 : vector<8x128xf32>
    %394 = arith.divf %392, %393 : vector<8x128xf32>
    %395 = vector.extract_strided_slice %388 {offsets = [0, 128], sizes = [8, 128], strides = [1, 1]} : vector<8x512xf32> to vector<8x128xf32>
    %396 = arith.negf %395 : vector<8x128xf32>
    %397 = math.exp %396 : vector<8x128xf32>
    %cst_201 = arith.constant 1.000000e+00 : f32
    %398 = vector.broadcast %cst_201 : f32 to vector<8x128xf32>
    %399 = arith.addf %398, %397 : vector<8x128xf32>
    %400 = arith.divf %398, %399 : vector<8x128xf32>
    %401 = vector.extract_strided_slice %388 {offsets = [0, 256], sizes = [8, 128], strides = [1, 1]} : vector<8x512xf32> to vector<8x128xf32>
    %402 = math.tanh %401 : vector<8x128xf32>
    %403 = vector.extract_strided_slice %388 {offsets = [0, 384], sizes = [8, 128], strides = [1, 1]} : vector<8x512xf32> to vector<8x128xf32>
    %404 = arith.negf %403 : vector<8x128xf32>
    %405 = math.exp %404 : vector<8x128xf32>
    %cst_202 = arith.constant 1.000000e+00 : f32
    %406 = vector.broadcast %cst_202 : f32 to vector<8x128xf32>
    %407 = arith.addf %406, %405 : vector<8x128xf32>
    %408 = arith.divf %406, %407 : vector<8x128xf32>
    %409 = arith.mulf %400, %383 : vector<8x128xf32>
    %410 = arith.mulf %394, %402 : vector<8x128xf32>
    %411 = arith.addf %409, %410 : vector<8x128xf32>
    %412 = math.tanh %411 : vector<8x128xf32>
    %413 = arith.mulf %408, %412 : vector<8x128xf32>
    %c1_203 = arith.constant 1 : index
    %c0_204 = arith.constant 0 : index
    %c0_205 = arith.constant 0 : index
    %414 = vector.load %arg10[%c1_203, %c0_204, %c0_205] : memref<2x8x128xf32, #tpu.memory_space<vmem>>, vector<1x8x128xf32>
    %415 = vector.shape_cast %414 : vector<1x8x128xf32> to vector<8x128xf32>
    %416 = vector.shape_cast %411 : vector<8x128xf32> to vector<1x8x128xf32>
    tpu.vector_store %arg10[%c1_203, %c0_204, %c0_205], %416 {strides = array<i32>} : memref<2x8x128xf32, #tpu.memory_space<vmem>>, vector<1x8x128xf32>,
    %c1_206 = arith.constant 1 : index
    %c0_207 = arith.constant 0 : index
    %c0_208 = arith.constant 0 : index
    %417 = vector.load %arg9[%c1_206, %c0_207, %c0_208] : memref<2x8x128xf32, #tpu.memory_space<vmem>>, vector<1x8x128xf32>
    %418 = vector.shape_cast %417 : vector<1x8x128xf32> to vector<8x128xf32>
    %419 = vector.shape_cast %413 : vector<8x128xf32> to vector<1x8x128xf32>
    tpu.vector_store %arg9[%c1_206, %c0_207, %c0_208], %419 {strides = array<i32>} : memref<2x8x128xf32, #tpu.memory_space<vmem>>, vector<1x8x128xf32>,
    %420 = arith.index_cast %c0_i32_190 : i32 to index
    %c0_209 = arith.constant 0 : index
    %c0_210 = arith.constant 0 : index
    %421 = vector.load %arg12[%420, %c0_209, %c0_210] : memref<8x8x128xf32, #tpu.memory_space<vmem>>, vector<1x8x128xf32>
    %422 = vector.shape_cast %421 : vector<1x8x128xf32> to vector<8x128xf32>
    %423 = vector.shape_cast %413 : vector<8x128xf32> to vector<1x8x128xf32>
    tpu.vector_store %arg12[%420, %c0_209, %c0_210], %423 {strides = array<i32>} : memref<8x8x128xf32, #tpu.memory_space<vmem>>, vector<1x8x128xf32>,
    %c1_i32_211 = arith.constant 1 : i32
    %c1_212 = arith.constant 1 : index
    %c0_213 = arith.constant 0 : index
    %c0_214 = arith.constant 0 : index
    %424 = vector.load %arg9[%c1_212, %c0_213, %c0_214] : memref<2x8x128xf32, #tpu.memory_space<vmem>>, vector<1x8x128xf32>
    %425 = vector.shape_cast %424 : vector<1x8x128xf32> to vector<8x128xf32>
    %c1_215 = arith.constant 1 : index
    %c0_216 = arith.constant 0 : index
    %c0_217 = arith.constant 0 : index
    %426 = vector.load %arg10[%c1_215, %c0_216, %c0_217] : memref<2x8x128xf32, #tpu.memory_space<vmem>>, vector<1x8x128xf32>
    %427 = vector.shape_cast %426 : vector<1x8x128xf32> to vector<8x128xf32>
    %428 = arith.index_cast %c1_i32_211 : i32 to index
    %c0_218 = arith.constant 0 : index
    %c0_219 = arith.constant 0 : index
    %429 = vector.load %arg11[%428, %c0_218, %c0_219] : memref<8x8x512xf32, #tpu.memory_space<vmem>>, vector<1x8x512xf32>
    %430 = vector.shape_cast %429 : vector<1x8x512xf32> to vector<8x512xf32>
    %cst_220 = arith.constant dense<0.000000e+00> : vector<8x512xf32>
    %431 = tpu.matmul %425, %379, %cst_220 {dimension_numbers = #tpu.dot_dimension_numbers<[1], [0], [0], [1], [0, 0, 1, 1], [], []>} : vector<8x128xf32>, vector<128x512xf32>, vector<8x512xf32> -> vector<8x512xf32>
    %432 = arith.addf %430, %431 : vector<8x512xf32>
    %433 = vector.extract_strided_slice %432 {offsets = [0, 0], sizes = [8, 128], strides = [1, 1]} : vector<8x512xf32> to vector<8x128xf32>
    %434 = arith.negf %433 : vector<8x128xf32>
    %435 = math.exp %434 : vector<8x128xf32>
    %cst_221 = arith.constant 1.000000e+00 : f32
    %436 = vector.broadcast %cst_221 : f32 to vector<8x128xf32>
    %437 = arith.addf %436, %435 : vector<8x128xf32>
    %438 = arith.divf %436, %437 : vector<8x128xf32>
    %439 = vector.extract_strided_slice %432 {offsets = [0, 128], sizes = [8, 128], strides = [1, 1]} : vector<8x512xf32> to vector<8x128xf32>
    %440 = arith.negf %439 : vector<8x128xf32>
    %441 = math.exp %440 : vector<8x128xf32>
    %cst_222 = arith.constant 1.000000e+00 : f32
    %442 = vector.broadcast %cst_222 : f32 to vector<8x128xf32>
    %443 = arith.addf %442, %441 : vector<8x128xf32>
    %444 = arith.divf %442, %443 : vector<8x128xf32>
    %445 = vector.extract_strided_slice %432 {offsets = [0, 256], sizes = [8, 128], strides = [1, 1]} : vector<8x512xf32> to vector<8x128xf32>
    %446 = math.tanh %445 : vector<8x128xf32>
    %447 = vector.extract_strided_slice %432 {offsets = [0, 384], sizes = [8, 128], strides = [1, 1]} : vector<8x512xf32> to vector<8x128xf32>
    %448 = arith.negf %447 : vector<8x128xf32>
    %449 = math.exp %448 : vector<8x128xf32>
    %cst_223 = arith.constant 1.000000e+00 : f32
    %450 = vector.broadcast %cst_223 : f32 to vector<8x128xf32>
    %451 = arith.addf %450, %449 : vector<8x128xf32>
    %452 = arith.divf %450, %451 : vector<8x128xf32>
    %453 = arith.mulf %444, %427 : vector<8x128xf32>
    %454 = arith.mulf %438, %446 : vector<8x128xf32>
    %455 = arith.addf %453, %454 : vector<8x128xf32>
    %456 = math.tanh %455 : vector<8x128xf32>
    %457 = arith.mulf %452, %456 : vector<8x128xf32>
    %c1_224 = arith.constant 1 : index
    %c0_225 = arith.constant 0 : index
    %c0_226 = arith.constant 0 : index
    %458 = vector.load %arg10[%c1_224, %c0_225, %c0_226] : memref<2x8x128xf32, #tpu.memory_space<vmem>>, vector<1x8x128xf32>
    %459 = vector.shape_cast %458 : vector<1x8x128xf32> to vector<8x128xf32>
    %460 = vector.shape_cast %455 : vector<8x128xf32> to vector<1x8x128xf32>
    tpu.vector_store %arg10[%c1_224, %c0_225, %c0_226], %460 {strides = array<i32>} : memref<2x8x128xf32, #tpu.memory_space<vmem>>, vector<1x8x128xf32>,
    %c1_227 = arith.constant 1 : index
    %c0_228 = arith.constant 0 : index
    %c0_229 = arith.constant 0 : index
    %461 = vector.load %arg9[%c1_227, %c0_228, %c0_229] : memref<2x8x128xf32, #tpu.memory_space<vmem>>, vector<1x8x128xf32>
    %462 = vector.shape_cast %461 : vector<1x8x128xf32> to vector<8x128xf32>
    %463 = vector.shape_cast %457 : vector<8x128xf32> to vector<1x8x128xf32>
    tpu.vector_store %arg9[%c1_227, %c0_228, %c0_229], %463 {strides = array<i32>} : memref<2x8x128xf32, #tpu.memory_space<vmem>>, vector<1x8x128xf32>,
    %464 = arith.index_cast %c1_i32_211 : i32 to index
    %c0_230 = arith.constant 0 : index
    %c0_231 = arith.constant 0 : index
    %465 = vector.load %arg12[%464, %c0_230, %c0_231] : memref<8x8x128xf32, #tpu.memory_space<vmem>>, vector<1x8x128xf32>
    %466 = vector.shape_cast %465 : vector<1x8x128xf32> to vector<8x128xf32>
    %467 = vector.shape_cast %457 : vector<8x128xf32> to vector<1x8x128xf32>
    tpu.vector_store %arg12[%464, %c0_230, %c0_231], %467 {strides = array<i32>} : memref<8x8x128xf32, #tpu.memory_space<vmem>>, vector<1x8x128xf32>,
    %c2_i32_232 = arith.constant 2 : i32
    %c1_233 = arith.constant 1 : index
    %c0_234 = arith.constant 0 : index
    %c0_235 = arith.constant 0 : index
    %468 = vector.load %arg9[%c1_233, %c0_234, %c0_235] : memref<2x8x128xf32, #tpu.memory_space<vmem>>, vector<1x8x128xf32>
    %469 = vector.shape_cast %468 : vector<1x8x128xf32> to vector<8x128xf32>
    %c1_236 = arith.constant 1 : index
    %c0_237 = arith.constant 0 : index
    %c0_238 = arith.constant 0 : index
    %470 = vector.load %arg10[%c1_236, %c0_237, %c0_238] : memref<2x8x128xf32, #tpu.memory_space<vmem>>, vector<1x8x128xf32>
    %471 = vector.shape_cast %470 : vector<1x8x128xf32> to vector<8x128xf32>
    %472 = arith.index_cast %c2_i32_232 : i32 to index
    %c0_239 = arith.constant 0 : index
    %c0_240 = arith.constant 0 : index
    %473 = vector.load %arg11[%472, %c0_239, %c0_240] : memref<8x8x512xf32, #tpu.memory_space<vmem>>, vector<1x8x512xf32>
    %474 = vector.shape_cast %473 : vector<1x8x512xf32> to vector<8x512xf32>
    %cst_241 = arith.constant dense<0.000000e+00> : vector<8x512xf32>
    %475 = tpu.matmul %469, %379, %cst_241 {dimension_numbers = #tpu.dot_dimension_numbers<[1], [0], [0], [1], [0, 0, 1, 1], [], []>} : vector<8x128xf32>, vector<128x512xf32>, vector<8x512xf32> -> vector<8x512xf32>
    %476 = arith.addf %474, %475 : vector<8x512xf32>
    %477 = vector.extract_strided_slice %476 {offsets = [0, 0], sizes = [8, 128], strides = [1, 1]} : vector<8x512xf32> to vector<8x128xf32>
    %478 = arith.negf %477 : vector<8x128xf32>
    %479 = math.exp %478 : vector<8x128xf32>
    %cst_242 = arith.constant 1.000000e+00 : f32
    %480 = vector.broadcast %cst_242 : f32 to vector<8x128xf32>
    %481 = arith.addf %480, %479 : vector<8x128xf32>
    %482 = arith.divf %480, %481 : vector<8x128xf32>
    %483 = vector.extract_strided_slice %476 {offsets = [0, 128], sizes = [8, 128], strides = [1, 1]} : vector<8x512xf32> to vector<8x128xf32>
    %484 = arith.negf %483 : vector<8x128xf32>
    %485 = math.exp %484 : vector<8x128xf32>
    %cst_243 = arith.constant 1.000000e+00 : f32
    %486 = vector.broadcast %cst_243 : f32 to vector<8x128xf32>
    %487 = arith.addf %486, %485 : vector<8x128xf32>
    %488 = arith.divf %486, %487 : vector<8x128xf32>
    %489 = vector.extract_strided_slice %476 {offsets = [0, 256], sizes = [8, 128], strides = [1, 1]} : vector<8x512xf32> to vector<8x128xf32>
    %490 = math.tanh %489 : vector<8x128xf32>
    %491 = vector.extract_strided_slice %476 {offsets = [0, 384], sizes = [8, 128], strides = [1, 1]} : vector<8x512xf32> to vector<8x128xf32>
    %492 = arith.negf %491 : vector<8x128xf32>
    %493 = math.exp %492 : vector<8x128xf32>
    %cst_244 = arith.constant 1.000000e+00 : f32
    %494 = vector.broadcast %cst_244 : f32 to vector<8x128xf32>
    %495 = arith.addf %494, %493 : vector<8x128xf32>
    %496 = arith.divf %494, %495 : vector<8x128xf32>
    %497 = arith.mulf %488, %471 : vector<8x128xf32>
    %498 = arith.mulf %482, %490 : vector<8x128xf32>
    %499 = arith.addf %497, %498 : vector<8x128xf32>
    %500 = math.tanh %499 : vector<8x128xf32>
    %501 = arith.mulf %496, %500 : vector<8x128xf32>
    %c1_245 = arith.constant 1 : index
    %c0_246 = arith.constant 0 : index
    %c0_247 = arith.constant 0 : index
    %502 = vector.load %arg10[%c1_245, %c0_246, %c0_247] : memref<2x8x128xf32, #tpu.memory_space<vmem>>, vector<1x8x128xf32>
    %503 = vector.shape_cast %502 : vector<1x8x128xf32> to vector<8x128xf32>
    %504 = vector.shape_cast %499 : vector<8x128xf32> to vector<1x8x128xf32>
    tpu.vector_store %arg10[%c1_245, %c0_246, %c0_247], %504 {strides = array<i32>} : memref<2x8x128xf32, #tpu.memory_space<vmem>>, vector<1x8x128xf32>,
    %c1_248 = arith.constant 1 : index
    %c0_249 = arith.constant 0 : index
    %c0_250 = arith.constant 0 : index
    %505 = vector.load %arg9[%c1_248, %c0_249, %c0_250] : memref<2x8x128xf32, #tpu.memory_space<vmem>>, vector<1x8x128xf32>
    %506 = vector.shape_cast %505 : vector<1x8x128xf32> to vector<8x128xf32>
    %507 = vector.shape_cast %501 : vector<8x128xf32> to vector<1x8x128xf32>
    tpu.vector_store %arg9[%c1_248, %c0_249, %c0_250], %507 {strides = array<i32>} : memref<2x8x128xf32, #tpu.memory_space<vmem>>, vector<1x8x128xf32>,
    %508 = arith.index_cast %c2_i32_232 : i32 to index
    %c0_251 = arith.constant 0 : index
    %c0_252 = arith.constant 0 : index
    %509 = vector.load %arg12[%508, %c0_251, %c0_252] : memref<8x8x128xf32, #tpu.memory_space<vmem>>, vector<1x8x128xf32>
    %510 = vector.shape_cast %509 : vector<1x8x128xf32> to vector<8x128xf32>
    %511 = vector.shape_cast %501 : vector<8x128xf32> to vector<1x8x128xf32>
    tpu.vector_store %arg12[%508, %c0_251, %c0_252], %511 {strides = array<i32>} : memref<8x8x128xf32, #tpu.memory_space<vmem>>, vector<1x8x128xf32>,
    %c3_i32_253 = arith.constant 3 : i32
    %c1_254 = arith.constant 1 : index
    %c0_255 = arith.constant 0 : index
    %c0_256 = arith.constant 0 : index
    %512 = vector.load %arg9[%c1_254, %c0_255, %c0_256] : memref<2x8x128xf32, #tpu.memory_space<vmem>>, vector<1x8x128xf32>
    %513 = vector.shape_cast %512 : vector<1x8x128xf32> to vector<8x128xf32>
    %c1_257 = arith.constant 1 : index
    %c0_258 = arith.constant 0 : index
    %c0_259 = arith.constant 0 : index
    %514 = vector.load %arg10[%c1_257, %c0_258, %c0_259] : memref<2x8x128xf32, #tpu.memory_space<vmem>>, vector<1x8x128xf32>
    %515 = vector.shape_cast %514 : vector<1x8x128xf32> to vector<8x128xf32>
    %516 = arith.index_cast %c3_i32_253 : i32 to index
    %c0_260 = arith.constant 0 : index
    %c0_261 = arith.constant 0 : index
    %517 = vector.load %arg11[%516, %c0_260, %c0_261] : memref<8x8x512xf32, #tpu.memory_space<vmem>>, vector<1x8x512xf32>
    %518 = vector.shape_cast %517 : vector<1x8x512xf32> to vector<8x512xf32>
    %cst_262 = arith.constant dense<0.000000e+00> : vector<8x512xf32>
    %519 = tpu.matmul %513, %379, %cst_262 {dimension_numbers = #tpu.dot_dimension_numbers<[1], [0], [0], [1], [0, 0, 1, 1], [], []>} : vector<8x128xf32>, vector<128x512xf32>, vector<8x512xf32> -> vector<8x512xf32>
    %520 = arith.addf %518, %519 : vector<8x512xf32>
    %521 = vector.extract_strided_slice %520 {offsets = [0, 0], sizes = [8, 128], strides = [1, 1]} : vector<8x512xf32> to vector<8x128xf32>
    %522 = arith.negf %521 : vector<8x128xf32>
    %523 = math.exp %522 : vector<8x128xf32>
    %cst_263 = arith.constant 1.000000e+00 : f32
    %524 = vector.broadcast %cst_263 : f32 to vector<8x128xf32>
    %525 = arith.addf %524, %523 : vector<8x128xf32>
    %526 = arith.divf %524, %525 : vector<8x128xf32>
    %527 = vector.extract_strided_slice %520 {offsets = [0, 128], sizes = [8, 128], strides = [1, 1]} : vector<8x512xf32> to vector<8x128xf32>
    %528 = arith.negf %527 : vector<8x128xf32>
    %529 = math.exp %528 : vector<8x128xf32>
    %cst_264 = arith.constant 1.000000e+00 : f32
    %530 = vector.broadcast %cst_264 : f32 to vector<8x128xf32>
    %531 = arith.addf %530, %529 : vector<8x128xf32>
    %532 = arith.divf %530, %531 : vector<8x128xf32>
    %533 = vector.extract_strided_slice %520 {offsets = [0, 256], sizes = [8, 128], strides = [1, 1]} : vector<8x512xf32> to vector<8x128xf32>
    %534 = math.tanh %533 : vector<8x128xf32>
    %535 = vector.extract_strided_slice %520 {offsets = [0, 384], sizes = [8, 128], strides = [1, 1]} : vector<8x512xf32> to vector<8x128xf32>
    %536 = arith.negf %535 : vector<8x128xf32>
    %537 = math.exp %536 : vector<8x128xf32>
    %cst_265 = arith.constant 1.000000e+00 : f32
    %538 = vector.broadcast %cst_265 : f32 to vector<8x128xf32>
    %539 = arith.addf %538, %537 : vector<8x128xf32>
    %540 = arith.divf %538, %539 : vector<8x128xf32>
    %541 = arith.mulf %532, %515 : vector<8x128xf32>
    %542 = arith.mulf %526, %534 : vector<8x128xf32>
    %543 = arith.addf %541, %542 : vector<8x128xf32>
    %544 = math.tanh %543 : vector<8x128xf32>
    %545 = arith.mulf %540, %544 : vector<8x128xf32>
    %c1_266 = arith.constant 1 : index
    %c0_267 = arith.constant 0 : index
    %c0_268 = arith.constant 0 : index
    %546 = vector.load %arg10[%c1_266, %c0_267, %c0_268] : memref<2x8x128xf32, #tpu.memory_space<vmem>>, vector<1x8x128xf32>
    %547 = vector.shape_cast %546 : vector<1x8x128xf32> to vector<8x128xf32>
    %548 = vector.shape_cast %543 : vector<8x128xf32> to vector<1x8x128xf32>
    tpu.vector_store %arg10[%c1_266, %c0_267, %c0_268], %548 {strides = array<i32>} : memref<2x8x128xf32, #tpu.memory_space<vmem>>, vector<1x8x128xf32>,
    %c1_269 = arith.constant 1 : index
    %c0_270 = arith.constant 0 : index
    %c0_271 = arith.constant 0 : index
    %549 = vector.load %arg9[%c1_269, %c0_270, %c0_271] : memref<2x8x128xf32, #tpu.memory_space<vmem>>, vector<1x8x128xf32>
    %550 = vector.shape_cast %549 : vector<1x8x128xf32> to vector<8x128xf32>
    %551 = vector.shape_cast %545 : vector<8x128xf32> to vector<1x8x128xf32>
    tpu.vector_store %arg9[%c1_269, %c0_270, %c0_271], %551 {strides = array<i32>} : memref<2x8x128xf32, #tpu.memory_space<vmem>>, vector<1x8x128xf32>,
    %552 = arith.index_cast %c3_i32_253 : i32 to index
    %c0_272 = arith.constant 0 : index
    %c0_273 = arith.constant 0 : index
    %553 = vector.load %arg12[%552, %c0_272, %c0_273] : memref<8x8x128xf32, #tpu.memory_space<vmem>>, vector<1x8x128xf32>
    %554 = vector.shape_cast %553 : vector<1x8x128xf32> to vector<8x128xf32>
    %555 = vector.shape_cast %545 : vector<8x128xf32> to vector<1x8x128xf32>
    tpu.vector_store %arg12[%552, %c0_272, %c0_273], %555 {strides = array<i32>} : memref<8x8x128xf32, #tpu.memory_space<vmem>>, vector<1x8x128xf32>,
    %c4_i32_274 = arith.constant 4 : i32
    %c1_275 = arith.constant 1 : index
    %c0_276 = arith.constant 0 : index
    %c0_277 = arith.constant 0 : index
    %556 = vector.load %arg9[%c1_275, %c0_276, %c0_277] : memref<2x8x128xf32, #tpu.memory_space<vmem>>, vector<1x8x128xf32>
    %557 = vector.shape_cast %556 : vector<1x8x128xf32> to vector<8x128xf32>
    %c1_278 = arith.constant 1 : index
    %c0_279 = arith.constant 0 : index
    %c0_280 = arith.constant 0 : index
    %558 = vector.load %arg10[%c1_278, %c0_279, %c0_280] : memref<2x8x128xf32, #tpu.memory_space<vmem>>, vector<1x8x128xf32>
    %559 = vector.shape_cast %558 : vector<1x8x128xf32> to vector<8x128xf32>
    %560 = arith.index_cast %c4_i32_274 : i32 to index
    %c0_281 = arith.constant 0 : index
    %c0_282 = arith.constant 0 : index
    %561 = vector.load %arg11[%560, %c0_281, %c0_282] : memref<8x8x512xf32, #tpu.memory_space<vmem>>, vector<1x8x512xf32>
    %562 = vector.shape_cast %561 : vector<1x8x512xf32> to vector<8x512xf32>
    %cst_283 = arith.constant dense<0.000000e+00> : vector<8x512xf32>
    %563 = tpu.matmul %557, %379, %cst_283 {dimension_numbers = #tpu.dot_dimension_numbers<[1], [0], [0], [1], [0, 0, 1, 1], [], []>} : vector<8x128xf32>, vector<128x512xf32>, vector<8x512xf32> -> vector<8x512xf32>
    %564 = arith.addf %562, %563 : vector<8x512xf32>
    %565 = vector.extract_strided_slice %564 {offsets = [0, 0], sizes = [8, 128], strides = [1, 1]} : vector<8x512xf32> to vector<8x128xf32>
    %566 = arith.negf %565 : vector<8x128xf32>
    %567 = math.exp %566 : vector<8x128xf32>
    %cst_284 = arith.constant 1.000000e+00 : f32
    %568 = vector.broadcast %cst_284 : f32 to vector<8x128xf32>
    %569 = arith.addf %568, %567 : vector<8x128xf32>
    %570 = arith.divf %568, %569 : vector<8x128xf32>
    %571 = vector.extract_strided_slice %564 {offsets = [0, 128], sizes = [8, 128], strides = [1, 1]} : vector<8x512xf32> to vector<8x128xf32>
    %572 = arith.negf %571 : vector<8x128xf32>
    %573 = math.exp %572 : vector<8x128xf32>
    %cst_285 = arith.constant 1.000000e+00 : f32
    %574 = vector.broadcast %cst_285 : f32 to vector<8x128xf32>
    %575 = arith.addf %574, %573 : vector<8x128xf32>
    %576 = arith.divf %574, %575 : vector<8x128xf32>
    %577 = vector.extract_strided_slice %564 {offsets = [0, 256], sizes = [8, 128], strides = [1, 1]} : vector<8x512xf32> to vector<8x128xf32>
    %578 = math.tanh %577 : vector<8x128xf32>
    %579 = vector.extract_strided_slice %564 {offsets = [0, 384], sizes = [8, 128], strides = [1, 1]} : vector<8x512xf32> to vector<8x128xf32>
    %580 = arith.negf %579 : vector<8x128xf32>
    %581 = math.exp %580 : vector<8x128xf32>
    %cst_286 = arith.constant 1.000000e+00 : f32
    %582 = vector.broadcast %cst_286 : f32 to vector<8x128xf32>
    %583 = arith.addf %582, %581 : vector<8x128xf32>
    %584 = arith.divf %582, %583 : vector<8x128xf32>
    %585 = arith.mulf %576, %559 : vector<8x128xf32>
    %586 = arith.mulf %570, %578 : vector<8x128xf32>
    %587 = arith.addf %585, %586 : vector<8x128xf32>
    %588 = math.tanh %587 : vector<8x128xf32>
    %589 = arith.mulf %584, %588 : vector<8x128xf32>
    %c1_287 = arith.constant 1 : index
    %c0_288 = arith.constant 0 : index
    %c0_289 = arith.constant 0 : index
    %590 = vector.load %arg10[%c1_287, %c0_288, %c0_289] : memref<2x8x128xf32, #tpu.memory_space<vmem>>, vector<1x8x128xf32>
    %591 = vector.shape_cast %590 : vector<1x8x128xf32> to vector<8x128xf32>
    %592 = vector.shape_cast %587 : vector<8x128xf32> to vector<1x8x128xf32>
    tpu.vector_store %arg10[%c1_287, %c0_288, %c0_289], %592 {strides = array<i32>} : memref<2x8x128xf32, #tpu.memory_space<vmem>>, vector<1x8x128xf32>,
    %c1_290 = arith.constant 1 : index
    %c0_291 = arith.constant 0 : index
    %c0_292 = arith.constant 0 : index
    %593 = vector.load %arg9[%c1_290, %c0_291, %c0_292] : memref<2x8x128xf32, #tpu.memory_space<vmem>>, vector<1x8x128xf32>
    %594 = vector.shape_cast %593 : vector<1x8x128xf32> to vector<8x128xf32>
    %595 = vector.shape_cast %589 : vector<8x128xf32> to vector<1x8x128xf32>
    tpu.vector_store %arg9[%c1_290, %c0_291, %c0_292], %595 {strides = array<i32>} : memref<2x8x128xf32, #tpu.memory_space<vmem>>, vector<1x8x128xf32>,
    %596 = arith.index_cast %c4_i32_274 : i32 to index
    %c0_293 = arith.constant 0 : index
    %c0_294 = arith.constant 0 : index
    %597 = vector.load %arg12[%596, %c0_293, %c0_294] : memref<8x8x128xf32, #tpu.memory_space<vmem>>, vector<1x8x128xf32>
    %598 = vector.shape_cast %597 : vector<1x8x128xf32> to vector<8x128xf32>
    %599 = vector.shape_cast %589 : vector<8x128xf32> to vector<1x8x128xf32>
    tpu.vector_store %arg12[%596, %c0_293, %c0_294], %599 {strides = array<i32>} : memref<8x8x128xf32, #tpu.memory_space<vmem>>, vector<1x8x128xf32>,
    %c5_i32_295 = arith.constant 5 : i32
    %c1_296 = arith.constant 1 : index
    %c0_297 = arith.constant 0 : index
    %c0_298 = arith.constant 0 : index
    %600 = vector.load %arg9[%c1_296, %c0_297, %c0_298] : memref<2x8x128xf32, #tpu.memory_space<vmem>>, vector<1x8x128xf32>
    %601 = vector.shape_cast %600 : vector<1x8x128xf32> to vector<8x128xf32>
    %c1_299 = arith.constant 1 : index
    %c0_300 = arith.constant 0 : index
    %c0_301 = arith.constant 0 : index
    %602 = vector.load %arg10[%c1_299, %c0_300, %c0_301] : memref<2x8x128xf32, #tpu.memory_space<vmem>>, vector<1x8x128xf32>
    %603 = vector.shape_cast %602 : vector<1x8x128xf32> to vector<8x128xf32>
    %604 = arith.index_cast %c5_i32_295 : i32 to index
    %c0_302 = arith.constant 0 : index
    %c0_303 = arith.constant 0 : index
    %605 = vector.load %arg11[%604, %c0_302, %c0_303] : memref<8x8x512xf32, #tpu.memory_space<vmem>>, vector<1x8x512xf32>
    %606 = vector.shape_cast %605 : vector<1x8x512xf32> to vector<8x512xf32>
    %cst_304 = arith.constant dense<0.000000e+00> : vector<8x512xf32>
    %607 = tpu.matmul %601, %379, %cst_304 {dimension_numbers = #tpu.dot_dimension_numbers<[1], [0], [0], [1], [0, 0, 1, 1], [], []>} : vector<8x128xf32>, vector<128x512xf32>, vector<8x512xf32> -> vector<8x512xf32>
    %608 = arith.addf %606, %607 : vector<8x512xf32>
    %609 = vector.extract_strided_slice %608 {offsets = [0, 0], sizes = [8, 128], strides = [1, 1]} : vector<8x512xf32> to vector<8x128xf32>
    %610 = arith.negf %609 : vector<8x128xf32>
    %611 = math.exp %610 : vector<8x128xf32>
    %cst_305 = arith.constant 1.000000e+00 : f32
    %612 = vector.broadcast %cst_305 : f32 to vector<8x128xf32>
    %613 = arith.addf %612, %611 : vector<8x128xf32>
    %614 = arith.divf %612, %613 : vector<8x128xf32>
    %615 = vector.extract_strided_slice %608 {offsets = [0, 128], sizes = [8, 128], strides = [1, 1]} : vector<8x512xf32> to vector<8x128xf32>
    %616 = arith.negf %615 : vector<8x128xf32>
    %617 = math.exp %616 : vector<8x128xf32>
    %cst_306 = arith.constant 1.000000e+00 : f32
    %618 = vector.broadcast %cst_306 : f32 to vector<8x128xf32>
    %619 = arith.addf %618, %617 : vector<8x128xf32>
    %620 = arith.divf %618, %619 : vector<8x128xf32>
    %621 = vector.extract_strided_slice %608 {offsets = [0, 256], sizes = [8, 128], strides = [1, 1]} : vector<8x512xf32> to vector<8x128xf32>
    %622 = math.tanh %621 : vector<8x128xf32>
    %623 = vector.extract_strided_slice %608 {offsets = [0, 384], sizes = [8, 128], strides = [1, 1]} : vector<8x512xf32> to vector<8x128xf32>
    %624 = arith.negf %623 : vector<8x128xf32>
    %625 = math.exp %624 : vector<8x128xf32>
    %cst_307 = arith.constant 1.000000e+00 : f32
    %626 = vector.broadcast %cst_307 : f32 to vector<8x128xf32>
    %627 = arith.addf %626, %625 : vector<8x128xf32>
    %628 = arith.divf %626, %627 : vector<8x128xf32>
    %629 = arith.mulf %620, %603 : vector<8x128xf32>
    %630 = arith.mulf %614, %622 : vector<8x128xf32>
    %631 = arith.addf %629, %630 : vector<8x128xf32>
    %632 = math.tanh %631 : vector<8x128xf32>
    %633 = arith.mulf %628, %632 : vector<8x128xf32>
    %c1_308 = arith.constant 1 : index
    %c0_309 = arith.constant 0 : index
    %c0_310 = arith.constant 0 : index
    %634 = vector.load %arg10[%c1_308, %c0_309, %c0_310] : memref<2x8x128xf32, #tpu.memory_space<vmem>>, vector<1x8x128xf32>
    %635 = vector.shape_cast %634 : vector<1x8x128xf32> to vector<8x128xf32>
    %636 = vector.shape_cast %631 : vector<8x128xf32> to vector<1x8x128xf32>
    tpu.vector_store %arg10[%c1_308, %c0_309, %c0_310], %636 {strides = array<i32>} : memref<2x8x128xf32, #tpu.memory_space<vmem>>, vector<1x8x128xf32>,
    %c1_311 = arith.constant 1 : index
    %c0_312 = arith.constant 0 : index
    %c0_313 = arith.constant 0 : index
    %637 = vector.load %arg9[%c1_311, %c0_312, %c0_313] : memref<2x8x128xf32, #tpu.memory_space<vmem>>, vector<1x8x128xf32>
    %638 = vector.shape_cast %637 : vector<1x8x128xf32> to vector<8x128xf32>
    %639 = vector.shape_cast %633 : vector<8x128xf32> to vector<1x8x128xf32>
    tpu.vector_store %arg9[%c1_311, %c0_312, %c0_313], %639 {strides = array<i32>} : memref<2x8x128xf32, #tpu.memory_space<vmem>>, vector<1x8x128xf32>,
    %640 = arith.index_cast %c5_i32_295 : i32 to index
    %c0_314 = arith.constant 0 : index
    %c0_315 = arith.constant 0 : index
    %641 = vector.load %arg12[%640, %c0_314, %c0_315] : memref<8x8x128xf32, #tpu.memory_space<vmem>>, vector<1x8x128xf32>
    %642 = vector.shape_cast %641 : vector<1x8x128xf32> to vector<8x128xf32>
    %643 = vector.shape_cast %633 : vector<8x128xf32> to vector<1x8x128xf32>
    tpu.vector_store %arg12[%640, %c0_314, %c0_315], %643 {strides = array<i32>} : memref<8x8x128xf32, #tpu.memory_space<vmem>>, vector<1x8x128xf32>,
    %c6_i32_316 = arith.constant 6 : i32
    %c1_317 = arith.constant 1 : index
    %c0_318 = arith.constant 0 : index
    %c0_319 = arith.constant 0 : index
    %644 = vector.load %arg9[%c1_317, %c0_318, %c0_319] : memref<2x8x128xf32, #tpu.memory_space<vmem>>, vector<1x8x128xf32>
    %645 = vector.shape_cast %644 : vector<1x8x128xf32> to vector<8x128xf32>
    %c1_320 = arith.constant 1 : index
    %c0_321 = arith.constant 0 : index
    %c0_322 = arith.constant 0 : index
    %646 = vector.load %arg10[%c1_320, %c0_321, %c0_322] : memref<2x8x128xf32, #tpu.memory_space<vmem>>, vector<1x8x128xf32>
    %647 = vector.shape_cast %646 : vector<1x8x128xf32> to vector<8x128xf32>
    %648 = arith.index_cast %c6_i32_316 : i32 to index
    %c0_323 = arith.constant 0 : index
    %c0_324 = arith.constant 0 : index
    %649 = vector.load %arg11[%648, %c0_323, %c0_324] : memref<8x8x512xf32, #tpu.memory_space<vmem>>, vector<1x8x512xf32>
    %650 = vector.shape_cast %649 : vector<1x8x512xf32> to vector<8x512xf32>
    %cst_325 = arith.constant dense<0.000000e+00> : vector<8x512xf32>
    %651 = tpu.matmul %645, %379, %cst_325 {dimension_numbers = #tpu.dot_dimension_numbers<[1], [0], [0], [1], [0, 0, 1, 1], [], []>} : vector<8x128xf32>, vector<128x512xf32>, vector<8x512xf32> -> vector<8x512xf32>
    %652 = arith.addf %650, %651 : vector<8x512xf32>
    %653 = vector.extract_strided_slice %652 {offsets = [0, 0], sizes = [8, 128], strides = [1, 1]} : vector<8x512xf32> to vector<8x128xf32>
    %654 = arith.negf %653 : vector<8x128xf32>
    %655 = math.exp %654 : vector<8x128xf32>
    %cst_326 = arith.constant 1.000000e+00 : f32
    %656 = vector.broadcast %cst_326 : f32 to vector<8x128xf32>
    %657 = arith.addf %656, %655 : vector<8x128xf32>
    %658 = arith.divf %656, %657 : vector<8x128xf32>
    %659 = vector.extract_strided_slice %652 {offsets = [0, 128], sizes = [8, 128], strides = [1, 1]} : vector<8x512xf32> to vector<8x128xf32>
    %660 = arith.negf %659 : vector<8x128xf32>
    %661 = math.exp %660 : vector<8x128xf32>
    %cst_327 = arith.constant 1.000000e+00 : f32
    %662 = vector.broadcast %cst_327 : f32 to vector<8x128xf32>
    %663 = arith.addf %662, %661 : vector<8x128xf32>
    %664 = arith.divf %662, %663 : vector<8x128xf32>
    %665 = vector.extract_strided_slice %652 {offsets = [0, 256], sizes = [8, 128], strides = [1, 1]} : vector<8x512xf32> to vector<8x128xf32>
    %666 = math.tanh %665 : vector<8x128xf32>
    %667 = vector.extract_strided_slice %652 {offsets = [0, 384], sizes = [8, 128], strides = [1, 1]} : vector<8x512xf32> to vector<8x128xf32>
    %668 = arith.negf %667 : vector<8x128xf32>
    %669 = math.exp %668 : vector<8x128xf32>
    %cst_328 = arith.constant 1.000000e+00 : f32
    %670 = vector.broadcast %cst_328 : f32 to vector<8x128xf32>
    %671 = arith.addf %670, %669 : vector<8x128xf32>
    %672 = arith.divf %670, %671 : vector<8x128xf32>
    %673 = arith.mulf %664, %647 : vector<8x128xf32>
    %674 = arith.mulf %658, %666 : vector<8x128xf32>
    %675 = arith.addf %673, %674 : vector<8x128xf32>
    %676 = math.tanh %675 : vector<8x128xf32>
    %677 = arith.mulf %672, %676 : vector<8x128xf32>
    %c1_329 = arith.constant 1 : index
    %c0_330 = arith.constant 0 : index
    %c0_331 = arith.constant 0 : index
    %678 = vector.load %arg10[%c1_329, %c0_330, %c0_331] : memref<2x8x128xf32, #tpu.memory_space<vmem>>, vector<1x8x128xf32>
    %679 = vector.shape_cast %678 : vector<1x8x128xf32> to vector<8x128xf32>
    %680 = vector.shape_cast %675 : vector<8x128xf32> to vector<1x8x128xf32>
    tpu.vector_store %arg10[%c1_329, %c0_330, %c0_331], %680 {strides = array<i32>} : memref<2x8x128xf32, #tpu.memory_space<vmem>>, vector<1x8x128xf32>,
    %c1_332 = arith.constant 1 : index
    %c0_333 = arith.constant 0 : index
    %c0_334 = arith.constant 0 : index
    %681 = vector.load %arg9[%c1_332, %c0_333, %c0_334] : memref<2x8x128xf32, #tpu.memory_space<vmem>>, vector<1x8x128xf32>
    %682 = vector.shape_cast %681 : vector<1x8x128xf32> to vector<8x128xf32>
    %683 = vector.shape_cast %677 : vector<8x128xf32> to vector<1x8x128xf32>
    tpu.vector_store %arg9[%c1_332, %c0_333, %c0_334], %683 {strides = array<i32>} : memref<2x8x128xf32, #tpu.memory_space<vmem>>, vector<1x8x128xf32>,
    %684 = arith.index_cast %c6_i32_316 : i32 to index
    %c0_335 = arith.constant 0 : index
    %c0_336 = arith.constant 0 : index
    %685 = vector.load %arg12[%684, %c0_335, %c0_336] : memref<8x8x128xf32, #tpu.memory_space<vmem>>, vector<1x8x128xf32>
    %686 = vector.shape_cast %685 : vector<1x8x128xf32> to vector<8x128xf32>
    %687 = vector.shape_cast %677 : vector<8x128xf32> to vector<1x8x128xf32>
    tpu.vector_store %arg12[%684, %c0_335, %c0_336], %687 {strides = array<i32>} : memref<8x8x128xf32, #tpu.memory_space<vmem>>, vector<1x8x128xf32>,
    %c7_i32_337 = arith.constant 7 : i32
    %c1_338 = arith.constant 1 : index
    %c0_339 = arith.constant 0 : index
    %c0_340 = arith.constant 0 : index
    %688 = vector.load %arg9[%c1_338, %c0_339, %c0_340] : memref<2x8x128xf32, #tpu.memory_space<vmem>>, vector<1x8x128xf32>
    %689 = vector.shape_cast %688 : vector<1x8x128xf32> to vector<8x128xf32>
    %c1_341 = arith.constant 1 : index
    %c0_342 = arith.constant 0 : index
    %c0_343 = arith.constant 0 : index
    %690 = vector.load %arg10[%c1_341, %c0_342, %c0_343] : memref<2x8x128xf32, #tpu.memory_space<vmem>>, vector<1x8x128xf32>
    %691 = vector.shape_cast %690 : vector<1x8x128xf32> to vector<8x128xf32>
    %692 = arith.index_cast %c7_i32_337 : i32 to index
    %c0_344 = arith.constant 0 : index
    %c0_345 = arith.constant 0 : index
    %693 = vector.load %arg11[%692, %c0_344, %c0_345] : memref<8x8x512xf32, #tpu.memory_space<vmem>>, vector<1x8x512xf32>
    %694 = vector.shape_cast %693 : vector<1x8x512xf32> to vector<8x512xf32>
    %cst_346 = arith.constant dense<0.000000e+00> : vector<8x512xf32>
    %695 = tpu.matmul %689, %379, %cst_346 {dimension_numbers = #tpu.dot_dimension_numbers<[1], [0], [0], [1], [0, 0, 1, 1], [], []>} : vector<8x128xf32>, vector<128x512xf32>, vector<8x512xf32> -> vector<8x512xf32>
    %696 = arith.addf %694, %695 : vector<8x512xf32>
    %697 = vector.extract_strided_slice %696 {offsets = [0, 0], sizes = [8, 128], strides = [1, 1]} : vector<8x512xf32> to vector<8x128xf32>
    %698 = arith.negf %697 : vector<8x128xf32>
    %699 = math.exp %698 : vector<8x128xf32>
    %cst_347 = arith.constant 1.000000e+00 : f32
    %700 = vector.broadcast %cst_347 : f32 to vector<8x128xf32>
    %701 = arith.addf %700, %699 : vector<8x128xf32>
    %702 = arith.divf %700, %701 : vector<8x128xf32>
    %703 = vector.extract_strided_slice %696 {offsets = [0, 128], sizes = [8, 128], strides = [1, 1]} : vector<8x512xf32> to vector<8x128xf32>
    %704 = arith.negf %703 : vector<8x128xf32>
    %705 = math.exp %704 : vector<8x128xf32>
    %cst_348 = arith.constant 1.000000e+00 : f32
    %706 = vector.broadcast %cst_348 : f32 to vector<8x128xf32>
    %707 = arith.addf %706, %705 : vector<8x128xf32>
    %708 = arith.divf %706, %707 : vector<8x128xf32>
    %709 = vector.extract_strided_slice %696 {offsets = [0, 256], sizes = [8, 128], strides = [1, 1]} : vector<8x512xf32> to vector<8x128xf32>
    %710 = math.tanh %709 : vector<8x128xf32>
    %711 = vector.extract_strided_slice %696 {offsets = [0, 384], sizes = [8, 128], strides = [1, 1]} : vector<8x512xf32> to vector<8x128xf32>
    %712 = arith.negf %711 : vector<8x128xf32>
    %713 = math.exp %712 : vector<8x128xf32>
    %cst_349 = arith.constant 1.000000e+00 : f32
    %714 = vector.broadcast %cst_349 : f32 to vector<8x128xf32>
    %715 = arith.addf %714, %713 : vector<8x128xf32>
    %716 = arith.divf %714, %715 : vector<8x128xf32>
    %717 = arith.mulf %708, %691 : vector<8x128xf32>
    %718 = arith.mulf %702, %710 : vector<8x128xf32>
    %719 = arith.addf %717, %718 : vector<8x128xf32>
    %720 = math.tanh %719 : vector<8x128xf32>
    %721 = arith.mulf %716, %720 : vector<8x128xf32>
    %c1_350 = arith.constant 1 : index
    %c0_351 = arith.constant 0 : index
    %c0_352 = arith.constant 0 : index
    %722 = vector.load %arg10[%c1_350, %c0_351, %c0_352] : memref<2x8x128xf32, #tpu.memory_space<vmem>>, vector<1x8x128xf32>
    %723 = vector.shape_cast %722 : vector<1x8x128xf32> to vector<8x128xf32>
    %724 = vector.shape_cast %719 : vector<8x128xf32> to vector<1x8x128xf32>
    tpu.vector_store %arg10[%c1_350, %c0_351, %c0_352], %724 {strides = array<i32>} : memref<2x8x128xf32, #tpu.memory_space<vmem>>, vector<1x8x128xf32>,
    %c1_353 = arith.constant 1 : index
    %c0_354 = arith.constant 0 : index
    %c0_355 = arith.constant 0 : index
    %725 = vector.load %arg9[%c1_353, %c0_354, %c0_355] : memref<2x8x128xf32, #tpu.memory_space<vmem>>, vector<1x8x128xf32>
    %726 = vector.shape_cast %725 : vector<1x8x128xf32> to vector<8x128xf32>
    %727 = vector.shape_cast %721 : vector<8x128xf32> to vector<1x8x128xf32>
    tpu.vector_store %arg9[%c1_353, %c0_354, %c0_355], %727 {strides = array<i32>} : memref<2x8x128xf32, #tpu.memory_space<vmem>>, vector<1x8x128xf32>,
    %728 = arith.index_cast %c7_i32_337 : i32 to index
    %c0_356 = arith.constant 0 : index
    %c0_357 = arith.constant 0 : index
    %729 = vector.load %arg12[%728, %c0_356, %c0_357] : memref<8x8x128xf32, #tpu.memory_space<vmem>>, vector<1x8x128xf32>
    %730 = vector.shape_cast %729 : vector<1x8x128xf32> to vector<8x128xf32>
    %731 = vector.shape_cast %721 : vector<8x128xf32> to vector<1x8x128xf32>
    tpu.vector_store %arg12[%728, %c0_356, %c0_357], %731 {strides = array<i32>} : memref<8x8x128xf32, #tpu.memory_space<vmem>>, vector<1x8x128xf32>,
    %c8_i32_358 = arith.constant 8 : i32
    %c0_i32_359 = arith.constant 0 : i32
    %732 = arith.cmpi eq, %arg0, %c0_i32_359 : i32
    %733 = arith.extui %732 : i1 to i32
    %c0_i32_360 = arith.constant 0 : i32
    %734 = arith.cmpi ne, %733, %c0_i32_360 : i32
    scf.if %734 {
      %c1_361 = arith.constant 1 : index
      %c0_362 = arith.constant 0 : index
      %c0_363 = arith.constant 0 : index
      %735 = vector.load %arg9[%c1_361, %c0_362, %c0_363] : memref<2x8x128xf32, #tpu.memory_space<vmem>>, vector<1x8x128xf32>
      %736 = vector.shape_cast %735 : vector<1x8x128xf32> to vector<8x128xf32>
      %c0_364 = arith.constant 0 : index
      %c0_365 = arith.constant 0 : index
      %737 = vector.load %arg6[%c0_364, %c0_365] : memref<128x128xf32, #tpu.memory_space<vmem>>, vector<128x128xf32>
      %cst_366 = arith.constant dense<0.000000e+00> : vector<8x128xf32>
      %738 = tpu.matmul %736, %737, %cst_366 {dimension_numbers = #tpu.dot_dimension_numbers<[1], [0], [0], [1], [0, 0, 1, 1], [], []>} : vector<8x128xf32>, vector<128x128xf32>, vector<8x128xf32> -> vector<8x128xf32>
      %c0_367 = arith.constant 0 : index
      %c0_368 = arith.constant 0 : index
      %739 = vector.load %arg7[%c0_367, %c0_368] : memref<1x128xf32, #tpu.memory_space<vmem>>, vector<1x128xf32>
      %740 = vector.broadcast %739 : vector<1x128xf32> to vector<8x128xf32>
      %741 = arith.addf %738, %740 : vector<8x128xf32>
      %c0_369 = arith.constant 0 : index
      %c0_370 = arith.constant 0 : index
      %742 = vector.load %arg8[%c0_369, %c0_370] : memref<8x128xf32, #tpu.memory_space<vmem>>, vector<8x128xf32>
      tpu.vector_store %arg8[%c0_369, %c0_370], %741 {strides = array<i32>} : memref<8x128xf32, #tpu.memory_space<vmem>>, vector<8x128xf32>,
    } else {
    }
    return
  }
  func.func @transform_0(%arg0: i32) -> (i32, i32, i32) {
    %c0_i32 = arith.constant 0 : i32
    %c0_i32_0 = arith.constant 0 : i32
    %c0_i32_1 = arith.constant 0 : i32
    return %arg0, %c0_i32, %c0_i32_0 : i32, i32, i32
  }
  func.func @transform_1(%arg0: i32) -> (i32, i32) {
    %c0_i32 = arith.constant 0 : i32
    %c0_i32_0 = arith.constant 0 : i32
    %c0_i32_1 = arith.constant 0 : i32
    return %c0_i32, %c0_i32_0 : i32, i32
  }
  func.func @transform_2(%arg0: i32) -> (i32, i32, i32) {
    %c0_i32 = arith.constant 0 : i32
    %c0_i32_0 = arith.constant 0 : i32
    %c0_i32_1 = arith.constant 0 : i32
    %c0_i32_2 = arith.constant 0 : i32
    return %c0_i32, %c0_i32_0, %c0_i32_1 : i32, i32, i32
  }
  func.func @transform_3(%arg0: i32) -> (i32, i32, i32) {
    %c0_i32 = arith.constant 0 : i32
    %c0_i32_0 = arith.constant 0 : i32
    %c0_i32_1 = arith.constant 0 : i32
    %c0_i32_2 = arith.constant 0 : i32
    return %c0_i32, %c0_i32_0, %c0_i32_1 : i32, i32, i32
  }
  func.func @transform_4(%arg0: i32) -> (i32, i32, i32) {
    %c0_i32 = arith.constant 0 : i32
    %c0_i32_0 = arith.constant 0 : i32
    %c0_i32_1 = arith.constant 0 : i32
    %c0_i32_2 = arith.constant 0 : i32
    return %c0_i32, %c0_i32_0, %c0_i32_1 : i32, i32, i32
  }
  func.func @transform_5(%arg0: i32) -> (i32, i32) {
    %c0_i32 = arith.constant 0 : i32
    %c0_i32_0 = arith.constant 0 : i32
    %c0_i32_1 = arith.constant 0 : i32
    return %c0_i32, %c0_i32_0 : i32, i32
  }
  func.func @transform_6(%arg0: i32) -> (i32, i32) {
    %c0_i32 = arith.constant 0 : i32
    %c0_i32_0 = arith.constant 0 : i32
    %c0_i32_1 = arith.constant 0 : i32
    return %c0_i32, %c0_i32_0 : i32, i32
  }
  func.func @transform_7(%arg0: i32) -> (i32, i32) {
    %c0_i32 = arith.constant 0 : i32
    %c0_i32_0 = arith.constant 0 : i32
    %c0_i32_1 = arith.constant 0 : i32
    return %c0_i32, %c0_i32_0 : i32, i32
  }
}

</mosaic_0001>

<llo_original>
// kernel: tpu_custom_call.1
$region0: #{tpu_custom_call.1}
  #allocation0 [shape = 'u32[]', space=smem, size = 0x4, offset = 0x4, fixed_abs, tag = 'smem constant byte address 0x4 - core index']
  #allocation1 [shape = 'u32[72,128]{1,0:T(1,128)}', space=vmem, size = 0x9000, scoped, tag = 'internal scratch']
  #allocation2 [shape = 'f32[2,8,128]{2,1,0:T(8,128)}', space=vmem, size = 0x2000, scoped, tag = 'scratch operand']
  #allocation3 [shape = 'f32[2,8,128]{2,1,0:T(8,128)}', space=vmem, size = 0x2000, scoped, tag = 'scratch operand']
  #allocation4 [shape = 'f32[8,8,512]{2,1,0:T(8,128)}', space=vmem, size = 0x20000, scoped, tag = 'scratch operand']
  #allocation5 [shape = 'f32[8,8,128]{2,1,0:T(8,128)}', space=vmem, size = 0x8000, scoped, tag = 'scratch operand']
  %s0 = inlined_call_operand.hbm [shape: f32[8,8,128], index: 0, kind: input, shape index: {}]
  %s1 = inlined_call_operand.hbm [shape: f32[128,512], index: 1, kind: input, shape index: {}]
  %s2 = inlined_call_operand.hbm [shape: f32[2,128,512], index: 2, kind: input, shape index: {}]
  %s3 = inlined_call_operand.hbm [shape: f32[2,1,512], index: 3, kind: input, shape index: {}]
  %s4 = inlined_call_operand.hbm [shape: f32[1,128,512], index: 4, kind: input, shape index: {}]
  %s5 = inlined_call_operand.hbm [shape: f32[128,128], index: 5, kind: input, shape index: {}]
  %s6 = inlined_call_operand.vmem [shape: f32[1,128], index: 6, kind: input, shape index: {}]
  %s7 = inlined_call_operand.hbm [shape: f32[8,128], index: 7, kind: output, shape index: {}]
  %s8 = sld [smem:[#allocation0]]
  $region70: #{tpu_custom_call.1} parent=0
    _
  %s10 = ssub.s32 1, %s8
  %s11 = scalar_select 0, %s10, %s8
  $region1: #{tpu_custom_call.1} parent=0
    #allocation6 [shape = 'u8[32768]{0}', space=vmem, size = 0x8000, scoped, tag = 'input window, operand 0, single buffered']
    #allocation7 [shape = 's32[1]{0}', space=sflag, size = 0x4, scoped, tag = 'scoped memory for tpu_custom_call.1']
    #allocation8 [shape = 's32[1]{0}', space=sflag, size = 0x4, scoped, tag = 'scoped memory for tpu_custom_call.1']
    #allocation9 [shape = 'u8[262144]{0}', space=vmem, size = 0x40000, scoped, tag = 'input window, operand 1, single buffered']
    #allocation10 [shape = 's32[1]{0}', space=sflag, size = 0x4, scoped, tag = 'scoped memory for tpu_custom_call.1']
    #allocation11 [shape = 'u8[524288]{0}', space=vmem, size = 0x80000, scoped, tag = 'input window, operand 2, single buffered']
    #allocation12 [shape = 'u8[4096]{0}', space=vmem, size = 0x1000, scoped, tag = 'input window, operand 3, single buffered']
    #allocation13 [shape = 's32[1]{0}', space=sflag, size = 0x4, scoped, tag = 'scoped memory for tpu_custom_call.1']
    #allocation14 [shape = 'u8[262144]{0}', space=vmem, size = 0x40000, scoped, tag = 'input window, operand 4, single buffered']
    #allocation15 [shape = 'u8[65536]{0}', space=vmem, size = 0x10000, scoped, tag = 'input window, operand 5, single buffered']
    #allocation16 [shape = 's32[1]{0}', space=sflag, size = 0x4, scoped, tag = 'scoped memory for tpu_custom_call.1']
    #allocation17 [shape = 'u8[4096]{0}', space=vmem, size = 0x1000, scoped, tag = 'output window, operand 0, single buffered']
    %12 = vsyncpa [#allocation7], 0
    %13 = vsyncpa [#allocation10], 0
    %14 = vsyncpa [#allocation13], 0
    %15 = vsyncpa [#allocation16], 0
    %16 = vsyncpa [#allocation8], 0
    // Predicated region
    $region2: #{tpu_custom_call.1} parent=1 // pred_check
      _
    $region3: #{tpu_custom_call.1} parent=1 // pred_check_branch
      %18 = sbr.rel (0) target = $region5
    $region4: #{tpu_custom_call.1} parent=1 // pred_region
      %20 = vsyncadd [#allocation7], 0
      %s21 = sshll.u32 %s0, 4
      %s22 = int_to_ptr.hbm [resolvable:$true] %s21
      %s23 = sshll.u32 [#allocation6], 4
      %s24 = int_to_ptr.vmem [resolvable:$true] %s23
      %29 = dma.hbm_to_vmem [thread:$0]  %s22, 1024, %s24, [#allocation7], 128, 128, 8
    $region5: #{tpu_custom_call.1} parent=1 // pred_fallthru
      _
    // Predicated region
    $region6: #{tpu_custom_call.1} parent=1 // pred_check
      _
    $region7: #{tpu_custom_call.1} parent=1 // pred_check_branch
      %31 = sbr.rel (0) target = $region9
    $region8: #{tpu_custom_call.1} parent=1 // pred_region
      %33 = vsyncadd [#allocation10], 0
      %s34 = sshll.u32 %s1, 4
      %s35 = int_to_ptr.hbm [resolvable:$true] %s34
      %s36 = sshll.u32 [#allocation9], 4
      %s37 = int_to_ptr.vmem [resolvable:$true] %s36
      %42 = dma.hbm_to_vmem [thread:$0]  %s35, 8192, %s37, [#allocation10], 512, 512, 32
    $region9: #{tpu_custom_call.1} parent=1 // pred_fallthru
      _
    // Predicated region
    $region10: #{tpu_custom_call.1} parent=1 // pred_check
      _
    $region11: #{tpu_custom_call.1} parent=1 // pred_check_branch
      %44 = sbr.rel (0) target = $region13
    $region12: #{tpu_custom_call.1} parent=1 // pred_region
      %46 = vsyncadd [#allocation10], 0
      %s47 = sshll.u32 %s2, 4
      %s48 = int_to_ptr.hbm [resolvable:$true] %s47
      %s49 = sshll.u32 [#allocation11], 4
      %s50 = int_to_ptr.vmem [resolvable:$true] %s49
      %55 = dma.hbm_to_vmem [thread:$0]  %s48, 16384, %s50, [#allocation10], 512, 512, 32
    $region13: #{tpu_custom_call.1} parent=1 // pred_fallthru
      _
    // Predicated region
    $region14: #{tpu_custom_call.1} parent=1 // pred_check
      _
    $region15: #{tpu_custom_call.1} parent=1 // pred_check_branch
      %57 = sbr.rel (0) target = $region17
    $region16: #{tpu_custom_call.1} parent=1 // pred_region
      %59 = vsyncadd [#allocation13], 0
      %s60 = sshll.u32 %s3, 4
      %s61 = int_to_ptr.hbm [resolvable:$true] %s60
      %s62 = sshll.u32 [#allocation12], 4
      %s63 = int_to_ptr.vmem [resolvable:$true] %s62
      %68 = dma.hbm_to_vmem [thread:$0]  %s61, 128, %s63, [#allocation13], 64, 64, 4
    $region17: #{tpu_custom_call.1} parent=1 // pred_fallthru
      _
    // Predicated region
    $region18: #{tpu_custom_call.1} parent=1 // pred_check
      _
    $region19: #{tpu_custom_call.1} parent=1 // pred_check_branch
      %70 = sbr.rel (0) target = $region21
    $region20: #{tpu_custom_call.1} parent=1 // pred_region
      %72 = vsyncadd [#allocation13], 0
      %s73 = sshll.u32 %s4, 4
      %s74 = int_to_ptr.hbm [resolvable:$true] %s73
      %s75 = sshll.u32 [#allocation14], 4
      %s76 = int_to_ptr.vmem [resolvable:$true] %s75
      %81 = dma.hbm_to_vmem [thread:$0]  %s74, 8192, %s76, [#allocation13], 512, 512, 32
    $region21: #{tpu_custom_call.1} parent=1 // pred_fallthru
      _
    // Predicated region
    $region22: #{tpu_custom_call.1} parent=1 // pred_check
      _
    $region23: #{tpu_custom_call.1} parent=1 // pred_check_branch
      %83 = sbr.rel (0) target = $region25
    $region24: #{tpu_custom_call.1} parent=1 // pred_region
      %85 = vsyncadd [#allocation16], 0
      %s86 = sshll.u32 %s5, 4
      %s87 = int_to_ptr.hbm [resolvable:$true] %s86
      %s88 = sshll.u32 [#allocation15], 4
      %s89 = int_to_ptr.vmem [resolvable:$true] %s88
      %94 = dma.hbm_to_vmem [thread:$0]  %s87, 2048, %s89, [#allocation16], 128, 128, 8
    $region25: #{tpu_custom_call.1} parent=1 // pred_fallthru
      _
    // Predicated region
    $region26: #{tpu_custom_call.1} parent=1 // pred_check
      _
    $region27: #{tpu_custom_call.1} parent=1 // pred_check_branch
      %96 = sbr.rel (0) target = $region29
    $region28: #{tpu_custom_call.1} parent=1 // pred_region
      _
    $region29: #{tpu_custom_call.1} parent=1 // pred_fallthru
      _
    // Predicated region
    $region30: #{tpu_custom_call.1} parent=1 // pred_check
      _
    $region31: #{tpu_custom_call.1} parent=1 // pred_check_branch
      %98 = sbr.rel (0) target = $region33
    $region32: #{tpu_custom_call.1} parent=1 // pred_region
      %100 = dma.done [#allocation7], 1024
    $region33: #{tpu_custom_call.1} parent=1 // pred_fallthru
      _
    // Predicated region
    $region34: #{tpu_custom_call.1} parent=1 // pred_check
      _
    $region35: #{tpu_custom_call.1} parent=1 // pred_check_branch
      %102 = sbr.rel (0) target = $region37
    $region36: #{tpu_custom_call.1} parent=1 // pred_region
      %104 = dma.done [#allocation10], 8192
    $region37: #{tpu_custom_call.1} parent=1 // pred_fallthru
      _
    // Predicated region
    $region38: #{tpu_custom_call.1} parent=1 // pred_check
      _
    $region39: #{tpu_custom_call.1} parent=1 // pred_check_branch
      %106 = sbr.rel (0) target = $region41
    $region40: #{tpu_custom_call.1} parent=1 // pred_region
      %108 = dma.done [#allocation10], 16384
    $region41: #{tpu_custom_call.1} parent=1 // pred_fallthru
      _
    // Predicated region
    $region42: #{tpu_custom_call.1} parent=1 // pred_check
      _
    $region43: #{tpu_custom_call.1} parent=1 // pred_check_branch
      %110 = sbr.rel (0) target = $region45
    $region44: #{tpu_custom_call.1} parent=1 // pred_region
      %112 = dma.done [#allocation13], 128
    $region45: #{tpu_custom_call.1} parent=1 // pred_fallthru
      _
    // Predicated region
    $region46: #{tpu_custom_call.1} parent=1 // pred_check
      _
    $region47: #{tpu_custom_call.1} parent=1 // pred_check_branch
      %114 = sbr.rel (0) target = $region49
    $region48: #{tpu_custom_call.1} parent=1 // pred_region
      %116 = dma.done [#allocation13], 8192
    $region49: #{tpu_custom_call.1} parent=1 // pred_fallthru
      _
    // Predicated region
    $region50: #{tpu_custom_call.1} parent=1 // pred_check
      _
    $region51: #{tpu_custom_call.1} parent=1 // pred_check_branch
      %118 = sbr.rel (0) target = $region53
    $region52: #{tpu_custom_call.1} parent=1 // pred_region
      %120 = dma.done [#allocation16], 2048
    $region53: #{tpu_custom_call.1} parent=1 // pred_fallthru
      _
    %p121 = scmp.eq.s32.totalorder 0, 0
    // Predicated region
    $region54: #{tpu_custom_call.1} parent=1 // pred_check
      %p122 = pneg %p121
    $region55: #{tpu_custom_call.1} parent=1 // pred_check_branch
      %124 = sbr.rel (%p122) target = $region57
    $region56: #{tpu_custom_call.1} parent=1 // pred_region
      %125 = vst [vmem:[#allocation2] sm:$0xff] 0.0
      %126 = vst [vmem:[#allocation2 + $0x8] sm:$0xff] 0.0
      %127 = vst [vmem:[#allocation3] sm:$0xff] 0.0
      %128 = vst [vmem:[#allocation3 + $0x8] sm:$0xff] 0.0
    $region57: #{tpu_custom_call.1} parent=1 // pred_fallthru
      _
    %v129 = vld [vmem:[#allocation6] sm:$0xff]
    %v130 = vld [vmem:[#allocation6 + $0x8] sm:$0xff]
    %v131 = vld [vmem:[#allocation6 + $0x10] sm:$0xff]
    %v132 = vld [vmem:[#allocation6 + $0x18] sm:$0xff]
    %v133 = vld [vmem:[#allocation6 + $0x20] sm:$0xff]
    %v134 = vld [vmem:[#allocation6 + $0x28] sm:$0xff]
    %v135 = vld [vmem:[#allocation6 + $0x30] sm:$0xff]
    %v136 = vld [vmem:[#allocation6 + $0x38] sm:$0xff]
    %v137 = vld [vmem:[#allocation9] sm:$0xff]
    %v138 = vld [vmem:[#allocation9 + $0x8] sm:$0xff]
    %v139 = vld [vmem:[#allocation9 + $0x10] sm:$0xff]
    %v140 = vld [vmem:[#allocation9 + $0x18] sm:$0xff]
    %v141 = vld [vmem:[#allocation9 + $0x20] sm:$0xff]
    %v142 = vld [vmem:[#allocation9 + $0x28] sm:$0xff]
    %v143 = vld [vmem:[#allocation9 + $0x30] sm:$0xff]
    %v144 = vld [vmem:[#allocation9 + $0x38] sm:$0xff]
    %v145 = vld [vmem:[#allocation9 + $0x40] sm:$0xff]
    %v146 = vld [vmem:[#allocation9 + $0x48] sm:$0xff]
    %v147 = vld [vmem:[#allocation9 + $0x50] sm:$0xff]
    %v148 = vld [vmem:[#allocation9 + $0x58] sm:$0xff]
    %v149 = vld [vmem:[#allocation9 + $0x60] sm:$0xff]
    %v150 = vld [vmem:[#allocation9 + $0x68] sm:$0xff]
    %v151 = vld [vmem:[#allocation9 + $0x70] sm:$0xff]
    %v152 = vld [vmem:[#allocation9 + $0x78] sm:$0xff]
    %v153 = vld [vmem:[#allocation9 + $0x80] sm:$0xff]
    %v154 = vld [vmem:[#allocation9 + $0x88] sm:$0xff]
    %v155 = vld [vmem:[#allocation9 + $0x90] sm:$0xff]
    %v156 = vld [vmem:[#allocation9 + $0x98] sm:$0xff]
    %v157 = vld [vmem:[#allocation9 + $0xa0] sm:$0xff]
    %v158 = vld [vmem:[#allocation9 + $0xa8] sm:$0xff]
    %v159 = vld [vmem:[#allocation9 + $0xb0] sm:$0xff]
    %v160 = vld [vmem:[#allocation9 + $0xb8] sm:$0xff]
    %v161 = vld [vmem:[#allocation9 + $0xc0] sm:$0xff]
    %v162 = vld [vmem:[#allocation9 + $0xc8] sm:$0xff]
    %v163 = vld [vmem:[#allocation9 + $0xd0] sm:$0xff]
    %v164 = vld [vmem:[#allocation9 + $0xd8] sm:$0xff]
    %v165 = vld [vmem:[#allocation9 + $0xe0] sm:$0xff]
    %v166 = vld [vmem:[#allocation9 + $0xe8] sm:$0xff]
    %v167 = vld [vmem:[#allocation9 + $0xf0] sm:$0xff]
    %v168 = vld [vmem:[#allocation9 + $0xf8] sm:$0xff]
    %v169 = vld [vmem:[#allocation9 + $0x100] sm:$0xff]
    %v170 = vld [vmem:[#allocation9 + $0x108] sm:$0xff]
    %v171 = vld [vmem:[#allocation9 + $0x110] sm:$0xff]
    %v172 = vld [vmem:[#allocation9 + $0x118] sm:$0xff]
    %v173 = vld [vmem:[#allocation9 + $0x120] sm:$0xff]
    %v174 = vld [vmem:[#allocation9 + $0x128] sm:$0xff]
    %v175 = vld [vmem:[#allocation9 + $0x130] sm:$0xff]
    %v176 = vld [vmem:[#allocation9 + $0x138] sm:$0xff]
    %v177 = vld [vmem:[#allocation9 + $0x140] sm:$0xff]
    %v178 = vld [vmem:[#allocation9 + $0x148] sm:$0xff]
    %v179 = vld [vmem:[#allocation9 + $0x150] sm:$0xff]
    %v180 = vld [vmem:[#allocation9 + $0x158] sm:$0xff]
    %v181 = vld [vmem:[#allocation9 + $0x160] sm:$0xff]
    %v182 = vld [vmem:[#allocation9 + $0x168] sm:$0xff]
    %v183 = vld [vmem:[#allocation9 + $0x170] sm:$0xff]
    %v184 = vld [vmem:[#allocation9 + $0x178] sm:$0xff]
    %v185 = vld [vmem:[#allocation9 + $0x180] sm:$0xff]
    %v186 = vld [vmem:[#allocation9 + $0x188] sm:$0xff]
    %v187 = vld [vmem:[#allocation9 + $0x190] sm:$0xff]
    %v188 = vld [vmem:[#allocation9 + $0x198] sm:$0xff]
    %v189 = vld [vmem:[#allocation9 + $0x1a0] sm:$0xff]
    %v190 = vld [vmem:[#allocation9 + $0x1a8] sm:$0xff]
    %v191 = vld [vmem:[#allocation9 + $0x1b0] sm:$0xff]
    %v192 = vld [vmem:[#allocation9 + $0x1b8] sm:$0xff]
    %v193 = vld [vmem:[#allocation9 + $0x1c0] sm:$0xff]
    %v194 = vld [vmem:[#allocation9 + $0x1c8] sm:$0xff]
    %v195 = vld [vmem:[#allocation9 + $0x1d0] sm:$0xff]
    %v196 = vld [vmem:[#allocation9 + $0x1d8] sm:$0xff]
    %v197 = vld [vmem:[#allocation9 + $0x1e0] sm:$0xff]
    %v198 = vld [vmem:[#allocation9 + $0x1e8] sm:$0xff]
    %v199 = vld [vmem:[#allocation9 + $0x1f0] sm:$0xff]
    %v200 = vld [vmem:[#allocation9 + $0x1f8] sm:$0xff]
    %v201 = vld [vmem:[#allocation12] sm:$0xf]
    %v203 = vperm.slane %v201, 0
    %v204 = vperm.slane %v201, 1
    %v205 = vperm.slane %v201, 2
    %v206 = vperm.slane %v201, 3
    %211 = vmatpush.msra.mxu0 %v197
    %212 = vmatpush.msra.mxu0 %v193
    %213 = vmatpush.msra.mxu0 %v189
    %214 = vmatpush.msra.mxu0 %v185
    %215 = vmatpush.msra.mxu0 %v181
    %216 = vmatpush.msra.mxu0 %v177
    %217 = vmatpush.msra.mxu0 %v173
    %218 = vmatpush.msra.mxu0 %v169
    %219 = vmatpush.msra.mxu0 %v165
    %220 = vmatpush.msra.mxu0 %v161
    %221 = vmatpush.msra.mxu0 %v157
    %222 = vmatpush.msra.mxu0 %v153
    %223 = vmatpush.msra.mxu0 %v149
    %224 = vmatpush.msra.mxu0 %v145
    %225 = vmatpush.msra.mxu0 %v141
    %226 = vmatpush.msra.mxu0 %v137
    %227 = vmatmul.f32.gmra.mxu0 %v129
    %v228 = vpop.f32.mrf.mxu0
    %v229 = vadd.f32 %v203, %v228
    %230 = vmatmul.f32.gmra.mxu0 %v130
    %v231 = vpop.f32.mrf.mxu0
    %v232 = vadd.f32 %v203, %v231
    %233 = vmatmul.f32.gmra.mxu0 %v131
    %v234 = vpop.f32.mrf.mxu0
    %v235 = vadd.f32 %v203, %v234
    %236 = vmatmul.f32.gmra.mxu0 %v132
    %v237 = vpop.f32.mrf.mxu0
    %v238 = vadd.f32 %v203, %v237
    %239 = vmatmul.f32.gmra.mxu0 %v133
    %v240 = vpop.f32.mrf.mxu0
    %v241 = vadd.f32 %v203, %v240
    %242 = vmatmul.f32.gmra.mxu0 %v134
    %v243 = vpop.f32.mrf.mxu0
    %v244 = vadd.f32 %v203, %v243
    %245 = vmatmul.f32.gmra.mxu0 %v135
    %v246 = vpop.f32.mrf.mxu0
    %v247 = vadd.f32 %v203, %v246
    %248 = vmatmul.f32.gmra.mxu0 %v136
    %v249 = vpop.f32.mrf.mxu0
    %v250 = vadd.f32 %v203, %v249
    %251 = vdwg.mxu0
    %252 = vmatpush.msra.mxu0 %v198
    %253 = vmatpush.msra.mxu0 %v194
    %254 = vmatpush.msra.mxu0 %v190
    %255 = vmatpush.msra.mxu0 %v186
    %256 = vmatpush.msra.mxu0 %v182
    %257 = vmatpush.msra.mxu0 %v178
    %258 = vmatpush.msra.mxu0 %v174
    %259 = vmatpush.msra.mxu0 %v170
    %260 = vmatpush.msra.mxu0 %v166
    %261 = vmatpush.msra.mxu0 %v162
    %262 = vmatpush.msra.mxu0 %v158
    %263 = vmatpush.msra.mxu0 %v154
    %264 = vmatpush.msra.mxu0 %v150
    %265 = vmatpush.msra.mxu0 %v146
    %266 = vmatpush.msra.mxu0 %v142
    %267 = vmatpush.msra.mxu0 %v138
    %268 = vmatmul.f32.gmra.mxu0 %v129
    %v269 = vpop.f32.mrf.mxu0
    %v270 = vadd.f32 %v204, %v269
    %271 = vmatmul.f32.gmra.mxu0 %v130
    %v272 = vpop.f32.mrf.mxu0
    %v273 = vadd.f32 %v204, %v272
    %274 = vmatmul.f32.gmra.mxu0 %v131
    %v275 = vpop.f32.mrf.mxu0
    %v276 = vadd.f32 %v204, %v275
    %277 = vmatmul.f32.gmra.mxu0 %v132
    %v278 = vpop.f32.mrf.mxu0
    %v279 = vadd.f32 %v204, %v278
    %280 = vmatmul.f32.gmra.mxu0 %v133
    %v281 = vpop.f32.mrf.mxu0
    %v282 = vadd.f32 %v204, %v281
    %283 = vmatmul.f32.gmra.mxu0 %v134
    %v284 = vpop.f32.mrf.mxu0
    %v285 = vadd.f32 %v204, %v284
    %286 = vmatmul.f32.gmra.mxu0 %v135
    %v287 = vpop.f32.mrf.mxu0
    %v288 = vadd.f32 %v204, %v287
    %289 = vmatmul.f32.gmra.mxu0 %v136
    %v290 = vpop.f32.mrf.mxu0
    %v291 = vadd.f32 %v204, %v290
    %292 = vdwg.mxu0
    %293 = vmatpush.msra.mxu0 %v199
    %294 = vmatpush.msra.mxu0 %v195
    %295 = vmatpush.msra.mxu0 %v191
    %296 = vmatpush.msra.mxu0 %v187
    %297 = vmatpush.msra.mxu0 %v183
    %298 = vmatpush.msra.mxu0 %v179
    %299 = vmatpush.msra.mxu0 %v175
    %300 = vmatpush.msra.mxu0 %v171
    %301 = vmatpush.msra.mxu0 %v167
    %302 = vmatpush.msra.mxu0 %v163
    %303 = vmatpush.msra.mxu0 %v159
    %304 = vmatpush.msra.mxu0 %v155
    %305 = vmatpush.msra.mxu0 %v151
    %306 = vmatpush.msra.mxu0 %v147
    %307 = vmatpush.msra.mxu0 %v143
    %308 = vmatpush.msra.mxu0 %v139
    %309 = vmatmul.f32.gmra.mxu0 %v129
    %v310 = vpop.f32.mrf.mxu0
    %v311 = vadd.f32 %v205, %v310
    %312 = vmatmul.f32.gmra.mxu0 %v130
    %v313 = vpop.f32.mrf.mxu0
    %v314 = vadd.f32 %v205, %v313
    %315 = vmatmul.f32.gmra.mxu0 %v131
    %v316 = vpop.f32.mrf.mxu0
    %v317 = vadd.f32 %v205, %v316
    %318 = vmatmul.f32.gmra.mxu0 %v132
    %v319 = vpop.f32.mrf.mxu0
    %v320 = vadd.f32 %v205, %v319
    %321 = vmatmul.f32.gmra.mxu0 %v133
    %v322 = vpop.f32.mrf.mxu0
    %v323 = vadd.f32 %v205, %v322
    %324 = vmatmul.f32.gmra.mxu0 %v134
    %v325 = vpop.f32.mrf.mxu0
    %v326 = vadd.f32 %v205, %v325
    %327 = vmatmul.f32.gmra.mxu0 %v135
    %v328 = vpop.f32.mrf.mxu0
    %v329 = vadd.f32 %v205, %v328
    %330 = vmatmul.f32.gmra.mxu0 %v136
    %v331 = vpop.f32.mrf.mxu0
    %v332 = vadd.f32 %v205, %v331
    %333 = vdwg.mxu0
    %334 = vmatpush.msra.mxu0 %v200
    %335 = vmatpush.msra.mxu0 %v196
    %336 = vmatpush.msra.mxu0 %v192
    %337 = vmatpush.msra.mxu0 %v188
    %338 = vmatpush.msra.mxu0 %v184
    %339 = vmatpush.msra.mxu0 %v180
    %340 = vmatpush.msra.mxu0 %v176
    %341 = vmatpush.msra.mxu0 %v172
    %342 = vmatpush.msra.mxu0 %v168
    %343 = vmatpush.msra.mxu0 %v164
    %344 = vmatpush.msra.mxu0 %v160
    %345 = vmatpush.msra.mxu0 %v156
    %346 = vmatpush.msra.mxu0 %v152
    %347 = vmatpush.msra.mxu0 %v148
    %348 = vmatpush.msra.mxu0 %v144
    %349 = vmatpush.msra.mxu0 %v140
    %350 = vmatmul.f32.gmra.mxu0 %v129
    %v351 = vpop.f32.mrf.mxu0
    %v352 = vadd.f32 %v206, %v351
    %353 = vmatmul.f32.gmra.mxu0 %v130
    %v354 = vpop.f32.mrf.mxu0
    %v355 = vadd.f32 %v206, %v354
    %356 = vmatmul.f32.gmra.mxu0 %v131
    %v357 = vpop.f32.mrf.mxu0
    %v358 = vadd.f32 %v206, %v357
    %359 = vmatmul.f32.gmra.mxu0 %v132
    %v360 = vpop.f32.mrf.mxu0
    %v361 = vadd.f32 %v206, %v360
    %362 = vmatmul.f32.gmra.mxu0 %v133
    %v363 = vpop.f32.mrf.mxu0
    %v364 = vadd.f32 %v206, %v363
    %365 = vmatmul.f32.gmra.mxu0 %v134
    %v366 = vpop.f32.mrf.mxu0
    %v367 = vadd.f32 %v206, %v366
    %368 = vmatmul.f32.gmra.mxu0 %v135
    %v369 = vpop.f32.mrf.mxu0
    %v370 = vadd.f32 %v206, %v369
    %371 = vmatmul.f32.gmra.mxu0 %v136
    %v372 = vpop.f32.mrf.mxu0
    %v373 = vadd.f32 %v206, %v372
    %374 = vdwg.mxu0
    %375 = vst [vmem:[#allocation4] sm:$0xff] %v229
    %376 = vst [vmem:[#allocation4 + $0x8] sm:$0xff] %v270
    %377 = vst [vmem:[#allocation4 + $0x10] sm:$0xff] %v311
    %378 = vst [vmem:[#allocation4 + $0x18] sm:$0xff] %v352
    %379 = vst [vmem:[#allocation4 + $0x20] sm:$0xff] %v232
    %380 = vst [vmem:[#allocation4 + $0x28] sm:$0xff] %v273
    %381 = vst [vmem:[#allocation4 + $0x30] sm:$0xff] %v314
    %382 = vst [vmem:[#allocation4 + $0x38] sm:$0xff] %v355
    %383 = vst [vmem:[#allocation4 + $0x40] sm:$0xff] %v235
    %384 = vst [vmem:[#allocation4 + $0x48] sm:$0xff] %v276
    %385 = vst [vmem:[#allocation4 + $0x50] sm:$0xff] %v317
    %386 = vst [vmem:[#allocation4 + $0x58] sm:$0xff] %v358
    %387 = vst [vmem:[#allocation4 + $0x60] sm:$0xff] %v238
    %388 = vst [vmem:[#allocation4 + $0x68] sm:$0xff] %v279
    %389 = vst [vmem:[#allocation4 + $0x70] sm:$0xff] %v320
    %390 = vst [vmem:[#allocation4 + $0x78] sm:$0xff] %v361
    %391 = vst [vmem:[#allocation4 + $0x80] sm:$0xff] %v241
    %392 = vst [vmem:[#allocation4 + $0x88] sm:$0xff] %v282
    %393 = vst [vmem:[#allocation4 + $0x90] sm:$0xff] %v323
    %394 = vst [vmem:[#allocation4 + $0x98] sm:$0xff] %v364
    %395 = vst [vmem:[#allocation4 + $0xa0] sm:$0xff] %v244
    %396 = vst [vmem:[#allocation4 + $0xa8] sm:$0xff] %v285
    %397 = vst [vmem:[#allocation4 + $0xb0] sm:$0xff] %v326
    %398 = vst [vmem:[#allocation4 + $0xb8] sm:$0xff] %v367
    %399 = vst [vmem:[#allocation4 + $0xc0] sm:$0xff] %v247
    %400 = vst [vmem:[#allocation4 + $0xc8] sm:$0xff] %v288
    %401 = vst [vmem:[#allocation4 + $0xd0] sm:$0xff] %v329
    %402 = vst [vmem:[#allocation4 + $0xd8] sm:$0xff] %v370
    %403 = vst [vmem:[#allocation4 + $0xe0] sm:$0xff] %v250
    %404 = vst [vmem:[#allocation4 + $0xe8] sm:$0xff] %v291
    %405 = vst [vmem:[#allocation4 + $0xf0] sm:$0xff] %v332
    %406 = vst [vmem:[#allocation4 + $0xf8] sm:$0xff] %v373
    %v407 = vld [vmem:[#allocation11] sm:$0xff]
    %v408 = vld [vmem:[#allocation11 + $0x8] sm:$0xff]
    %v409 = vld [vmem:[#allocation11 + $0x10] sm:$0xff]
    %v410 = vld [vmem:[#allocation11 + $0x18] sm:$0xff]
    %v411 = vld [vmem:[#allocation11 + $0x20] sm:$0xff]
    %v412 = vld [vmem:[#allocation11 + $0x28] sm:$0xff]
    %v413 = vld [vmem:[#allocation11 + $0x30] sm:$0xff]
    %v414 = vld [vmem:[#allocation11 + $0x38] sm:$0xff]
    %v415 = vld [vmem:[#allocation11 + $0x40] sm:$0xff]
    %v416 = vld [vmem:[#allocation11 + $0x48] sm:$0xff]
    %v417 = vld [vmem:[#allocation11 + $0x50] sm:$0xff]
    %v418 = vld [vmem:[#allocation11 + $0x58] sm:$0xff]
    %v419 = vld [vmem:[#allocation11 + $0x60] sm:$0xff]
    %v420 = vld [vmem:[#allocation11 + $0x68] sm:$0xff]
    %v421 = vld [vmem:[#allocation11 + $0x70] sm:$0xff]
    %v422 = vld [vmem:[#allocation11 + $0x78] sm:$0xff]
    %v423 = vld [vmem:[#allocation11 + $0x80] sm:$0xff]
    %v424 = vld [vmem:[#allocation11 + $0x88] sm:$0xff]
    %v425 = vld [vmem:[#allocation11 + $0x90] sm:$0xff]
    %v426 = vld [vmem:[#allocation11 + $0x98] sm:$0xff]
    %v427 = vld [vmem:[#allocation11 + $0xa0] sm:$0xff]
    %v428 = vld [vmem:[#allocation11 + $0xa8] sm:$0xff]
    %v429 = vld [vmem:[#allocation11 + $0xb0] sm:$0xff]
    %v430 = vld [vmem:[#allocation11 + $0xb8] sm:$0xff]
    %v431 = vld [vmem:[#allocation11 + $0xc0] sm:$0xff]
    %v432 = vld [vmem:[#allocation11 + $0xc8] sm:$0xff]
    %v433 = vld [vmem:[#allocation11 + $0xd0] sm:$0xff]
    %v434 = vld [vmem:[#allocation11 + $0xd8] sm:$0xff]
    %v435 = vld [vmem:[#allocation11 + $0xe0] sm:$0xff]
    %v436 = vld [vmem:[#allocation11 + $0xe8] sm:$0xff]
    %v437 = vld [vmem:[#allocation11 + $0xf0] sm:$0xff]
    %v438 = vld [vmem:[#allocation11 + $0xf8] sm:$0xff]
    %v439 = vld [vmem:[#allocation11 + $0x100] sm:$0xff]
    %v440 = vld [vmem:[#allocation11 + $0x108] sm:$0xff]
    %v441 = vld [vmem:[#allocation11 + $0x110] sm:$0xff]
    %v442 = vld [vmem:[#allocation11 + $0x118] sm:$0xff]
    %v443 = vld [vmem:[#allocation11 + $0x120] sm:$0xff]
    %v444 = vld [vmem:[#allocation11 + $0x128] sm:$0xff]
    %v445 = vld [vmem:[#allocation11 + $0x130] sm:$0xff]
    %v446 = vld [vmem:[#allocation11 + $0x138] sm:$0xff]
    %v447 = vld [vmem:[#allocation11 + $0x140] sm:$0xff]
    %v448 = vld [vmem:[#allocation11 + $0x148] sm:$0xff]
    %v449 = vld [vmem:[#allocation11 + $0x150] sm:$0xff]
    %v450 = vld [vmem:[#allocation11 + $0x158] sm:$0xff]
    %v451 = vld [vmem:[#allocation11 + $0x160] sm:$0xff]
    %v452 = vld [vmem:[#allocation11 + $0x168] sm:$0xff]
    %v453 = vld [vmem:[#allocation11 + $0x170] sm:$0xff]
    %v454 = vld [vmem:[#allocation11 + $0x178] sm:$0xff]
    %v455 = vld [vmem:[#allocation11 + $0x180] sm:$0xff]
    %v456 = vld [vmem:[#allocation11 + $0x188] sm:$0xff]
    %v457 = vld [vmem:[#allocation11 + $0x190] sm:$0xff]
    %v458 = vld [vmem:[#allocation11 + $0x198] sm:$0xff]
    %v459 = vld [vmem:[#allocation11 + $0x1a0] sm:$0xff]
    %v460 = vld [vmem:[#allocation11 + $0x1a8] sm:$0xff]
    %v461 = vld [vmem:[#allocation11 + $0x1b0] sm:$0xff]
    %v462 = vld [vmem:[#allocation11 + $0x1b8] sm:$0xff]
    %v463 = vld [vmem:[#allocation11 + $0x1c0] sm:$0xff]
    %v464 = vld [vmem:[#allocation11 + $0x1c8] sm:$0xff]
    %v465 = vld [vmem:[#allocation11 + $0x1d0] sm:$0xff]
    %v466 = vld [vmem:[#allocation11 + $0x1d8] sm:$0xff]
    %v467 = vld [vmem:[#allocation11 + $0x1e0] sm:$0xff]
    %v468 = vld [vmem:[#allocation11 + $0x1e8] sm:$0xff]
    %v469 = vld [vmem:[#allocation11 + $0x1f0] sm:$0xff]
    %v470 = vld [vmem:[#allocation11 + $0x1f8] sm:$0xff]
    %v471 = vld [vmem:[#allocation2] sm:$0xff]
    %v472 = vld [vmem:[#allocation3] sm:$0xff]
    %v473 = vld [vmem:[#allocation4] sm:$0xff]
    %v474 = vld [vmem:[#allocation4 + $0x8] sm:$0xff]
    %v475 = vld [vmem:[#allocation4 + $0x10] sm:$0xff]
    %v476 = vld [vmem:[#allocation4 + $0x18] sm:$0xff]
    %477 = vmatpush.msra.mxu0 %v467
    %478 = vmatpush.msra.mxu0 %v463
    %479 = vmatpush.msra.mxu0 %v459
    %480 = vmatpush.msra.mxu0 %v455
    %481 = vmatpush.msra.mxu0 %v451
    %482 = vmatpush.msra.mxu0 %v447
    %483 = vmatpush.msra.mxu0 %v443
    %484 = vmatpush.msra.mxu0 %v439
    %485 = vmatpush.msra.mxu0 %v435
    %486 = vmatpush.msra.mxu0 %v431
    %487 = vmatpush.msra.mxu0 %v427
    %488 = vmatpush.msra.mxu0 %v423
    %489 = vmatpush.msra.mxu0 %v419
    %490 = vmatpush.msra.mxu0 %v415
    %491 = vmatpush.msra.mxu0 %v411
    %492 = vmatpush.msra.mxu0 %v407
    %493 = vmatmul.f32.gmra.mxu0 %v471
    %v494 = vpop.f32.mrf.mxu0
    %v495 = vadd.f32 0.0, %v494
    %496 = vdwg.mxu0
    %497 = vmatpush.msra.mxu0 %v468
    %498 = vmatpush.msra.mxu0 %v464
    %499 = vmatpush.msra.mxu0 %v460
    %500 = vmatpush.msra.mxu0 %v456
    %501 = vmatpush.msra.mxu0 %v452
    %502 = vmatpush.msra.mxu0 %v448
    %503 = vmatpush.msra.mxu0 %v444
    %504 = vmatpush.msra.mxu0 %v440
    %505 = vmatpush.msra.mxu0 %v436
    %506 = vmatpush.msra.mxu0 %v432
    %507 = vmatpush.msra.mxu0 %v428
    %508 = vmatpush.msra.mxu0 %v424
    %509 = vmatpush.msra.mxu0 %v420
    %510 = vmatpush.msra.mxu0 %v416
    %511 = vmatpush.msra.mxu0 %v412
    %512 = vmatpush.msra.mxu0 %v408
    %513 = vmatmul.f32.gmra.mxu0 %v471
    %v514 = vpop.f32.mrf.mxu0
    %v515 = vadd.f32 0.0, %v514
    %516 = vdwg.mxu0
    %517 = vmatpush.msra.mxu0 %v469
    %518 = vmatpush.msra.mxu0 %v465
    %519 = vmatpush.msra.mxu0 %v461
    %520 = vmatpush.msra.mxu0 %v457
    %521 = vmatpush.msra.mxu0 %v453
    %522 = vmatpush.msra.mxu0 %v449
    %523 = vmatpush.msra.mxu0 %v445
    %524 = vmatpush.msra.mxu0 %v441
    %525 = vmatpush.msra.mxu0 %v437
    %526 = vmatpush.msra.mxu0 %v433
    %527 = vmatpush.msra.mxu0 %v429
    %528 = vmatpush.msra.mxu0 %v425
    %529 = vmatpush.msra.mxu0 %v421
    %530 = vmatpush.msra.mxu0 %v417
    %531 = vmatpush.msra.mxu0 %v413
    %532 = vmatpush.msra.mxu0 %v409
    %533 = vmatmul.f32.gmra.mxu0 %v471
    %v534 = vpop.f32.mrf.mxu0
    %v535 = vadd.f32 0.0, %v534
    %536 = vdwg.mxu0
    %537 = vmatpush.msra.mxu0 %v470
    %538 = vmatpush.msra.mxu0 %v466
    %539 = vmatpush.msra.mxu0 %v462
    %540 = vmatpush.msra.mxu0 %v458
    %541 = vmatpush.msra.mxu0 %v454
    %542 = vmatpush.msra.mxu0 %v450
    %543 = vmatpush.msra.mxu0 %v446
    %544 = vmatpush.msra.mxu0 %v442
    %545 = vmatpush.msra.mxu0 %v438
    %546 = vmatpush.msra.mxu0 %v434
    %547 = vmatpush.msra.mxu0 %v430
    %548 = vmatpush.msra.mxu0 %v426
    %549 = vmatpush.msra.mxu0 %v422
    %550 = vmatpush.msra.mxu0 %v418
    %551 = vmatpush.msra.mxu0 %v414
    %552 = vmatpush.msra.mxu0 %v410
    %553 = vmatmul.f32.gmra.mxu0 %v471
    %v554 = vpop.f32.mrf.mxu0
    %v555 = vadd.f32 0.0, %v554
    %556 = vdwg.mxu0
    %v557 = vadd.f32 %v473, %v495
    %v558 = vadd.f32 %v474, %v515
    %v559 = vadd.f32 %v475, %v535
    %v560 = vadd.f32 %v476, %v555
    %v561 = vxor.u32 %v557, 2147483648
    %v562 = vmul.f32 %v561, 1.442695
    %v563 = vpow.pop %v562
    %v564 = vadd.f32 %v563, 1.0
    %v565 = vrcp.pop %v564
    %v566 = vmul.f32 %v564, %v565
    %v567 = vsub.f32 1.0, %v566
    %v568 = vmul.f32 %v565, %v567
    %v569 = vadd.f32 %v565, %v568
    %vm570 = vweird.f32 %v564
    %vm571 = vweird.f32 %v565
    %vm572 = vmor %vm570, %vm571
    %v573 = vsel %vm572, %v565, %v569
    %v574 = vand.u32 2147483647, %v564
    %vm575 = vcmp.eq.f32.partialorder %v574, 8.507059e+37
    %v576 = vand.u32 %v564, 2147483648
    %v577 = vor.u32 1.1754944e-38, %v576
    %v578 = vsel %vm575, %v577, %v573
    %v579 = vmul.f32 1.0, %v578
    %v580 = vxor.u32 %v558, 2147483648
    %v581 = vmul.f32 %v580, 1.442695
    %v582 = vpow.pop %v581
    %v583 = vadd.f32 %v582, 1.0
    %v584 = vrcp.pop %v583
    %v585 = vmul.f32 %v583, %v584
    %v586 = vsub.f32 1.0, %v585
    %v587 = vmul.f32 %v584, %v586
    %v588 = vadd.f32 %v584, %v587
    %vm589 = vweird.f32 %v583
    %vm590 = vweird.f32 %v584
    %vm591 = vmor %vm589, %vm590
    %v592 = vsel %vm591, %v584, %v588
    %v593 = vand.u32 2147483647, %v583
    %vm594 = vcmp.eq.f32.partialorder %v593, 8.507059e+37
    %v595 = vand.u32 %v583, 2147483648
    %v596 = vor.u32 1.1754944e-38, %v595
    %v597 = vsel %vm594, %v596, %v592
    %v598 = vmul.f32 1.0, %v597
    %v599 = vtanh.pop %v559
    %v600 = vxor.u32 %v560, 2147483648
    %v601 = vmul.f32 %v600, 1.442695
    %v602 = vpow.pop %v601
    %v603 = vadd.f32 %v602, 1.0
    %v604 = vrcp.pop %v603
    %v605 = vmul.f32 %v603, %v604
    %v606 = vsub.f32 1.0, %v605
    %v607 = vmul.f32 %v604, %v606
    %v608 = vadd.f32 %v604, %v607
    %vm609 = vweird.f32 %v603
    %vm610 = vweird.f32 %v604
    %vm611 = vmor %vm609, %vm610
    %v612 = vsel %vm611, %v604, %v608
    %v613 = vand.u32 2147483647, %v603
    %vm614 = vcmp.eq.f32.partialorder %v613, 8.507059e+37
    %v615 = vand.u32 %v603, 2147483648
    %v616 = vor.u32 1.1754944e-38, %v615
    %v617 = vsel %vm614, %v616, %v612
    %v618 = vmul.f32 1.0, %v617
    %v619 = vmul.f32 %v598, %v472
    %v620 = vmul.f32 %v579, %v599
    %v621 = vadd.f32 %v619, %v620
    %v622 = vtanh.pop %v621
    %v623 = vmul.f32 %v618, %v622
    %624 = vst [vmem:[#allocation3] sm:$0xff] %v621
    %625 = vst [vmem:[#allocation2] sm:$0xff] %v623
    %626 = vst [vmem:[#allocation5] sm:$0xff] %v623
    %v627 = vld [vmem:[#allocation2] sm:$0xff]
    %v628 = vld [vmem:[#allocation3] sm:$0xff]
    %s629 = scalar_lea.vmem [#allocation4], 32
    %v630 = vld [vmem:[%s629] sm:$0xff]
    %v631 = vld [vmem:[%s629 + $0x8] sm:$0xff]
    %v632 = vld [vmem:[%s629 + $0x10] sm:$0xff]
    %v633 = vld [vmem:[%s629 + $0x18] sm:$0xff]
    %634 = vmatpush.msra.mxu0 %v467
    %635 = vmatpush.msra.mxu0 %v463
    %636 = vmatpush.msra.mxu0 %v459
    %637 = vmatpush.msra.mxu0 %v455
    %638 = vmatpush.msra.mxu0 %v451
    %639 = vmatpush.msra.mxu0 %v447
    %640 = vmatpush.msra.mxu0 %v443
    %641 = vmatpush.msra.mxu0 %v439
    %642 = vmatpush.msra.mxu0 %v435
    %643 = vmatpush.msra.mxu0 %v431
    %644 = vmatpush.msra.mxu0 %v427
    %645 = vmatpush.msra.mxu0 %v423
    %646 = vmatpush.msra.mxu0 %v419
    %647 = vmatpush.msra.mxu0 %v415
    %648 = vmatpush.msra.mxu0 %v411
    %649 = vmatpush.msra.mxu0 %v407
    %650 = vmatmul.f32.gmra.mxu0 %v627
    %v651 = vpop.f32.mrf.mxu0
    %v652 = vadd.f32 0.0, %v651
    %653 = vdwg.mxu0
    %654 = vmatpush.msra.mxu0 %v468
    %655 = vmatpush.msra.mxu0 %v464
    %656 = vmatpush.msra.mxu0 %v460
    %657 = vmatpush.msra.mxu0 %v456
    %658 = vmatpush.msra.mxu0 %v452
    %659 = vmatpush.msra.mxu0 %v448
    %660 = vmatpush.msra.mxu0 %v444
    %661 = vmatpush.msra.mxu0 %v440
    %662 = vmatpush.msra.mxu0 %v436
    %663 = vmatpush.msra.mxu0 %v432
    %664 = vmatpush.msra.mxu0 %v428
    %665 = vmatpush.msra.mxu0 %v424
    %666 = vmatpush.msra.mxu0 %v420
    %667 = vmatpush.msra.mxu0 %v416
    %668 = vmatpush.msra.mxu0 %v412
    %669 = vmatpush.msra.mxu0 %v408
    %670 = vmatmul.f32.gmra.mxu0 %v627
    %v671 = vpop.f32.mrf.mxu0
    %v672 = vadd.f32 0.0, %v671
    %673 = vdwg.mxu0
    %674 = vmatpush.msra.mxu0 %v469
    %675 = vmatpush.msra.mxu0 %v465
    %676 = vmatpush.msra.mxu0 %v461
    %677 = vmatpush.msra.mxu0 %v457
    %678 = vmatpush.msra.mxu0 %v453
    %679 = vmatpush.msra.mxu0 %v449
    %680 = vmatpush.msra.mxu0 %v445
    %681 = vmatpush.msra.mxu0 %v441
    %682 = vmatpush.msra.mxu0 %v437
    %683 = vmatpush.msra.mxu0 %v433
    %684 = vmatpush.msra.mxu0 %v429
    %685 = vmatpush.msra.mxu0 %v425
    %686 = vmatpush.msra.mxu0 %v421
    %687 = vmatpush.msra.mxu0 %v417
    %688 = vmatpush.msra.mxu0 %v413
    %689 = vmatpush.msra.mxu0 %v409
    %690 = vmatmul.f32.gmra.mxu0 %v627
    %v691 = vpop.f32.mrf.mxu0
    %v692 = vadd.f32 0.0, %v691
    %693 = vdwg.mxu0
    %694 = vmatpush.msra.mxu0 %v470
    %695 = vmatpush.msra.mxu0 %v466
    %696 = vmatpush.msra.mxu0 %v462
    %697 = vmatpush.msra.mxu0 %v458
    %698 = vmatpush.msra.mxu0 %v454
    %699 = vmatpush.msra.mxu0 %v450
    %700 = vmatpush.msra.mxu0 %v446
    %701 = vmatpush.msra.mxu0 %v442
    %702 = vmatpush.msra.mxu0 %v438
    %703 = vmatpush.msra.mxu0 %v434
    %704 = vmatpush.msra.mxu0 %v430
    %705 = vmatpush.msra.mxu0 %v426
    %706 = vmatpush.msra.mxu0 %v422
    %707 = vmatpush.msra.mxu0 %v418
    %708 = vmatpush.msra.mxu0 %v414
    %709 = vmatpush.msra.mxu0 %v410
    %710 = vmatmul.f32.gmra.mxu0 %v627
    %v711 = vpop.f32.mrf.mxu0
    %v712 = vadd.f32 0.0, %v711
    %713 = vdwg.mxu0
    %v714 = vadd.f32 %v630, %v652
    %v715 = vadd.f32 %v631, %v672
    %v716 = vadd.f32 %v632, %v692
    %v717 = vadd.f32 %v633, %v712
    %v718 = vxor.u32 %v714, 2147483648
    %v719 = vmul.f32 %v718, 1.442695
    %v720 = vpow.pop %v719
    %v721 = vadd.f32 %v720, 1.0
    %v722 = vrcp.pop %v721
    %v723 = vmul.f32 %v721, %v722
    %v724 = vsub.f32 1.0, %v723
    %v725 = vmul.f32 %v722, %v724
    %v726 = vadd.f32 %v722, %v725
    %vm727 = vweird.f32 %v721
    %vm728 = vweird.f32 %v722
    %vm729 = vmor %vm727, %vm728
    %v730 = vsel %vm729, %v722, %v726
    %v731 = vand.u32 2147483647, %v721
    %vm732 = vcmp.eq.f32.partialorder %v731, 8.507059e+37
    %v733 = vand.u32 %v721, 2147483648
    %v734 = vor.u32 1.1754944e-38, %v733
    %v735 = vsel %vm732, %v734, %v730
    %v736 = vmul.f32 1.0, %v735
    %v737 = vxor.u32 %v715, 2147483648
    %v738 = vmul.f32 %v737, 1.442695
    %v739 = vpow.pop %v738
    %v740 = vadd.f32 %v739, 1.0
    %v741 = vrcp.pop %v740
    %v742 = vmul.f32 %v740, %v741
    %v743 = vsub.f32 1.0, %v742
    %v744 = vmul.f32 %v741, %v743
    %v745 = vadd.f32 %v741, %v744
    %vm746 = vweird.f32 %v740
    %vm747 = vweird.f32 %v741
    %vm748 = vmor %vm746, %vm747
    %v749 = vsel %vm748, %v741, %v745
    %v750 = vand.u32 2147483647, %v740
    %vm751 = vcmp.eq.f32.partialorder %v750, 8.507059e+37
    %v752 = vand.u32 %v740, 2147483648
    %v753 = vor.u32 1.1754944e-38, %v752
    %v754 = vsel %vm751, %v753, %v749
    %v755 = vmul.f32 1.0, %v754
    %v756 = vtanh.pop %v716
    %v757 = vxor.u32 %v717, 2147483648
    %v758 = vmul.f32 %v757, 1.442695
    %v759 = vpow.pop %v758
    %v760 = vadd.f32 %v759, 1.0
    %v761 = vrcp.pop %v760
    %v762 = vmul.f32 %v760, %v761
    %v763 = vsub.f32 1.0, %v762
    %v764 = vmul.f32 %v761, %v763
    %v765 = vadd.f32 %v761, %v764
    %vm766 = vweird.f32 %v760
    %vm767 = vweird.f32 %v761
    %vm768 = vmor %vm766, %vm767
    %v769 = vsel %vm768, %v761, %v765
    %v770 = vand.u32 2147483647, %v760
    %vm771 = vcmp.eq.f32.partialorder %v770, 8.507059e+37
    %v772 = vand.u32 %v760, 2147483648
    %v773 = vor.u32 1.1754944e-38, %v772
    %v774 = vsel %vm771, %v773, %v769
    %v775 = vmul.f32 1.0, %v774
    %v776 = vmul.f32 %v755, %v628
    %v777 = vmul.f32 %v736, %v756
    %v778 = vadd.f32 %v776, %v777
    %v779 = vtanh.pop %v778
    %v780 = vmul.f32 %v775, %v779
    %781 = vst [vmem:[#allocation3] sm:$0xff] %v778
    %782 = vst [vmem:[#allocation2] sm:$0xff] %v780
    %s783 = scalar_lea.vmem [#allocation5], 8
    %784 = vst [vmem:[%s783] sm:$0xff] %v780
    %v785 = vld [vmem:[#allocation2] sm:$0xff]
    %v786 = vld [vmem:[#allocation3] sm:$0xff]
    %s787 = scalar_lea.vmem [#allocation4], 64
    %v788 = vld [vmem:[%s787] sm:$0xff]
    %v789 = vld [vmem:[%s787 + $0x8] sm:$0xff]
    %v790 = vld [vmem:[%s787 + $0x10] sm:$0xff]
    %v791 = vld [vmem:[%s787 + $0x18] sm:$0xff]
    %792 = vmatpush.msra.mxu0 %v467
    %793 = vmatpush.msra.mxu0 %v463
    %794 = vmatpush.msra.mxu0 %v459
    %795 = vmatpush.msra.mxu0 %v455
    %796 = vmatpush.msra.mxu0 %v451
    %797 = vmatpush.msra.mxu0 %v447
    %798 = vmatpush.msra.mxu0 %v443
    %799 = vmatpush.msra.mxu0 %v439
    %800 = vmatpush.msra.mxu0 %v435
    %801 = vmatpush.msra.mxu0 %v431
    %802 = vmatpush.msra.mxu0 %v427
    %803 = vmatpush.msra.mxu0 %v423
    %804 = vmatpush.msra.mxu0 %v419
    %805 = vmatpush.msra.mxu0 %v415
    %806 = vmatpush.msra.mxu0 %v411
    %807 = vmatpush.msra.mxu0 %v407
    %808 = vmatmul.f32.gmra.mxu0 %v785
    %v809 = vpop.f32.mrf.mxu0
    %v810 = vadd.f32 0.0, %v809
    %811 = vdwg.mxu0
    %812 = vmatpush.msra.mxu0 %v468
    %813 = vmatpush.msra.mxu0 %v464
    %814 = vmatpush.msra.mxu0 %v460
    %815 = vmatpush.msra.mxu0 %v456
    %816 = vmatpush.msra.mxu0 %v452
    %817 = vmatpush.msra.mxu0 %v448
    %818 = vmatpush.msra.mxu0 %v444
    %819 = vmatpush.msra.mxu0 %v440
    %820 = vmatpush.msra.mxu0 %v436
    %821 = vmatpush.msra.mxu0 %v432
    %822 = vmatpush.msra.mxu0 %v428
    %823 = vmatpush.msra.mxu0 %v424
    %824 = vmatpush.msra.mxu0 %v420
    %825 = vmatpush.msra.mxu0 %v416
    %826 = vmatpush.msra.mxu0 %v412
    %827 = vmatpush.msra.mxu0 %v408
    %828 = vmatmul.f32.gmra.mxu0 %v785
    %v829 = vpop.f32.mrf.mxu0
    %v830 = vadd.f32 0.0, %v829
    %831 = vdwg.mxu0
    %832 = vmatpush.msra.mxu0 %v469
    %833 = vmatpush.msra.mxu0 %v465
    %834 = vmatpush.msra.mxu0 %v461
    %835 = vmatpush.msra.mxu0 %v457
    %836 = vmatpush.msra.mxu0 %v453
    %837 = vmatpush.msra.mxu0 %v449
    %838 = vmatpush.msra.mxu0 %v445
    %839 = vmatpush.msra.mxu0 %v441
    %840 = vmatpush.msra.mxu0 %v437
    %841 = vmatpush.msra.mxu0 %v433
    %842 = vmatpush.msra.mxu0 %v429
    %843 = vmatpush.msra.mxu0 %v425
    %844 = vmatpush.msra.mxu0 %v421
    %845 = vmatpush.msra.mxu0 %v417
    %846 = vmatpush.msra.mxu0 %v413
    %847 = vmatpush.msra.mxu0 %v409
    %848 = vmatmul.f32.gmra.mxu0 %v785
    %v849 = vpop.f32.mrf.mxu0
    %v850 = vadd.f32 0.0, %v849
    %851 = vdwg.mxu0
    %852 = vmatpush.msra.mxu0 %v470
    %853 = vmatpush.msra.mxu0 %v466
    %854 = vmatpush.msra.mxu0 %v462
    %855 = vmatpush.msra.mxu0 %v458
    %856 = vmatpush.msra.mxu0 %v454
    %857 = vmatpush.msra.mxu0 %v450
    %858 = vmatpush.msra.mxu0 %v446
    %859 = vmatpush.msra.mxu0 %v442
    %860 = vmatpush.msra.mxu0 %v438
    %861 = vmatpush.msra.mxu0 %v434
    %862 = vmatpush.msra.mxu0 %v430
    %863 = vmatpush.msra.mxu0 %v426
    %864 = vmatpush.msra.mxu0 %v422
    %865 = vmatpush.msra.mxu0 %v418
    %866 = vmatpush.msra.mxu0 %v414
    %867 = vmatpush.msra.mxu0 %v410
    %868 = vmatmul.f32.gmra.mxu0 %v785
    %v869 = vpop.f32.mrf.mxu0
    %v870 = vadd.f32 0.0, %v869
    %871 = vdwg.mxu0
    %v872 = vadd.f32 %v788, %v810
    %v873 = vadd.f32 %v789, %v830
    %v874 = vadd.f32 %v790, %v850
    %v875 = vadd.f32 %v791, %v870
    %v876 = vxor.u32 %v872, 2147483648
    %v877 = vmul.f32 %v876, 1.442695
    %v878 = vpow.pop %v877
    %v879 = vadd.f32 %v878, 1.0
    %v880 = vrcp.pop %v879
    %v881 = vmul.f32 %v879, %v880
    %v882 = vsub.f32 1.0, %v881
    %v883 = vmul.f32 %v880, %v882
    %v884 = vadd.f32 %v880, %v883
    %vm885 = vweird.f32 %v879
    %vm886 = vweird.f32 %v880
    %vm887 = vmor %vm885, %vm886
    %v888 = vsel %vm887, %v880, %v884
    %v889 = vand.u32 2147483647, %v879
    %vm890 = vcmp.eq.f32.partialorder %v889, 8.507059e+37
    %v891 = vand.u32 %v879, 2147483648
    %v892 = vor.u32 1.1754944e-38, %v891
    %v893 = vsel %vm890, %v892, %v888
    %v894 = vmul.f32 1.0, %v893
    %v895 = vxor.u32 %v873, 2147483648
    %v896 = vmul.f32 %v895, 1.442695
    %v897 = vpow.pop %v896
    %v898 = vadd.f32 %v897, 1.0
    %v899 = vrcp.pop %v898
    %v900 = vmul.f32 %v898, %v899
    %v901 = vsub.f32 1.0, %v900
    %v902 = vmul.f32 %v899, %v901
    %v903 = vadd.f32 %v899, %v902
    %vm904 = vweird.f32 %v898
    %vm905 = vweird.f32 %v899
    %vm906 = vmor %vm904, %vm905
    %v907 = vsel %vm906, %v899, %v903
    %v908 = vand.u32 2147483647, %v898
    %vm909 = vcmp.eq.f32.partialorder %v908, 8.507059e+37
    %v910 = vand.u32 %v898, 2147483648
    %v911 = vor.u32 1.1754944e-38, %v910
    %v912 = vsel %vm909, %v911, %v907
    %v913 = vmul.f32 1.0, %v912
    %v914 = vtanh.pop %v874
    %v915 = vxor.u32 %v875, 2147483648
    %v916 = vmul.f32 %v915, 1.442695
    %v917 = vpow.pop %v916
    %v918 = vadd.f32 %v917, 1.0
    %v919 = vrcp.pop %v918
    %v920 = vmul.f32 %v918, %v919
    %v921 = vsub.f32 1.0, %v920
    %v922 = vmul.f32 %v919, %v921
    %v923 = vadd.f32 %v919, %v922
    %vm924 = vweird.f32 %v918
    %vm925 = vweird.f32 %v919
    %vm926 = vmor %vm924, %vm925
    %v927 = vsel %vm926, %v919, %v923
    %v928 = vand.u32 2147483647, %v918
    %vm929 = vcmp.eq.f32.partialorder %v928, 8.507059e+37
    %v930 = vand.u32 %v918, 2147483648
    %v931 = vor.u32 1.1754944e-38, %v930
    %v932 = vsel %vm929, %v931, %v927
    %v933 = vmul.f32 1.0, %v932
    %v934 = vmul.f32 %v913, %v786
    %v935 = vmul.f32 %v894, %v914
    %v936 = vadd.f32 %v934, %v935
    %v937 = vtanh.pop %v936
    %v938 = vmul.f32 %v933, %v937
    %939 = vst [vmem:[#allocation3] sm:$0xff] %v936
    %940 = vst [vmem:[#allocation2] sm:$0xff] %v938
    %s941 = scalar_lea.vmem [#allocation5], 16
    %942 = vst [vmem:[%s941] sm:$0xff] %v938
    %v943 = vld [vmem:[#allocation2] sm:$0xff]
    %v944 = vld [vmem:[#allocation3] sm:$0xff]
    %s945 = scalar_lea.vmem [#allocation4], 96
    %v946 = vld [vmem:[%s945] sm:$0xff]
    %v947 = vld [vmem:[%s945 + $0x8] sm:$0xff]
    %v948 = vld [vmem:[%s945 + $0x10] sm:$0xff]
    %v949 = vld [vmem:[%s945 + $0x18] sm:$0xff]
    %950 = vmatpush.msra.mxu0 %v467
    %951 = vmatpush.msra.mxu0 %v463
    %952 = vmatpush.msra.mxu0 %v459
    %953 = vmatpush.msra.mxu0 %v455
    %954 = vmatpush.msra.mxu0 %v451
    %955 = vmatpush.msra.mxu0 %v447
    %956 = vmatpush.msra.mxu0 %v443
    %957 = vmatpush.msra.mxu0 %v439
    %958 = vmatpush.msra.mxu0 %v435
    %959 = vmatpush.msra.mxu0 %v431
    %960 = vmatpush.msra.mxu0 %v427
    %961 = vmatpush.msra.mxu0 %v423
    %962 = vmatpush.msra.mxu0 %v419
    %963 = vmatpush.msra.mxu0 %v415
    %964 = vmatpush.msra.mxu0 %v411
    %965 = vmatpush.msra.mxu0 %v407
    %966 = vmatmul.f32.gmra.mxu0 %v943
    %v967 = vpop.f32.mrf.mxu0
    %v968 = vadd.f32 0.0, %v967
    %969 = vdwg.mxu0
    %970 = vmatpush.msra.mxu0 %v468
    %971 = vmatpush.msra.mxu0 %v464
    %972 = vmatpush.msra.mxu0 %v460
    %973 = vmatpush.msra.mxu0 %v456
    %974 = vmatpush.msra.mxu0 %v452
    %975 = vmatpush.msra.mxu0 %v448
    %976 = vmatpush.msra.mxu0 %v444
    %977 = vmatpush.msra.mxu0 %v440
    %978 = vmatpush.msra.mxu0 %v436
    %979 = vmatpush.msra.mxu0 %v432
    %980 = vmatpush.msra.mxu0 %v428
    %981 = vmatpush.msra.mxu0 %v424
    %982 = vmatpush.msra.mxu0 %v420
    %983 = vmatpush.msra.mxu0 %v416
    %984 = vmatpush.msra.mxu0 %v412
    %985 = vmatpush.msra.mxu0 %v408
    %986 = vmatmul.f32.gmra.mxu0 %v943
    %v987 = vpop.f32.mrf.mxu0
    %v988 = vadd.f32 0.0, %v987
    %989 = vdwg.mxu0
    %990 = vmatpush.msra.mxu0 %v469
    %991 = vmatpush.msra.mxu0 %v465
    %992 = vmatpush.msra.mxu0 %v461
    %993 = vmatpush.msra.mxu0 %v457
    %994 = vmatpush.msra.mxu0 %v453
    %995 = vmatpush.msra.mxu0 %v449
    %996 = vmatpush.msra.mxu0 %v445
    %997 = vmatpush.msra.mxu0 %v441
    %998 = vmatpush.msra.mxu0 %v437
    %999 = vmatpush.msra.mxu0 %v433
    %1000 = vmatpush.msra.mxu0 %v429
    %1001 = vmatpush.msra.mxu0 %v425
    %1002 = vmatpush.msra.mxu0 %v421
    %1003 = vmatpush.msra.mxu0 %v417
    %1004 = vmatpush.msra.mxu0 %v413
    %1005 = vmatpush.msra.mxu0 %v409
    %1006 = vmatmul.f32.gmra.mxu0 %v943
    %v1007 = vpop.f32.mrf.mxu0
    %v1008 = vadd.f32 0.0, %v1007
    %1009 = vdwg.mxu0
    %1010 = vmatpush.msra.mxu0 %v470
    %1011 = vmatpush.msra.mxu0 %v466
    %1012 = vmatpush.msra.mxu0 %v462
    %1013 = vmatpush.msra.mxu0 %v458
    %1014 = vmatpush.msra.mxu0 %v454
    %1015 = vmatpush.msra.mxu0 %v450
    %1016 = vmatpush.msra.mxu0 %v446
    %1017 = vmatpush.msra.mxu0 %v442
    %1018 = vmatpush.msra.mxu0 %v438
    %1019 = vmatpush.msra.mxu0 %v434
    %1020 = vmatpush.msra.mxu0 %v430
    %1021 = vmatpush.msra.mxu0 %v426
    %1022 = vmatpush.msra.mxu0 %v422
    %1023 = vmatpush.msra.mxu0 %v418
    %1024 = vmatpush.msra.mxu0 %v414
    %1025 = vmatpush.msra.mxu0 %v410
    %1026 = vmatmul.f32.gmra.mxu0 %v943
    %v1027 = vpop.f32.mrf.mxu0
    %v1028 = vadd.f32 0.0, %v1027
    %1029 = vdwg.mxu0
    %v1030 = vadd.f32 %v946, %v968
    %v1031 = vadd.f32 %v947, %v988
    %v1032 = vadd.f32 %v948, %v1008
    %v1033 = vadd.f32 %v949, %v1028
    %v1034 = vxor.u32 %v1030, 2147483648
    %v1035 = vmul.f32 %v1034, 1.442695
    %v1036 = vpow.pop %v1035
    %v1037 = vadd.f32 %v1036, 1.0
    %v1038 = vrcp.pop %v1037
    %v1039 = vmul.f32 %v1037, %v1038
    %v1040 = vsub.f32 1.0, %v1039
    %v1041 = vmul.f32 %v1038, %v1040
    %v1042 = vadd.f32 %v1038, %v1041
    %vm1043 = vweird.f32 %v1037
    %vm1044 = vweird.f32 %v1038
    %vm1045 = vmor %vm1043, %vm1044
    %v1046 = vsel %vm1045, %v1038, %v1042
    %v1047 = vand.u32 2147483647, %v1037
    %vm1048 = vcmp.eq.f32.partialorder %v1047, 8.507059e+37
    %v1049 = vand.u32 %v1037, 2147483648
    %v1050 = vor.u32 1.1754944e-38, %v1049
    %v1051 = vsel %vm1048, %v1050, %v1046
    %v1052 = vmul.f32 1.0, %v1051
    %v1053 = vxor.u32 %v1031, 2147483648
    %v1054 = vmul.f32 %v1053, 1.442695
    %v1055 = vpow.pop %v1054
    %v1056 = vadd.f32 %v1055, 1.0
    %v1057 = vrcp.pop %v1056
    %v1058 = vmul.f32 %v1056, %v1057
    %v1059 = vsub.f32 1.0, %v1058
    %v1060 = vmul.f32 %v1057, %v1059
    %v1061 = vadd.f32 %v1057, %v1060
    %vm1062 = vweird.f32 %v1056
    %vm1063 = vweird.f32 %v1057
    %vm1064 = vmor %vm1062, %vm1063
    %v1065 = vsel %vm1064, %v1057, %v1061
    %v1066 = vand.u32 2147483647, %v1056
    %vm1067 = vcmp.eq.f32.partialorder %v1066, 8.507059e+37
    %v1068 = vand.u32 %v1056, 2147483648
    %v1069 = vor.u32 1.1754944e-38, %v1068
    %v1070 = vsel %vm1067, %v1069, %v1065
    %v1071 = vmul.f32 1.0, %v1070
    %v1072 = vtanh.pop %v1032
    %v1073 = vxor.u32 %v1033, 2147483648
    %v1074 = vmul.f32 %v1073, 1.442695
    %v1075 = vpow.pop %v1074
    %v1076 = vadd.f32 %v1075, 1.0
    %v1077 = vrcp.pop %v1076
    %v1078 = vmul.f32 %v1076, %v1077
    %v1079 = vsub.f32 1.0, %v1078
    %v1080 = vmul.f32 %v1077, %v1079
    %v1081 = vadd.f32 %v1077, %v1080
    %vm1082 = vweird.f32 %v1076
    %vm1083 = vweird.f32 %v1077
    %vm1084 = vmor %vm1082, %vm1083
    %v1085 = vsel %vm1084, %v1077, %v1081
    %v1086 = vand.u32 2147483647, %v1076
    %vm1087 = vcmp.eq.f32.partialorder %v1086, 8.507059e+37
    %v1088 = vand.u32 %v1076, 2147483648
    %v1089 = vor.u32 1.1754944e-38, %v1088
    %v1090 = vsel %vm1087, %v1089, %v1085
    %v1091 = vmul.f32 1.0, %v1090
    %v1092 = vmul.f32 %v1071, %v944
    %v1093 = vmul.f32 %v1052, %v1072
    %v1094 = vadd.f32 %v1092, %v1093
    %v1095 = vtanh.pop %v1094
    %v1096 = vmul.f32 %v1091, %v1095
    %1097 = vst [vmem:[#allocation3] sm:$0xff] %v1094
    %1098 = vst [vmem:[#allocation2] sm:$0xff] %v1096
    %s1099 = scalar_lea.vmem [#allocation5], 24
    %1100 = vst [vmem:[%s1099] sm:$0xff] %v1096
    %v1101 = vld [vmem:[#allocation2] sm:$0xff]
    %v1102 = vld [vmem:[#allocation3] sm:$0xff]
    %s1103 = scalar_lea.vmem [#allocation4], 128
    %v1104 = vld [vmem:[%s1103] sm:$0xff]
    %v1105 = vld [vmem:[%s1103 + $0x8] sm:$0xff]
    %v1106 = vld [vmem:[%s1103 + $0x10] sm:$0xff]
    %v1107 = vld [vmem:[%s1103 + $0x18] sm:$0xff]
    %1108 = vmatpush.msra.mxu0 %v467
    %1109 = vmatpush.msra.mxu0 %v463
    %1110 = vmatpush.msra.mxu0 %v459
    %1111 = vmatpush.msra.mxu0 %v455
    %1112 = vmatpush.msra.mxu0 %v451
    %1113 = vmatpush.msra.mxu0 %v447
    %1114 = vmatpush.msra.mxu0 %v443
    %1115 = vmatpush.msra.mxu0 %v439
    %1116 = vmatpush.msra.mxu0 %v435
    %1117 = vmatpush.msra.mxu0 %v431
    %1118 = vmatpush.msra.mxu0 %v427
    %1119 = vmatpush.msra.mxu0 %v423
    %1120 = vmatpush.msra.mxu0 %v419
    %1121 = vmatpush.msra.mxu0 %v415
    %1122 = vmatpush.msra.mxu0 %v411
    %1123 = vmatpush.msra.mxu0 %v407
    %1124 = vmatmul.f32.gmra.mxu0 %v1101
    %v1125 = vpop.f32.mrf.mxu0
    %v1126 = vadd.f32 0.0, %v1125
    %1127 = vdwg.mxu0
    %1128 = vmatpush.msra.mxu0 %v468
    %1129 = vmatpush.msra.mxu0 %v464
    %1130 = vmatpush.msra.mxu0 %v460
    %1131 = vmatpush.msra.mxu0 %v456
    %1132 = vmatpush.msra.mxu0 %v452
    %1133 = vmatpush.msra.mxu0 %v448
    %1134 = vmatpush.msra.mxu0 %v444
    %1135 = vmatpush.msra.mxu0 %v440
    %1136 = vmatpush.msra.mxu0 %v436
    %1137 = vmatpush.msra.mxu0 %v432
    %1138 = vmatpush.msra.mxu0 %v428
    %1139 = vmatpush.msra.mxu0 %v424
    %1140 = vmatpush.msra.mxu0 %v420
    %1141 = vmatpush.msra.mxu0 %v416
    %1142 = vmatpush.msra.mxu0 %v412
    %1143 = vmatpush.msra.mxu0 %v408
    %1144 = vmatmul.f32.gmra.mxu0 %v1101
    %v1145 = vpop.f32.mrf.mxu0
    %v1146 = vadd.f32 0.0, %v1145
    %1147 = vdwg.mxu0
    %1148 = vmatpush.msra.mxu0 %v469
    %1149 = vmatpush.msra.mxu0 %v465
    %1150 = vmatpush.msra.mxu0 %v461
    %1151 = vmatpush.msra.mxu0 %v457
    %1152 = vmatpush.msra.mxu0 %v453
    %1153 = vmatpush.msra.mxu0 %v449
    %1154 = vmatpush.msra.mxu0 %v445
    %1155 = vmatpush.msra.mxu0 %v441
    %1156 = vmatpush.msra.mxu0 %v437
    %1157 = vmatpush.msra.mxu0 %v433
    %1158 = vmatpush.msra.mxu0 %v429
    %1159 = vmatpush.msra.mxu0 %v425
    %1160 = vmatpush.msra.mxu0 %v421
    %1161 = vmatpush.msra.mxu0 %v417
    %1162 = vmatpush.msra.mxu0 %v413
    %1163 = vmatpush.msra.mxu0 %v409
    %1164 = vmatmul.f32.gmra.mxu0 %v1101
    %v1165 = vpop.f32.mrf.mxu0
    %v1166 = vadd.f32 0.0, %v1165
    %1167 = vdwg.mxu0
    %1168 = vmatpush.msra.mxu0 %v470
    %1169 = vmatpush.msra.mxu0 %v466
    %1170 = vmatpush.msra.mxu0 %v462
    %1171 = vmatpush.msra.mxu0 %v458
    %1172 = vmatpush.msra.mxu0 %v454
    %1173 = vmatpush.msra.mxu0 %v450
    %1174 = vmatpush.msra.mxu0 %v446
    %1175 = vmatpush.msra.mxu0 %v442
    %1176 = vmatpush.msra.mxu0 %v438
    %1177 = vmatpush.msra.mxu0 %v434
    %1178 = vmatpush.msra.mxu0 %v430
    %1179 = vmatpush.msra.mxu0 %v426
    %1180 = vmatpush.msra.mxu0 %v422
    %1181 = vmatpush.msra.mxu0 %v418
    %1182 = vmatpush.msra.mxu0 %v414
    %1183 = vmatpush.msra.mxu0 %v410
    %1184 = vmatmul.f32.gmra.mxu0 %v1101
    %v1185 = vpop.f32.mrf.mxu0
    %v1186 = vadd.f32 0.0, %v1185
    %1187 = vdwg.mxu0
    %v1188 = vadd.f32 %v1104, %v1126
    %v1189 = vadd.f32 %v1105, %v1146
    %v1190 = vadd.f32 %v1106, %v1166
    %v1191 = vadd.f32 %v1107, %v1186
    %v1192 = vxor.u32 %v1188, 2147483648
    %v1193 = vmul.f32 %v1192, 1.442695
    %v1194 = vpow.pop %v1193
    %v1195 = vadd.f32 %v1194, 1.0
    %v1196 = vrcp.pop %v1195
    %v1197 = vmul.f32 %v1195, %v1196
    %v1198 = vsub.f32 1.0, %v1197
    %v1199 = vmul.f32 %v1196, %v1198
    %v1200 = vadd.f32 %v1196, %v1199
    %vm1201 = vweird.f32 %v1195
    %vm1202 = vweird.f32 %v1196
    %vm1203 = vmor %vm1201, %vm1202
    %v1204 = vsel %vm1203, %v1196, %v1200
    %v1205 = vand.u32 2147483647, %v1195
    %vm1206 = vcmp.eq.f32.partialorder %v1205, 8.507059e+37
    %v1207 = vand.u32 %v1195, 2147483648
    %v1208 = vor.u32 1.1754944e-38, %v1207
    %v1209 = vsel %vm1206, %v1208, %v1204
    %v1210 = vmul.f32 1.0, %v1209
    %v1211 = vxor.u32 %v1189, 2147483648
    %v1212 = vmul.f32 %v1211, 1.442695
    %v1213 = vpow.pop %v1212
    %v1214 = vadd.f32 %v1213, 1.0
    %v1215 = vrcp.pop %v1214
    %v1216 = vmul.f32 %v1214, %v1215
    %v1217 = vsub.f32 1.0, %v1216
    %v1218 = vmul.f32 %v1215, %v1217
    %v1219 = vadd.f32 %v1215, %v1218
    %vm1220 = vweird.f32 %v1214
    %vm1221 = vweird.f32 %v1215
    %vm1222 = vmor %vm1220, %vm1221
    %v1223 = vsel %vm1222, %v1215, %v1219
    %v1224 = vand.u32 2147483647, %v1214
    %vm1225 = vcmp.eq.f32.partialorder %v1224, 8.507059e+37
    %v1226 = vand.u32 %v1214, 2147483648
    %v1227 = vor.u32 1.1754944e-38, %v1226
    %v1228 = vsel %vm1225, %v1227, %v1223
    %v1229 = vmul.f32 1.0, %v1228
    %v1230 = vtanh.pop %v1190
    %v1231 = vxor.u32 %v1191, 2147483648
    %v1232 = vmul.f32 %v1231, 1.442695
    %v1233 = vpow.pop %v1232
    %v1234 = vadd.f32 %v1233, 1.0
    %v1235 = vrcp.pop %v1234
    %v1236 = vmul.f32 %v1234, %v1235
    %v1237 = vsub.f32 1.0, %v1236
    %v1238 = vmul.f32 %v1235, %v1237
    %v1239 = vadd.f32 %v1235, %v1238
    %vm1240 = vweird.f32 %v1234
    %vm1241 = vweird.f32 %v1235
    %vm1242 = vmor %vm1240, %vm1241
    %v1243 = vsel %vm1242, %v1235, %v1239
    %v1244 = vand.u32 2147483647, %v1234
    %vm1245 = vcmp.eq.f32.partialorder %v1244, 8.507059e+37
    %v1246 = vand.u32 %v1234, 2147483648
    %v1247 = vor.u32 1.1754944e-38, %v1246
    %v1248 = vsel %vm1245, %v1247, %v1243
    %v1249 = vmul.f32 1.0, %v1248
    %v1250 = vmul.f32 %v1229, %v1102
    %v1251 = vmul.f32 %v1210, %v1230
    %v1252 = vadd.f32 %v1250, %v1251
    %v1253 = vtanh.pop %v1252
    %v1254 = vmul.f32 %v1249, %v1253
    %1255 = vst [vmem:[#allocation3] sm:$0xff] %v1252
    %1256 = vst [vmem:[#allocation2] sm:$0xff] %v1254
    %s1257 = scalar_lea.vmem [#allocation5], 32
    %1258 = vst [vmem:[%s1257] sm:$0xff] %v1254
    %v1259 = vld [vmem:[#allocation2] sm:$0xff]
    %v1260 = vld [vmem:[#allocation3] sm:$0xff]
    %s1261 = scalar_lea.vmem [#allocation4], 160
    %v1262 = vld [vmem:[%s1261] sm:$0xff]
    %v1263 = vld [vmem:[%s1261 + $0x8] sm:$0xff]
    %v1264 = vld [vmem:[%s1261 + $0x10] sm:$0xff]
    %v1265 = vld [vmem:[%s1261 + $0x18] sm:$0xff]
    %1266 = vmatpush.msra.mxu0 %v467
    %1267 = vmatpush.msra.mxu0 %v463
    %1268 = vmatpush.msra.mxu0 %v459
    %1269 = vmatpush.msra.mxu0 %v455
    %1270 = vmatpush.msra.mxu0 %v451
    %1271 = vmatpush.msra.mxu0 %v447
    %1272 = vmatpush.msra.mxu0 %v443
    %1273 = vmatpush.msra.mxu0 %v439
    %1274 = vmatpush.msra.mxu0 %v435
    %1275 = vmatpush.msra.mxu0 %v431
    %1276 = vmatpush.msra.mxu0 %v427
    %1277 = vmatpush.msra.mxu0 %v423
    %1278 = vmatpush.msra.mxu0 %v419
    %1279 = vmatpush.msra.mxu0 %v415
    %1280 = vmatpush.msra.mxu0 %v411
    %1281 = vmatpush.msra.mxu0 %v407
    %1282 = vmatmul.f32.gmra.mxu0 %v1259
    %v1283 = vpop.f32.mrf.mxu0
    %v1284 = vadd.f32 0.0, %v1283
    %1285 = vdwg.mxu0
    %1286 = vmatpush.msra.mxu0 %v468
    %1287 = vmatpush.msra.mxu0 %v464
    %1288 = vmatpush.msra.mxu0 %v460
    %1289 = vmatpush.msra.mxu0 %v456
    %1290 = vmatpush.msra.mxu0 %v452
    %1291 = vmatpush.msra.mxu0 %v448
    %1292 = vmatpush.msra.mxu0 %v444
    %1293 = vmatpush.msra.mxu0 %v440
    %1294 = vmatpush.msra.mxu0 %v436
    %1295 = vmatpush.msra.mxu0 %v432
    %1296 = vmatpush.msra.mxu0 %v428
    %1297 = vmatpush.msra.mxu0 %v424
    %1298 = vmatpush.msra.mxu0 %v420
    %1299 = vmatpush.msra.mxu0 %v416
    %1300 = vmatpush.msra.mxu0 %v412
    %1301 = vmatpush.msra.mxu0 %v408
    %1302 = vmatmul.f32.gmra.mxu0 %v1259
    %v1303 = vpop.f32.mrf.mxu0
    %v1304 = vadd.f32 0.0, %v1303
    %1305 = vdwg.mxu0
    %1306 = vmatpush.msra.mxu0 %v469
    %1307 = vmatpush.msra.mxu0 %v465
    %1308 = vmatpush.msra.mxu0 %v461
    %1309 = vmatpush.msra.mxu0 %v457
    %1310 = vmatpush.msra.mxu0 %v453
    %1311 = vmatpush.msra.mxu0 %v449
    %1312 = vmatpush.msra.mxu0 %v445
    %1313 = vmatpush.msra.mxu0 %v441
    %1314 = vmatpush.msra.mxu0 %v437
    %1315 = vmatpush.msra.mxu0 %v433
    %1316 = vmatpush.msra.mxu0 %v429
    %1317 = vmatpush.msra.mxu0 %v425
    %1318 = vmatpush.msra.mxu0 %v421
    %1319 = vmatpush.msra.mxu0 %v417
    %1320 = vmatpush.msra.mxu0 %v413
    %1321 = vmatpush.msra.mxu0 %v409
    %1322 = vmatmul.f32.gmra.mxu0 %v1259
    %v1323 = vpop.f32.mrf.mxu0
    %v1324 = vadd.f32 0.0, %v1323
    %1325 = vdwg.mxu0
    %1326 = vmatpush.msra.mxu0 %v470
    %1327 = vmatpush.msra.mxu0 %v466
    %1328 = vmatpush.msra.mxu0 %v462
    %1329 = vmatpush.msra.mxu0 %v458
    %1330 = vmatpush.msra.mxu0 %v454
    %1331 = vmatpush.msra.mxu0 %v450
    %1332 = vmatpush.msra.mxu0 %v446
    %1333 = vmatpush.msra.mxu0 %v442
    %1334 = vmatpush.msra.mxu0 %v438
    %1335 = vmatpush.msra.mxu0 %v434
    %1336 = vmatpush.msra.mxu0 %v430
    %1337 = vmatpush.msra.mxu0 %v426
    %1338 = vmatpush.msra.mxu0 %v422
    %1339 = vmatpush.msra.mxu0 %v418
    %1340 = vmatpush.msra.mxu0 %v414
    %1341 = vmatpush.msra.mxu0 %v410
    %1342 = vmatmul.f32.gmra.mxu0 %v1259
    %v1343 = vpop.f32.mrf.mxu0
    %v1344 = vadd.f32 0.0, %v1343
    %1345 = vdwg.mxu0
    %v1346 = vadd.f32 %v1262, %v1284
    %v1347 = vadd.f32 %v1263, %v1304
    %v1348 = vadd.f32 %v1264, %v1324
    %v1349 = vadd.f32 %v1265, %v1344
    %v1350 = vxor.u32 %v1346, 2147483648
    %v1351 = vmul.f32 %v1350, 1.442695
    %v1352 = vpow.pop %v1351
    %v1353 = vadd.f32 %v1352, 1.0
    %v1354 = vrcp.pop %v1353
    %v1355 = vmul.f32 %v1353, %v1354
    %v1356 = vsub.f32 1.0, %v1355
    %v1357 = vmul.f32 %v1354, %v1356
    %v1358 = vadd.f32 %v1354, %v1357
    %vm1359 = vweird.f32 %v1353
    %vm1360 = vweird.f32 %v1354
    %vm1361 = vmor %vm1359, %vm1360
    %v1362 = vsel %vm1361, %v1354, %v1358
    %v1363 = vand.u32 2147483647, %v1353
    %vm1364 = vcmp.eq.f32.partialorder %v1363, 8.507059e+37
    %v1365 = vand.u32 %v1353, 2147483648
    %v1366 = vor.u32 1.1754944e-38, %v1365
    %v1367 = vsel %vm1364, %v1366, %v1362
    %v1368 = vmul.f32 1.0, %v1367
    %v1369 = vxor.u32 %v1347, 2147483648
    %v1370 = vmul.f32 %v1369, 1.442695
    %v1371 = vpow.pop %v1370
    %v1372 = vadd.f32 %v1371, 1.0
    %v1373 = vrcp.pop %v1372
    %v1374 = vmul.f32 %v1372, %v1373
    %v1375 = vsub.f32 1.0, %v1374
    %v1376 = vmul.f32 %v1373, %v1375
    %v1377 = vadd.f32 %v1373, %v1376
    %vm1378 = vweird.f32 %v1372
    %vm1379 = vweird.f32 %v1373
    %vm1380 = vmor %vm1378, %vm1379
    %v1381 = vsel %vm1380, %v1373, %v1377
    %v1382 = vand.u32 2147483647, %v1372
    %vm1383 = vcmp.eq.f32.partialorder %v1382, 8.507059e+37
    %v1384 = vand.u32 %v1372, 2147483648
    %v1385 = vor.u32 1.1754944e-38, %v1384
    %v1386 = vsel %vm1383, %v1385, %v1381
    %v1387 = vmul.f32 1.0, %v1386
    %v1388 = vtanh.pop %v1348
    %v1389 = vxor.u32 %v1349, 2147483648
    %v1390 = vmul.f32 %v1389, 1.442695
    %v1391 = vpow.pop %v1390
    %v1392 = vadd.f32 %v1391, 1.0
    %v1393 = vrcp.pop %v1392
    %v1394 = vmul.f32 %v1392, %v1393
    %v1395 = vsub.f32 1.0, %v1394
    %v1396 = vmul.f32 %v1393, %v1395
    %v1397 = vadd.f32 %v1393, %v1396
    %vm1398 = vweird.f32 %v1392
    %vm1399 = vweird.f32 %v1393
    %vm1400 = vmor %vm1398, %vm1399
    %v1401 = vsel %vm1400, %v1393, %v1397
    %v1402 = vand.u32 2147483647, %v1392
    %vm1403 = vcmp.eq.f32.partialorder %v1402, 8.507059e+37
    %v1404 = vand.u32 %v1392, 2147483648
    %v1405 = vor.u32 1.1754944e-38, %v1404
    %v1406 = vsel %vm1403, %v1405, %v1401
    %v1407 = vmul.f32 1.0, %v1406
    %v1408 = vmul.f32 %v1387, %v1260
    %v1409 = vmul.f32 %v1368, %v1388
    %v1410 = vadd.f32 %v1408, %v1409
    %v1411 = vtanh.pop %v1410
    %v1412 = vmul.f32 %v1407, %v1411
    %1413 = vst [vmem:[#allocation3] sm:$0xff] %v1410
    %1414 = vst [vmem:[#allocation2] sm:$0xff] %v1412
    %s1415 = scalar_lea.vmem [#allocation5], 40
    %1416 = vst [vmem:[%s1415] sm:$0xff] %v1412
    %v1417 = vld [vmem:[#allocation2] sm:$0xff]
    %v1418 = vld [vmem:[#allocation3] sm:$0xff]
    %s1419 = scalar_lea.vmem [#allocation4], 192
    %v1420 = vld [vmem:[%s1419] sm:$0xff]
    %v1421 = vld [vmem:[%s1419 + $0x8] sm:$0xff]
    %v1422 = vld [vmem:[%s1419 + $0x10] sm:$0xff]
    %v1423 = vld [vmem:[%s1419 + $0x18] sm:$0xff]
    %1424 = vmatpush.msra.mxu0 %v467
    %1425 = vmatpush.msra.mxu0 %v463
    %1426 = vmatpush.msra.mxu0 %v459
    %1427 = vmatpush.msra.mxu0 %v455
    %1428 = vmatpush.msra.mxu0 %v451
    %1429 = vmatpush.msra.mxu0 %v447
    %1430 = vmatpush.msra.mxu0 %v443
    %1431 = vmatpush.msra.mxu0 %v439
    %1432 = vmatpush.msra.mxu0 %v435
    %1433 = vmatpush.msra.mxu0 %v431
    %1434 = vmatpush.msra.mxu0 %v427
    %1435 = vmatpush.msra.mxu0 %v423
    %1436 = vmatpush.msra.mxu0 %v419
    %1437 = vmatpush.msra.mxu0 %v415
    %1438 = vmatpush.msra.mxu0 %v411
    %1439 = vmatpush.msra.mxu0 %v407
    %1440 = vmatmul.f32.gmra.mxu0 %v1417
    %v1441 = vpop.f32.mrf.mxu0
    %v1442 = vadd.f32 0.0, %v1441
    %1443 = vdwg.mxu0
    %1444 = vmatpush.msra.mxu0 %v468
    %1445 = vmatpush.msra.mxu0 %v464
    %1446 = vmatpush.msra.mxu0 %v460
    %1447 = vmatpush.msra.mxu0 %v456
    %1448 = vmatpush.msra.mxu0 %v452
    %1449 = vmatpush.msra.mxu0 %v448
    %1450 = vmatpush.msra.mxu0 %v444
    %1451 = vmatpush.msra.mxu0 %v440
    %1452 = vmatpush.msra.mxu0 %v436
    %1453 = vmatpush.msra.mxu0 %v432
    %1454 = vmatpush.msra.mxu0 %v428
    %1455 = vmatpush.msra.mxu0 %v424
    %1456 = vmatpush.msra.mxu0 %v420
    %1457 = vmatpush.msra.mxu0 %v416
    %1458 = vmatpush.msra.mxu0 %v412
    %1459 = vmatpush.msra.mxu0 %v408
    %1460 = vmatmul.f32.gmra.mxu0 %v1417
    %v1461 = vpop.f32.mrf.mxu0
    %v1462 = vadd.f32 0.0, %v1461
    %1463 = vdwg.mxu0
    %1464 = vmatpush.msra.mxu0 %v469
    %1465 = vmatpush.msra.mxu0 %v465
    %1466 = vmatpush.msra.mxu0 %v461
    %1467 = vmatpush.msra.mxu0 %v457
    %1468 = vmatpush.msra.mxu0 %v453
    %1469 = vmatpush.msra.mxu0 %v449
    %1470 = vmatpush.msra.mxu0 %v445
    %1471 = vmatpush.msra.mxu0 %v441
    %1472 = vmatpush.msra.mxu0 %v437
    %1473 = vmatpush.msra.mxu0 %v433
    %1474 = vmatpush.msra.mxu0 %v429
    %1475 = vmatpush.msra.mxu0 %v425
    %1476 = vmatpush.msra.mxu0 %v421
    %1477 = vmatpush.msra.mxu0 %v417
    %1478 = vmatpush.msra.mxu0 %v413
    %1479 = vmatpush.msra.mxu0 %v409
    %1480 = vmatmul.f32.gmra.mxu0 %v1417
    %v1481 = vpop.f32.mrf.mxu0
    %v1482 = vadd.f32 0.0, %v1481
    %1483 = vdwg.mxu0
    %1484 = vmatpush.msra.mxu0 %v470
    %1485 = vmatpush.msra.mxu0 %v466
    %1486 = vmatpush.msra.mxu0 %v462
    %1487 = vmatpush.msra.mxu0 %v458
    %1488 = vmatpush.msra.mxu0 %v454
    %1489 = vmatpush.msra.mxu0 %v450
    %1490 = vmatpush.msra.mxu0 %v446
    %1491 = vmatpush.msra.mxu0 %v442
    %1492 = vmatpush.msra.mxu0 %v438
    %1493 = vmatpush.msra.mxu0 %v434
    %1494 = vmatpush.msra.mxu0 %v430
    %1495 = vmatpush.msra.mxu0 %v426
    %1496 = vmatpush.msra.mxu0 %v422
    %1497 = vmatpush.msra.mxu0 %v418
    %1498 = vmatpush.msra.mxu0 %v414
    %1499 = vmatpush.msra.mxu0 %v410
    %1500 = vmatmul.f32.gmra.mxu0 %v1417
    %v1501 = vpop.f32.mrf.mxu0
    %v1502 = vadd.f32 0.0, %v1501
    %1503 = vdwg.mxu0
    %v1504 = vadd.f32 %v1420, %v1442
    %v1505 = vadd.f32 %v1421, %v1462
    %v1506 = vadd.f32 %v1422, %v1482
    %v1507 = vadd.f32 %v1423, %v1502
    %v1508 = vxor.u32 %v1504, 2147483648
    %v1509 = vmul.f32 %v1508, 1.442695
    %v1510 = vpow.pop %v1509
    %v1511 = vadd.f32 %v1510, 1.0
    %v1512 = vrcp.pop %v1511
    %v1513 = vmul.f32 %v1511, %v1512
    %v1514 = vsub.f32 1.0, %v1513
    %v1515 = vmul.f32 %v1512, %v1514
    %v1516 = vadd.f32 %v1512, %v1515
    %vm1517 = vweird.f32 %v1511
    %vm1518 = vweird.f32 %v1512
    %vm1519 = vmor %vm1517, %vm1518
    %v1520 = vsel %vm1519, %v1512, %v1516
    %v1521 = vand.u32 2147483647, %v1511
    %vm1522 = vcmp.eq.f32.partialorder %v1521, 8.507059e+37
    %v1523 = vand.u32 %v1511, 2147483648
    %v1524 = vor.u32 1.1754944e-38, %v1523
    %v1525 = vsel %vm1522, %v1524, %v1520
    %v1526 = vmul.f32 1.0, %v1525
    %v1527 = vxor.u32 %v1505, 2147483648
    %v1528 = vmul.f32 %v1527, 1.442695
    %v1529 = vpow.pop %v1528
    %v1530 = vadd.f32 %v1529, 1.0
    %v1531 = vrcp.pop %v1530
    %v1532 = vmul.f32 %v1530, %v1531
    %v1533 = vsub.f32 1.0, %v1532
    %v1534 = vmul.f32 %v1531, %v1533
    %v1535 = vadd.f32 %v1531, %v1534
    %vm1536 = vweird.f32 %v1530
    %vm1537 = vweird.f32 %v1531
    %vm1538 = vmor %vm1536, %vm1537
    %v1539 = vsel %vm1538, %v1531, %v1535
    %v1540 = vand.u32 2147483647, %v1530
    %vm1541 = vcmp.eq.f32.partialorder %v1540, 8.507059e+37
    %v1542 = vand.u32 %v1530, 2147483648
    %v1543 = vor.u32 1.1754944e-38, %v1542
    %v1544 = vsel %vm1541, %v1543, %v1539
    %v1545 = vmul.f32 1.0, %v1544
    %v1546 = vtanh.pop %v1506
    %v1547 = vxor.u32 %v1507, 2147483648
    %v1548 = vmul.f32 %v1547, 1.442695
    %v1549 = vpow.pop %v1548
    %v1550 = vadd.f32 %v1549, 1.0
    %v1551 = vrcp.pop %v1550
    %v1552 = vmul.f32 %v1550, %v1551
    %v1553 = vsub.f32 1.0, %v1552
    %v1554 = vmul.f32 %v1551, %v1553
    %v1555 = vadd.f32 %v1551, %v1554
    %vm1556 = vweird.f32 %v1550
    %vm1557 = vweird.f32 %v1551
    %vm1558 = vmor %vm1556, %vm1557
    %v1559 = vsel %vm1558, %v1551, %v1555
    %v1560 = vand.u32 2147483647, %v1550
    %vm1561 = vcmp.eq.f32.partialorder %v1560, 8.507059e+37
    %v1562 = vand.u32 %v1550, 2147483648
    %v1563 = vor.u32 1.1754944e-38, %v1562
    %v1564 = vsel %vm1561, %v1563, %v1559
    %v1565 = vmul.f32 1.0, %v1564
    %v1566 = vmul.f32 %v1545, %v1418
    %v1567 = vmul.f32 %v1526, %v1546
    %v1568 = vadd.f32 %v1566, %v1567
    %v1569 = vtanh.pop %v1568
    %v1570 = vmul.f32 %v1565, %v1569
    %1571 = vst [vmem:[#allocation3] sm:$0xff] %v1568
    %1572 = vst [vmem:[#allocation2] sm:$0xff] %v1570
    %s1573 = scalar_lea.vmem [#allocation5], 48
    %1574 = vst [vmem:[%s1573] sm:$0xff] %v1570
    %v1575 = vld [vmem:[#allocation2] sm:$0xff]
    %v1576 = vld [vmem:[#allocation3] sm:$0xff]
    %s1577 = scalar_lea.vmem [#allocation4], 224
    %v1578 = vld [vmem:[%s1577] sm:$0xff]
    %v1579 = vld [vmem:[%s1577 + $0x8] sm:$0xff]
    %v1580 = vld [vmem:[%s1577 + $0x10] sm:$0xff]
    %v1581 = vld [vmem:[%s1577 + $0x18] sm:$0xff]
    %1582 = vmatpush.msra.mxu0 %v467
    %1583 = vmatpush.msra.mxu0 %v463
    %1584 = vmatpush.msra.mxu0 %v459
    %1585 = vmatpush.msra.mxu0 %v455
    %1586 = vmatpush.msra.mxu0 %v451
    %1587 = vmatpush.msra.mxu0 %v447
    %1588 = vmatpush.msra.mxu0 %v443
    %1589 = vmatpush.msra.mxu0 %v439
    %1590 = vmatpush.msra.mxu0 %v435
    %1591 = vmatpush.msra.mxu0 %v431
    %1592 = vmatpush.msra.mxu0 %v427
    %1593 = vmatpush.msra.mxu0 %v423
    %1594 = vmatpush.msra.mxu0 %v419
    %1595 = vmatpush.msra.mxu0 %v415
    %1596 = vmatpush.msra.mxu0 %v411
    %1597 = vmatpush.msra.mxu0 %v407
    %1598 = vmatmul.f32.gmra.mxu0 %v1575
    %v1599 = vpop.f32.mrf.mxu0
    %v1600 = vadd.f32 0.0, %v1599
    %1601 = vdwg.mxu0
    %1602 = vmatpush.msra.mxu0 %v468
    %1603 = vmatpush.msra.mxu0 %v464
    %1604 = vmatpush.msra.mxu0 %v460
    %1605 = vmatpush.msra.mxu0 %v456
    %1606 = vmatpush.msra.mxu0 %v452
    %1607 = vmatpush.msra.mxu0 %v448
    %1608 = vmatpush.msra.mxu0 %v444
    %1609 = vmatpush.msra.mxu0 %v440
    %1610 = vmatpush.msra.mxu0 %v436
    %1611 = vmatpush.msra.mxu0 %v432
    %1612 = vmatpush.msra.mxu0 %v428
    %1613 = vmatpush.msra.mxu0 %v424
    %1614 = vmatpush.msra.mxu0 %v420
    %1615 = vmatpush.msra.mxu0 %v416
    %1616 = vmatpush.msra.mxu0 %v412
    %1617 = vmatpush.msra.mxu0 %v408
    %1618 = vmatmul.f32.gmra.mxu0 %v1575
    %v1619 = vpop.f32.mrf.mxu0
    %v1620 = vadd.f32 0.0, %v1619
    %1621 = vdwg.mxu0
    %1622 = vmatpush.msra.mxu0 %v469
    %1623 = vmatpush.msra.mxu0 %v465
    %1624 = vmatpush.msra.mxu0 %v461
    %1625 = vmatpush.msra.mxu0 %v457
    %1626 = vmatpush.msra.mxu0 %v453
    %1627 = vmatpush.msra.mxu0 %v449
    %1628 = vmatpush.msra.mxu0 %v445
    %1629 = vmatpush.msra.mxu0 %v441
    %1630 = vmatpush.msra.mxu0 %v437
    %1631 = vmatpush.msra.mxu0 %v433
    %1632 = vmatpush.msra.mxu0 %v429
    %1633 = vmatpush.msra.mxu0 %v425
    %1634 = vmatpush.msra.mxu0 %v421
    %1635 = vmatpush.msra.mxu0 %v417
    %1636 = vmatpush.msra.mxu0 %v413
    %1637 = vmatpush.msra.mxu0 %v409
    %1638 = vmatmul.f32.gmra.mxu0 %v1575
    %v1639 = vpop.f32.mrf.mxu0
    %v1640 = vadd.f32 0.0, %v1639
    %1641 = vdwg.mxu0
    %1642 = vmatpush.msra.mxu0 %v470
    %1643 = vmatpush.msra.mxu0 %v466
    %1644 = vmatpush.msra.mxu0 %v462
    %1645 = vmatpush.msra.mxu0 %v458
    %1646 = vmatpush.msra.mxu0 %v454
    %1647 = vmatpush.msra.mxu0 %v450
    %1648 = vmatpush.msra.mxu0 %v446
    %1649 = vmatpush.msra.mxu0 %v442
    %1650 = vmatpush.msra.mxu0 %v438
    %1651 = vmatpush.msra.mxu0 %v434
    %1652 = vmatpush.msra.mxu0 %v430
    %1653 = vmatpush.msra.mxu0 %v426
    %1654 = vmatpush.msra.mxu0 %v422
    %1655 = vmatpush.msra.mxu0 %v418
    %1656 = vmatpush.msra.mxu0 %v414
    %1657 = vmatpush.msra.mxu0 %v410
    %1658 = vmatmul.f32.gmra.mxu0 %v1575
    %v1659 = vpop.f32.mrf.mxu0
    %v1660 = vadd.f32 0.0, %v1659
    %1661 = vdwg.mxu0
    %v1662 = vadd.f32 %v1578, %v1600
    %v1663 = vadd.f32 %v1579, %v1620
    %v1664 = vadd.f32 %v1580, %v1640
    %v1665 = vadd.f32 %v1581, %v1660
    %v1666 = vxor.u32 %v1662, 2147483648
    %v1667 = vmul.f32 %v1666, 1.442695
    %v1668 = vpow.pop %v1667
    %v1669 = vadd.f32 %v1668, 1.0
    %v1670 = vrcp.pop %v1669
    %v1671 = vmul.f32 %v1669, %v1670
    %v1672 = vsub.f32 1.0, %v1671
    %v1673 = vmul.f32 %v1670, %v1672
    %v1674 = vadd.f32 %v1670, %v1673
    %vm1675 = vweird.f32 %v1669
    %vm1676 = vweird.f32 %v1670
    %vm1677 = vmor %vm1675, %vm1676
    %v1678 = vsel %vm1677, %v1670, %v1674
    %v1679 = vand.u32 2147483647, %v1669
    %vm1680 = vcmp.eq.f32.partialorder %v1679, 8.507059e+37
    %v1681 = vand.u32 %v1669, 2147483648
    %v1682 = vor.u32 1.1754944e-38, %v1681
    %v1683 = vsel %vm1680, %v1682, %v1678
    %v1684 = vmul.f32 1.0, %v1683
    %v1685 = vxor.u32 %v1663, 2147483648
    %v1686 = vmul.f32 %v1685, 1.442695
    %v1687 = vpow.pop %v1686
    %v1688 = vadd.f32 %v1687, 1.0
    %v1689 = vrcp.pop %v1688
    %v1690 = vmul.f32 %v1688, %v1689
    %v1691 = vsub.f32 1.0, %v1690
    %v1692 = vmul.f32 %v1689, %v1691
    %v1693 = vadd.f32 %v1689, %v1692
    %vm1694 = vweird.f32 %v1688
    %vm1695 = vweird.f32 %v1689
    %vm1696 = vmor %vm1694, %vm1695
    %v1697 = vsel %vm1696, %v1689, %v1693
    %v1698 = vand.u32 2147483647, %v1688
    %vm1699 = vcmp.eq.f32.partialorder %v1698, 8.507059e+37
    %v1700 = vand.u32 %v1688, 2147483648
    %v1701 = vor.u32 1.1754944e-38, %v1700
    %v1702 = vsel %vm1699, %v1701, %v1697
    %v1703 = vmul.f32 1.0, %v1702
    %v1704 = vtanh.pop %v1664
    %v1705 = vxor.u32 %v1665, 2147483648
    %v1706 = vmul.f32 %v1705, 1.442695
    %v1707 = vpow.pop %v1706
    %v1708 = vadd.f32 %v1707, 1.0
    %v1709 = vrcp.pop %v1708
    %v1710 = vmul.f32 %v1708, %v1709
    %v1711 = vsub.f32 1.0, %v1710
    %v1712 = vmul.f32 %v1709, %v1711
    %v1713 = vadd.f32 %v1709, %v1712
    %vm1714 = vweird.f32 %v1708
    %vm1715 = vweird.f32 %v1709
    %vm1716 = vmor %vm1714, %vm1715
    %v1717 = vsel %vm1716, %v1709, %v1713
    %v1718 = vand.u32 2147483647, %v1708
    %vm1719 = vcmp.eq.f32.partialorder %v1718, 8.507059e+37
    %v1720 = vand.u32 %v1708, 2147483648
    %v1721 = vor.u32 1.1754944e-38, %v1720
    %v1722 = vsel %vm1719, %v1721, %v1717
    %v1723 = vmul.f32 1.0, %v1722
    %v1724 = vmul.f32 %v1703, %v1576
    %v1725 = vmul.f32 %v1684, %v1704
    %v1726 = vadd.f32 %v1724, %v1725
    %v1727 = vtanh.pop %v1726
    %v1728 = vmul.f32 %v1723, %v1727
    %1729 = vst [vmem:[#allocation3] sm:$0xff] %v1726
    %1730 = vst [vmem:[#allocation2] sm:$0xff] %v1728
    %s1731 = scalar_lea.vmem [#allocation5], 56
    %1732 = vst [vmem:[%s1731] sm:$0xff] %v1728
    %v1733 = vld [vmem:[#allocation5] sm:$0xff]
    %v1734 = vld [vmem:[#allocation5 + $0x8] sm:$0xff]
    %v1735 = vld [vmem:[#allocation5 + $0x10] sm:$0xff]
    %v1736 = vld [vmem:[#allocation5 + $0x18] sm:$0xff]
    %v1737 = vld [vmem:[#allocation5 + $0x20] sm:$0xff]
    %v1738 = vld [vmem:[#allocation5 + $0x28] sm:$0xff]
    %v1739 = vld [vmem:[#allocation5 + $0x30] sm:$0xff]
    %v1740 = vld [vmem:[#allocation5 + $0x38] sm:$0xff]
    %v1741 = vld [vmem:[#allocation14] sm:$0xff]
    %v1742 = vld [vmem:[#allocation14 + $0x8] sm:$0xff]
    %v1743 = vld [vmem:[#allocation14 + $0x10] sm:$0xff]
    %v1744 = vld [vmem:[#allocation14 + $0x18] sm:$0xff]
    %v1745 = vld [vmem:[#allocation14 + $0x20] sm:$0xff]
    %v1746 = vld [vmem:[#allocation14 + $0x28] sm:$0xff]
    %v1747 = vld [vmem:[#allocation14 + $0x30] sm:$0xff]
    %v1748 = vld [vmem:[#allocation14 + $0x38] sm:$0xff]
    %v1749 = vld [vmem:[#allocation14 + $0x40] sm:$0xff]
    %v1750 = vld [vmem:[#allocation14 + $0x48] sm:$0xff]
    %v1751 = vld [vmem:[#allocation14 + $0x50] sm:$0xff]
    %v1752 = vld [vmem:[#allocation14 + $0x58] sm:$0xff]
    %v1753 = vld [vmem:[#allocation14 + $0x60] sm:$0xff]
    %v1754 = vld [vmem:[#allocation14 + $0x68] sm:$0xff]
    %v1755 = vld [vmem:[#allocation14 + $0x70] sm:$0xff]
    %v1756 = vld [vmem:[#allocation14 + $0x78] sm:$0xff]
    %v1757 = vld [vmem:[#allocation14 + $0x80] sm:$0xff]
    %v1758 = vld [vmem:[#allocation14 + $0x88] sm:$0xff]
    %v1759 = vld [vmem:[#allocation14 + $0x90] sm:$0xff]
    %v1760 = vld [vmem:[#allocation14 + $0x98] sm:$0xff]
    %v1761 = vld [vmem:[#allocation14 + $0xa0] sm:$0xff]
    %v1762 = vld [vmem:[#allocation14 + $0xa8] sm:$0xff]
    %v1763 = vld [vmem:[#allocation14 + $0xb0] sm:$0xff]
    %v1764 = vld [vmem:[#allocation14 + $0xb8] sm:$0xff]
    %v1765 = vld [vmem:[#allocation14 + $0xc0] sm:$0xff]
    %v1766 = vld [vmem:[#allocation14 + $0xc8] sm:$0xff]
    %v1767 = vld [vmem:[#allocation14 + $0xd0] sm:$0xff]
    %v1768 = vld [vmem:[#allocation14 + $0xd8] sm:$0xff]
    %v1769 = vld [vmem:[#allocation14 + $0xe0] sm:$0xff]
    %v1770 = vld [vmem:[#allocation14 + $0xe8] sm:$0xff]
    %v1771 = vld [vmem:[#allocation14 + $0xf0] sm:$0xff]
    %v1772 = vld [vmem:[#allocation14 + $0xf8] sm:$0xff]
    %v1773 = vld [vmem:[#allocation14 + $0x100] sm:$0xff]
    %v1774 = vld [vmem:[#allocation14 + $0x108] sm:$0xff]
    %v1775 = vld [vmem:[#allocation14 + $0x110] sm:$0xff]
    %v1776 = vld [vmem:[#allocation14 + $0x118] sm:$0xff]
    %v1777 = vld [vmem:[#allocation14 + $0x120] sm:$0xff]
    %v1778 = vld [vmem:[#allocation14 + $0x128] sm:$0xff]
    %v1779 = vld [vmem:[#allocation14 + $0x130] sm:$0xff]
    %v1780 = vld [vmem:[#allocation14 + $0x138] sm:$0xff]
    %v1781 = vld [vmem:[#allocation14 + $0x140] sm:$0xff]
    %v1782 = vld [vmem:[#allocation14 + $0x148] sm:$0xff]
    %v1783 = vld [vmem:[#allocation14 + $0x150] sm:$0xff]
    %v1784 = vld [vmem:[#allocation14 + $0x158] sm:$0xff]
    %v1785 = vld [vmem:[#allocation14 + $0x160] sm:$0xff]
    %v1786 = vld [vmem:[#allocation14 + $0x168] sm:$0xff]
    %v1787 = vld [vmem:[#allocation14 + $0x170] sm:$0xff]
    %v1788 = vld [vmem:[#allocation14 + $0x178] sm:$0xff]
    %v1789 = vld [vmem:[#allocation14 + $0x180] sm:$0xff]
    %v1790 = vld [vmem:[#allocation14 + $0x188] sm:$0xff]
    %v1791 = vld [vmem:[#allocation14 + $0x190] sm:$0xff]
    %v1792 = vld [vmem:[#allocation14 + $0x198] sm:$0xff]
    %v1793 = vld [vmem:[#allocation14 + $0x1a0] sm:$0xff]
    %v1794 = vld [vmem:[#allocation14 + $0x1a8] sm:$0xff]
    %v1795 = vld [vmem:[#allocation14 + $0x1b0] sm:$0xff]
    %v1796 = vld [vmem:[#allocation14 + $0x1b8] sm:$0xff]
    %v1797 = vld [vmem:[#allocation14 + $0x1c0] sm:$0xff]
    %v1798 = vld [vmem:[#allocation14 + $0x1c8] sm:$0xff]
    %v1799 = vld [vmem:[#allocation14 + $0x1d0] sm:$0xff]
    %v1800 = vld [vmem:[#allocation14 + $0x1d8] sm:$0xff]
    %v1801 = vld [vmem:[#allocation14 + $0x1e0] sm:$0xff]
    %v1802 = vld [vmem:[#allocation14 + $0x1e8] sm:$0xff]
    %v1803 = vld [vmem:[#allocation14 + $0x1f0] sm:$0xff]
    %v1804 = vld [vmem:[#allocation14 + $0x1f8] sm:$0xff]
    %s1805 = scalar_lea.vmem [#allocation12], 4
    %v1806 = vld [vmem:[%s1805] sm:$0xf]
    %v1808 = vperm.slane %v1806, 0
    %v1809 = vperm.slane %v1806, 1
    %v1810 = vperm.slane %v1806, 2
    %v1811 = vperm.slane %v1806, 3
    %1816 = vmatpush.msra.mxu0 %v1801
    %1817 = vmatpush.msra.mxu0 %v1797
    %1818 = vmatpush.msra.mxu0 %v1793
    %1819 = vmatpush.msra.mxu0 %v1789
    %1820 = vmatpush.msra.mxu0 %v1785
    %1821 = vmatpush.msra.mxu0 %v1781
    %1822 = vmatpush.msra.mxu0 %v1777
    %1823 = vmatpush.msra.mxu0 %v1773
    %1824 = vmatpush.msra.mxu0 %v1769
    %1825 = vmatpush.msra.mxu0 %v1765
    %1826 = vmatpush.msra.mxu0 %v1761
    %1827 = vmatpush.msra.mxu0 %v1757
    %1828 = vmatpush.msra.mxu0 %v1753
    %1829 = vmatpush.msra.mxu0 %v1749
    %1830 = vmatpush.msra.mxu0 %v1745
    %1831 = vmatpush.msra.mxu0 %v1741
    %1832 = vmatmul.f32.gmra.mxu0 %v1733
    %v1833 = vpop.f32.mrf.mxu0
    %v1834 = vadd.f32 %v1808, %v1833
    %1835 = vmatmul.f32.gmra.mxu0 %v1734
    %v1836 = vpop.f32.mrf.mxu0
    %v1837 = vadd.f32 %v1808, %v1836
    %1838 = vmatmul.f32.gmra.mxu0 %v1735
    %v1839 = vpop.f32.mrf.mxu0
    %v1840 = vadd.f32 %v1808, %v1839
    %1841 = vmatmul.f32.gmra.mxu0 %v1736
    %v1842 = vpop.f32.mrf.mxu0
    %v1843 = vadd.f32 %v1808, %v1842
    %1844 = vmatmul.f32.gmra.mxu0 %v1737
    %v1845 = vpop.f32.mrf.mxu0
    %v1846 = vadd.f32 %v1808, %v1845
    %1847 = vmatmul.f32.gmra.mxu0 %v1738
    %v1848 = vpop.f32.mrf.mxu0
    %v1849 = vadd.f32 %v1808, %v1848
    %1850 = vmatmul.f32.gmra.mxu0 %v1739
    %v1851 = vpop.f32.mrf.mxu0
    %v1852 = vadd.f32 %v1808, %v1851
    %1853 = vmatmul.f32.gmra.mxu0 %v1740
    %v1854 = vpop.f32.mrf.mxu0
    %v1855 = vadd.f32 %v1808, %v1854
    %1856 = vdwg.mxu0
    %1857 = vmatpush.msra.mxu0 %v1802
    %1858 = vmatpush.msra.mxu0 %v1798
    %1859 = vmatpush.msra.mxu0 %v1794
    %1860 = vmatpush.msra.mxu0 %v1790
    %1861 = vmatpush.msra.mxu0 %v1786
    %1862 = vmatpush.msra.mxu0 %v1782
    %1863 = vmatpush.msra.mxu0 %v1778
    %1864 = vmatpush.msra.mxu0 %v1774
    %1865 = vmatpush.msra.mxu0 %v1770
    %1866 = vmatpush.msra.mxu0 %v1766
    %1867 = vmatpush.msra.mxu0 %v1762
    %1868 = vmatpush.msra.mxu0 %v1758
    %1869 = vmatpush.msra.mxu0 %v1754
    %1870 = vmatpush.msra.mxu0 %v1750
    %1871 = vmatpush.msra.mxu0 %v1746
    %1872 = vmatpush.msra.mxu0 %v1742
    %1873 = vmatmul.f32.gmra.mxu0 %v1733
    %v1874 = vpop.f32.mrf.mxu0
    %v1875 = vadd.f32 %v1809, %v1874
    %1876 = vmatmul.f32.gmra.mxu0 %v1734
    %v1877 = vpop.f32.mrf.mxu0
    %v1878 = vadd.f32 %v1809, %v1877
    %1879 = vmatmul.f32.gmra.mxu0 %v1735
    %v1880 = vpop.f32.mrf.mxu0
    %v1881 = vadd.f32 %v1809, %v1880
    %1882 = vmatmul.f32.gmra.mxu0 %v1736
    %v1883 = vpop.f32.mrf.mxu0
    %v1884 = vadd.f32 %v1809, %v1883
    %1885 = vmatmul.f32.gmra.mxu0 %v1737
    %v1886 = vpop.f32.mrf.mxu0
    %v1887 = vadd.f32 %v1809, %v1886
    %1888 = vmatmul.f32.gmra.mxu0 %v1738
    %v1889 = vpop.f32.mrf.mxu0
    %v1890 = vadd.f32 %v1809, %v1889
    %1891 = vmatmul.f32.gmra.mxu0 %v1739
    %v1892 = vpop.f32.mrf.mxu0
    %v1893 = vadd.f32 %v1809, %v1892
    %1894 = vmatmul.f32.gmra.mxu0 %v1740
    %v1895 = vpop.f32.mrf.mxu0
    %v1896 = vadd.f32 %v1809, %v1895
    %1897 = vdwg.mxu0
    %1898 = vmatpush.msra.mxu0 %v1803
    %1899 = vmatpush.msra.mxu0 %v1799
    %1900 = vmatpush.msra.mxu0 %v1795
    %1901 = vmatpush.msra.mxu0 %v1791
    %1902 = vmatpush.msra.mxu0 %v1787
    %1903 = vmatpush.msra.mxu0 %v1783
    %1904 = vmatpush.msra.mxu0 %v1779
    %1905 = vmatpush.msra.mxu0 %v1775
    %1906 = vmatpush.msra.mxu0 %v1771
    %1907 = vmatpush.msra.mxu0 %v1767
    %1908 = vmatpush.msra.mxu0 %v1763
    %1909 = vmatpush.msra.mxu0 %v1759
    %1910 = vmatpush.msra.mxu0 %v1755
    %1911 = vmatpush.msra.mxu0 %v1751
    %1912 = vmatpush.msra.mxu0 %v1747
    %1913 = vmatpush.msra.mxu0 %v1743
    %1914 = vmatmul.f32.gmra.mxu0 %v1733
    %v1915 = vpop.f32.mrf.mxu0
    %v1916 = vadd.f32 %v1810, %v1915
    %1917 = vmatmul.f32.gmra.mxu0 %v1734
    %v1918 = vpop.f32.mrf.mxu0
    %v1919 = vadd.f32 %v1810, %v1918
    %1920 = vmatmul.f32.gmra.mxu0 %v1735
    %v1921 = vpop.f32.mrf.mxu0
    %v1922 = vadd.f32 %v1810, %v1921
    %1923 = vmatmul.f32.gmra.mxu0 %v1736
    %v1924 = vpop.f32.mrf.mxu0
    %v1925 = vadd.f32 %v1810, %v1924
    %1926 = vmatmul.f32.gmra.mxu0 %v1737
    %v1927 = vpop.f32.mrf.mxu0
    %v1928 = vadd.f32 %v1810, %v1927
    %1929 = vmatmul.f32.gmra.mxu0 %v1738
    %v1930 = vpop.f32.mrf.mxu0
    %v1931 = vadd.f32 %v1810, %v1930
    %1932 = vmatmul.f32.gmra.mxu0 %v1739
    %v1933 = vpop.f32.mrf.mxu0
    %v1934 = vadd.f32 %v1810, %v1933
    %1935 = vmatmul.f32.gmra.mxu0 %v1740
    %v1936 = vpop.f32.mrf.mxu0
    %v1937 = vadd.f32 %v1810, %v1936
    %1938 = vdwg.mxu0
    %1939 = vmatpush.msra.mxu0 %v1804
    %1940 = vmatpush.msra.mxu0 %v1800
    %1941 = vmatpush.msra.mxu0 %v1796
    %1942 = vmatpush.msra.mxu0 %v1792
    %1943 = vmatpush.msra.mxu0 %v1788
    %1944 = vmatpush.msra.mxu0 %v1784
    %1945 = vmatpush.msra.mxu0 %v1780
    %1946 = vmatpush.msra.mxu0 %v1776
    %1947 = vmatpush.msra.mxu0 %v1772
    %1948 = vmatpush.msra.mxu0 %v1768
    %1949 = vmatpush.msra.mxu0 %v1764
    %1950 = vmatpush.msra.mxu0 %v1760
    %1951 = vmatpush.msra.mxu0 %v1756
    %1952 = vmatpush.msra.mxu0 %v1752
    %1953 = vmatpush.msra.mxu0 %v1748
    %1954 = vmatpush.msra.mxu0 %v1744
    %1955 = vmatmul.f32.gmra.mxu0 %v1733
    %v1956 = vpop.f32.mrf.mxu0
    %v1957 = vadd.f32 %v1811, %v1956
    %1958 = vmatmul.f32.gmra.mxu0 %v1734
    %v1959 = vpop.f32.mrf.mxu0
    %v1960 = vadd.f32 %v1811, %v1959
    %1961 = vmatmul.f32.gmra.mxu0 %v1735
    %v1962 = vpop.f32.mrf.mxu0
    %v1963 = vadd.f32 %v1811, %v1962
    %1964 = vmatmul.f32.gmra.mxu0 %v1736
    %v1965 = vpop.f32.mrf.mxu0
    %v1966 = vadd.f32 %v1811, %v1965
    %1967 = vmatmul.f32.gmra.mxu0 %v1737
    %v1968 = vpop.f32.mrf.mxu0
    %v1969 = vadd.f32 %v1811, %v1968
    %1970 = vmatmul.f32.gmra.mxu0 %v1738
    %v1971 = vpop.f32.mrf.mxu0
    %v1972 = vadd.f32 %v1811, %v1971
    %1973 = vmatmul.f32.gmra.mxu0 %v1739
    %v1974 = vpop.f32.mrf.mxu0
    %v1975 = vadd.f32 %v1811, %v1974
    %1976 = vmatmul.f32.gmra.mxu0 %v1740
    %v1977 = vpop.f32.mrf.mxu0
    %v1978 = vadd.f32 %v1811, %v1977
    %1979 = vdwg.mxu0
    %1980 = vst [vmem:[#allocation4] sm:$0xff] %v1834
    %1981 = vst [vmem:[#allocation4 + $0x8] sm:$0xff] %v1875
    %1982 = vst [vmem:[#allocation4 + $0x10] sm:$0xff] %v1916
    %1983 = vst [vmem:[#allocation4 + $0x18] sm:$0xff] %v1957
    %1984 = vst [vmem:[#allocation4 + $0x20] sm:$0xff] %v1837
    %1985 = vst [vmem:[#allocation4 + $0x28] sm:$0xff] %v1878
    %1986 = vst [vmem:[#allocation4 + $0x30] sm:$0xff] %v1919
    %1987 = vst [vmem:[#allocation4 + $0x38] sm:$0xff] %v1960
    %1988 = vst [vmem:[#allocation4 + $0x40] sm:$0xff] %v1840
    %1989 = vst [vmem:[#allocation4 + $0x48] sm:$0xff] %v1881
    %1990 = vst [vmem:[#allocation4 + $0x50] sm:$0xff] %v1922
    %1991 = vst [vmem:[#allocation4 + $0x58] sm:$0xff] %v1963
    %1992 = vst [vmem:[#allocation4 + $0x60] sm:$0xff] %v1843
    %1993 = vst [vmem:[#allocation4 + $0x68] sm:$0xff] %v1884
    %1994 = vst [vmem:[#allocation4 + $0x70] sm:$0xff] %v1925
    %1995 = vst [vmem:[#allocation4 + $0x78] sm:$0xff] %v1966
    %1996 = vst [vmem:[#allocation4 + $0x80] sm:$0xff] %v1846
    %1997 = vst [vmem:[#allocation4 + $0x88] sm:$0xff] %v1887
    %1998 = vst [vmem:[#allocation4 + $0x90] sm:$0xff] %v1928
    %1999 = vst [vmem:[#allocation4 + $0x98] sm:$0xff] %v1969
    %2000 = vst [vmem:[#allocation4 + $0xa0] sm:$0xff] %v1849
    %2001 = vst [vmem:[#allocation4 + $0xa8] sm:$0xff] %v1890
    %2002 = vst [vmem:[#allocation4 + $0xb0] sm:$0xff] %v1931
    %2003 = vst [vmem:[#allocation4 + $0xb8] sm:$0xff] %v1972
    %2004 = vst [vmem:[#allocation4 + $0xc0] sm:$0xff] %v1852
    %2005 = vst [vmem:[#allocation4 + $0xc8] sm:$0xff] %v1893
    %2006 = vst [vmem:[#allocation4 + $0xd0] sm:$0xff] %v1934
    %2007 = vst [vmem:[#allocation4 + $0xd8] sm:$0xff] %v1975
    %2008 = vst [vmem:[#allocation4 + $0xe0] sm:$0xff] %v1855
    %2009 = vst [vmem:[#allocation4 + $0xe8] sm:$0xff] %v1896
    %2010 = vst [vmem:[#allocation4 + $0xf0] sm:$0xff] %v1937
    %2011 = vst [vmem:[#allocation4 + $0xf8] sm:$0xff] %v1978
    %s2012 = scalar_lea.vmem [#allocation11], 512
    %v2013 = vld [vmem:[%s2012] sm:$0xff]
    %v2014 = vld [vmem:[%s2012 + $0x8] sm:$0xff]
    %v2015 = vld [vmem:[%s2012 + $0x10] sm:$0xff]
    %v2016 = vld [vmem:[%s2012 + $0x18] sm:$0xff]
    %v2017 = vld [vmem:[%s2012 + $0x20] sm:$0xff]
    %v2018 = vld [vmem:[%s2012 + $0x28] sm:$0xff]
    %v2019 = vld [vmem:[%s2012 + $0x30] sm:$0xff]
    %v2020 = vld [vmem:[%s2012 + $0x38] sm:$0xff]
    %v2021 = vld [vmem:[%s2012 + $0x40] sm:$0xff]
    %v2022 = vld [vmem:[%s2012 + $0x48] sm:$0xff]
    %v2023 = vld [vmem:[%s2012 + $0x50] sm:$0xff]
    %v2024 = vld [vmem:[%s2012 + $0x58] sm:$0xff]
    %v2025 = vld [vmem:[%s2012 + $0x60] sm:$0xff]
    %v2026 = vld [vmem:[%s2012 + $0x68] sm:$0xff]
    %v2027 = vld [vmem:[%s2012 + $0x70] sm:$0xff]
    %v2028 = vld [vmem:[%s2012 + $0x78] sm:$0xff]
    %v2029 = vld [vmem:[%s2012 + $0x80] sm:$0xff]
    %v2030 = vld [vmem:[%s2012 + $0x88] sm:$0xff]
    %v2031 = vld [vmem:[%s2012 + $0x90] sm:$0xff]
    %v2032 = vld [vmem:[%s2012 + $0x98] sm:$0xff]
    %v2033 = vld [vmem:[%s2012 + $0xa0] sm:$0xff]
    %v2034 = vld [vmem:[%s2012 + $0xa8] sm:$0xff]
    %v2035 = vld [vmem:[%s2012 + $0xb0] sm:$0xff]
    %v2036 = vld [vmem:[%s2012 + $0xb8] sm:$0xff]
    %v2037 = vld [vmem:[%s2012 + $0xc0] sm:$0xff]
    %v2038 = vld [vmem:[%s2012 + $0xc8] sm:$0xff]
    %v2039 = vld [vmem:[%s2012 + $0xd0] sm:$0xff]
    %v2040 = vld [vmem:[%s2012 + $0xd8] sm:$0xff]
    %v2041 = vld [vmem:[%s2012 + $0xe0] sm:$0xff]
    %v2042 = vld [vmem:[%s2012 + $0xe8] sm:$0xff]
    %v2043 = vld [vmem:[%s2012 + $0xf0] sm:$0xff]
    %v2044 = vld [vmem:[%s2012 + $0xf8] sm:$0xff]
    %v2045 = vld [vmem:[%s2012 + $0x100] sm:$0xff]
    %v2046 = vld [vmem:[%s2012 + $0x108] sm:$0xff]
    %v2047 = vld [vmem:[%s2012 + $0x110] sm:$0xff]
    %v2048 = vld [vmem:[%s2012 + $0x118] sm:$0xff]
    %v2049 = vld [vmem:[%s2012 + $0x120] sm:$0xff]
    %v2050 = vld [vmem:[%s2012 + $0x128] sm:$0xff]
    %v2051 = vld [vmem:[%s2012 + $0x130] sm:$0xff]
    %v2052 = vld [vmem:[%s2012 + $0x138] sm:$0xff]
    %v2053 = vld [vmem:[%s2012 + $0x140] sm:$0xff]
    %v2054 = vld [vmem:[%s2012 + $0x148] sm:$0xff]
    %v2055 = vld [vmem:[%s2012 + $0x150] sm:$0xff]
    %v2056 = vld [vmem:[%s2012 + $0x158] sm:$0xff]
    %v2057 = vld [vmem:[%s2012 + $0x160] sm:$0xff]
    %v2058 = vld [vmem:[%s2012 + $0x168] sm:$0xff]
    %v2059 = vld [vmem:[%s2012 + $0x170] sm:$0xff]
    %v2060 = vld [vmem:[%s2012 + $0x178] sm:$0xff]
    %v2061 = vld [vmem:[%s2012 + $0x180] sm:$0xff]
    %v2062 = vld [vmem:[%s2012 + $0x188] sm:$0xff]
    %v2063 = vld [vmem:[%s2012 + $0x190] sm:$0xff]
    %v2064 = vld [vmem:[%s2012 + $0x198] sm:$0xff]
    %v2065 = vld [vmem:[%s2012 + $0x1a0] sm:$0xff]
    %v2066 = vld [vmem:[%s2012 + $0x1a8] sm:$0xff]
    %v2067 = vld [vmem:[%s2012 + $0x1b0] sm:$0xff]
    %v2068 = vld [vmem:[%s2012 + $0x1b8] sm:$0xff]
    %v2069 = vld [vmem:[%s2012 + $0x1c0] sm:$0xff]
    %v2070 = vld [vmem:[%s2012 + $0x1c8] sm:$0xff]
    %v2071 = vld [vmem:[%s2012 + $0x1d0] sm:$0xff]
    %v2072 = vld [vmem:[%s2012 + $0x1d8] sm:$0xff]
    %v2073 = vld [vmem:[%s2012 + $0x1e0] sm:$0xff]
    %v2074 = vld [vmem:[%s2012 + $0x1e8] sm:$0xff]
    %v2075 = vld [vmem:[%s2012 + $0x1f0] sm:$0xff]
    %v2076 = vld [vmem:[%s2012 + $0x1f8] sm:$0xff]
    %s2077 = scalar_lea.vmem [#allocation2], 8
    %v2078 = vld [vmem:[%s2077] sm:$0xff]
    %s2079 = scalar_lea.vmem [#allocation3], 8
    %v2080 = vld [vmem:[%s2079] sm:$0xff]
    %v2081 = vld [vmem:[#allocation4] sm:$0xff]
    %v2082 = vld [vmem:[#allocation4 + $0x8] sm:$0xff]
    %v2083 = vld [vmem:[#allocation4 + $0x10] sm:$0xff]
    %v2084 = vld [vmem:[#allocation4 + $0x18] sm:$0xff]
    %2085 = vmatpush.msra.mxu0 %v2073
    %2086 = vmatpush.msra.mxu0 %v2069
    %2087 = vmatpush.msra.mxu0 %v2065
    %2088 = vmatpush.msra.mxu0 %v2061
    %2089 = vmatpush.msra.mxu0 %v2057
    %2090 = vmatpush.msra.mxu0 %v2053
    %2091 = vmatpush.msra.mxu0 %v2049
    %2092 = vmatpush.msra.mxu0 %v2045
    %2093 = vmatpush.msra.mxu0 %v2041
    %2094 = vmatpush.msra.mxu0 %v2037
    %2095 = vmatpush.msra.mxu0 %v2033
    %2096 = vmatpush.msra.mxu0 %v2029
    %2097 = vmatpush.msra.mxu0 %v2025
    %2098 = vmatpush.msra.mxu0 %v2021
    %2099 = vmatpush.msra.mxu0 %v2017
    %2100 = vmatpush.msra.mxu0 %v2013
    %2101 = vmatmul.f32.gmra.mxu0 %v2078
    %v2102 = vpop.f32.mrf.mxu0
    %v2103 = vadd.f32 0.0, %v2102
    %2104 = vdwg.mxu0
    %2105 = vmatpush.msra.mxu0 %v2074
    %2106 = vmatpush.msra.mxu0 %v2070
    %2107 = vmatpush.msra.mxu0 %v2066
    %2108 = vmatpush.msra.mxu0 %v2062
    %2109 = vmatpush.msra.mxu0 %v2058
    %2110 = vmatpush.msra.mxu0 %v2054
    %2111 = vmatpush.msra.mxu0 %v2050
    %2112 = vmatpush.msra.mxu0 %v2046
    %2113 = vmatpush.msra.mxu0 %v2042
    %2114 = vmatpush.msra.mxu0 %v2038
    %2115 = vmatpush.msra.mxu0 %v2034
    %2116 = vmatpush.msra.mxu0 %v2030
    %2117 = vmatpush.msra.mxu0 %v2026
    %2118 = vmatpush.msra.mxu0 %v2022
    %2119 = vmatpush.msra.mxu0 %v2018
    %2120 = vmatpush.msra.mxu0 %v2014
    %2121 = vmatmul.f32.gmra.mxu0 %v2078
    %v2122 = vpop.f32.mrf.mxu0
    %v2123 = vadd.f32 0.0, %v2122
    %2124 = vdwg.mxu0
    %2125 = vmatpush.msra.mxu0 %v2075
    %2126 = vmatpush.msra.mxu0 %v2071
    %2127 = vmatpush.msra.mxu0 %v2067
    %2128 = vmatpush.msra.mxu0 %v2063
    %2129 = vmatpush.msra.mxu0 %v2059
    %2130 = vmatpush.msra.mxu0 %v2055
    %2131 = vmatpush.msra.mxu0 %v2051
    %2132 = vmatpush.msra.mxu0 %v2047
    %2133 = vmatpush.msra.mxu0 %v2043
    %2134 = vmatpush.msra.mxu0 %v2039
    %2135 = vmatpush.msra.mxu0 %v2035
    %2136 = vmatpush.msra.mxu0 %v2031
    %2137 = vmatpush.msra.mxu0 %v2027
    %2138 = vmatpush.msra.mxu0 %v2023
    %2139 = vmatpush.msra.mxu0 %v2019
    %2140 = vmatpush.msra.mxu0 %v2015
    %2141 = vmatmul.f32.gmra.mxu0 %v2078
    %v2142 = vpop.f32.mrf.mxu0
    %v2143 = vadd.f32 0.0, %v2142
    %2144 = vdwg.mxu0
    %2145 = vmatpush.msra.mxu0 %v2076
    %2146 = vmatpush.msra.mxu0 %v2072
    %2147 = vmatpush.msra.mxu0 %v2068
    %2148 = vmatpush.msra.mxu0 %v2064
    %2149 = vmatpush.msra.mxu0 %v2060
    %2150 = vmatpush.msra.mxu0 %v2056
    %2151 = vmatpush.msra.mxu0 %v2052
    %2152 = vmatpush.msra.mxu0 %v2048
    %2153 = vmatpush.msra.mxu0 %v2044
    %2154 = vmatpush.msra.mxu0 %v2040
    %2155 = vmatpush.msra.mxu0 %v2036
    %2156 = vmatpush.msra.mxu0 %v2032
    %2157 = vmatpush.msra.mxu0 %v2028
    %2158 = vmatpush.msra.mxu0 %v2024
    %2159 = vmatpush.msra.mxu0 %v2020
    %2160 = vmatpush.msra.mxu0 %v2016
    %2161 = vmatmul.f32.gmra.mxu0 %v2078
    %v2162 = vpop.f32.mrf.mxu0
    %v2163 = vadd.f32 0.0, %v2162
    %2164 = vdwg.mxu0
    %v2165 = vadd.f32 %v2081, %v2103
    %v2166 = vadd.f32 %v2082, %v2123
    %v2167 = vadd.f32 %v2083, %v2143
    %v2168 = vadd.f32 %v2084, %v2163
    %v2169 = vxor.u32 %v2165, 2147483648
    %v2170 = vmul.f32 %v2169, 1.442695
    %v2171 = vpow.pop %v2170
    %v2172 = vadd.f32 %v2171, 1.0
    %v2173 = vrcp.pop %v2172
    %v2174 = vmul.f32 %v2172, %v2173
    %v2175 = vsub.f32 1.0, %v2174
    %v2176 = vmul.f32 %v2173, %v2175
    %v2177 = vadd.f32 %v2173, %v2176
    %vm2178 = vweird.f32 %v2172
    %vm2179 = vweird.f32 %v2173
    %vm2180 = vmor %vm2178, %vm2179
    %v2181 = vsel %vm2180, %v2173, %v2177
    %v2182 = vand.u32 2147483647, %v2172
    %vm2183 = vcmp.eq.f32.partialorder %v2182, 8.507059e+37
    %v2184 = vand.u32 %v2172, 2147483648
    %v2185 = vor.u32 1.1754944e-38, %v2184
    %v2186 = vsel %vm2183, %v2185, %v2181
    %v2187 = vmul.f32 1.0, %v2186
    %v2188 = vxor.u32 %v2166, 2147483648
    %v2189 = vmul.f32 %v2188, 1.442695
    %v2190 = vpow.pop %v2189
    %v2191 = vadd.f32 %v2190, 1.0
    %v2192 = vrcp.pop %v2191
    %v2193 = vmul.f32 %v2191, %v2192
    %v2194 = vsub.f32 1.0, %v2193
    %v2195 = vmul.f32 %v2192, %v2194
    %v2196 = vadd.f32 %v2192, %v2195
    %vm2197 = vweird.f32 %v2191
    %vm2198 = vweird.f32 %v2192
    %vm2199 = vmor %vm2197, %vm2198
    %v2200 = vsel %vm2199, %v2192, %v2196
    %v2201 = vand.u32 2147483647, %v2191
    %vm2202 = vcmp.eq.f32.partialorder %v2201, 8.507059e+37
    %v2203 = vand.u32 %v2191, 2147483648
    %v2204 = vor.u32 1.1754944e-38, %v2203
    %v2205 = vsel %vm2202, %v2204, %v2200
    %v2206 = vmul.f32 1.0, %v2205
    %v2207 = vtanh.pop %v2167
    %v2208 = vxor.u32 %v2168, 2147483648
    %v2209 = vmul.f32 %v2208, 1.442695
    %v2210 = vpow.pop %v2209
    %v2211 = vadd.f32 %v2210, 1.0
    %v2212 = vrcp.pop %v2211
    %v2213 = vmul.f32 %v2211, %v2212
    %v2214 = vsub.f32 1.0, %v2213
    %v2215 = vmul.f32 %v2212, %v2214
    %v2216 = vadd.f32 %v2212, %v2215
    %vm2217 = vweird.f32 %v2211
    %vm2218 = vweird.f32 %v2212
    %vm2219 = vmor %vm2217, %vm2218
    %v2220 = vsel %vm2219, %v2212, %v2216
    %v2221 = vand.u32 2147483647, %v2211
    %vm2222 = vcmp.eq.f32.partialorder %v2221, 8.507059e+37
    %v2223 = vand.u32 %v2211, 2147483648
    %v2224 = vor.u32 1.1754944e-38, %v2223
    %v2225 = vsel %vm2222, %v2224, %v2220
    %v2226 = vmul.f32 1.0, %v2225
    %v2227 = vmul.f32 %v2206, %v2080
    %v2228 = vmul.f32 %v2187, %v2207
    %v2229 = vadd.f32 %v2227, %v2228
    %v2230 = vtanh.pop %v2229
    %v2231 = vmul.f32 %v2226, %v2230
    %2232 = vst [vmem:[%s2079] sm:$0xff] %v2229
    %2233 = vst [vmem:[%s2077] sm:$0xff] %v2231
    %2234 = vst [vmem:[#allocation5] sm:$0xff] %v2231
    %v2235 = vld [vmem:[%s2077] sm:$0xff]
    %v2236 = vld [vmem:[%s2079] sm:$0xff]
    %v2237 = vld [vmem:[%s629] sm:$0xff]
    %v2238 = vld [vmem:[%s629 + $0x8] sm:$0xff]
    %v2239 = vld [vmem:[%s629 + $0x10] sm:$0xff]
    %v2240 = vld [vmem:[%s629 + $0x18] sm:$0xff]
    %2241 = vmatpush.msra.mxu0 %v2073
    %2242 = vmatpush.msra.mxu0 %v2069
    %2243 = vmatpush.msra.mxu0 %v2065
    %2244 = vmatpush.msra.mxu0 %v2061
    %2245 = vmatpush.msra.mxu0 %v2057
    %2246 = vmatpush.msra.mxu0 %v2053
    %2247 = vmatpush.msra.mxu0 %v2049
    %2248 = vmatpush.msra.mxu0 %v2045
    %2249 = vmatpush.msra.mxu0 %v2041
    %2250 = vmatpush.msra.mxu0 %v2037
    %2251 = vmatpush.msra.mxu0 %v2033
    %2252 = vmatpush.msra.mxu0 %v2029
    %2253 = vmatpush.msra.mxu0 %v2025
    %2254 = vmatpush.msra.mxu0 %v2021
    %2255 = vmatpush.msra.mxu0 %v2017
    %2256 = vmatpush.msra.mxu0 %v2013
    %2257 = vmatmul.f32.gmra.mxu0 %v2235
    %v2258 = vpop.f32.mrf.mxu0
    %v2259 = vadd.f32 0.0, %v2258
    %2260 = vdwg.mxu0
    %2261 = vmatpush.msra.mxu0 %v2074
    %2262 = vmatpush.msra.mxu0 %v2070
    %2263 = vmatpush.msra.mxu0 %v2066
    %2264 = vmatpush.msra.mxu0 %v2062
    %2265 = vmatpush.msra.mxu0 %v2058
    %2266 = vmatpush.msra.mxu0 %v2054
    %2267 = vmatpush.msra.mxu0 %v2050
    %2268 = vmatpush.msra.mxu0 %v2046
    %2269 = vmatpush.msra.mxu0 %v2042
    %2270 = vmatpush.msra.mxu0 %v2038
    %2271 = vmatpush.msra.mxu0 %v2034
    %2272 = vmatpush.msra.mxu0 %v2030
    %2273 = vmatpush.msra.mxu0 %v2026
    %2274 = vmatpush.msra.mxu0 %v2022
    %2275 = vmatpush.msra.mxu0 %v2018
    %2276 = vmatpush.msra.mxu0 %v2014
    %2277 = vmatmul.f32.gmra.mxu0 %v2235
    %v2278 = vpop.f32.mrf.mxu0
    %v2279 = vadd.f32 0.0, %v2278
    %2280 = vdwg.mxu0
    %2281 = vmatpush.msra.mxu0 %v2075
    %2282 = vmatpush.msra.mxu0 %v2071
    %2283 = vmatpush.msra.mxu0 %v2067
    %2284 = vmatpush.msra.mxu0 %v2063
    %2285 = vmatpush.msra.mxu0 %v2059
    %2286 = vmatpush.msra.mxu0 %v2055
    %2287 = vmatpush.msra.mxu0 %v2051
    %2288 = vmatpush.msra.mxu0 %v2047
    %2289 = vmatpush.msra.mxu0 %v2043
    %2290 = vmatpush.msra.mxu0 %v2039
    %2291 = vmatpush.msra.mxu0 %v2035
    %2292 = vmatpush.msra.mxu0 %v2031
    %2293 = vmatpush.msra.mxu0 %v2027
    %2294 = vmatpush.msra.mxu0 %v2023
    %2295 = vmatpush.msra.mxu0 %v2019
    %2296 = vmatpush.msra.mxu0 %v2015
    %2297 = vmatmul.f32.gmra.mxu0 %v2235
    %v2298 = vpop.f32.mrf.mxu0
    %v2299 = vadd.f32 0.0, %v2298
    %2300 = vdwg.mxu0
    %2301 = vmatpush.msra.mxu0 %v2076
    %2302 = vmatpush.msra.mxu0 %v2072
    %2303 = vmatpush.msra.mxu0 %v2068
    %2304 = vmatpush.msra.mxu0 %v2064
    %2305 = vmatpush.msra.mxu0 %v2060
    %2306 = vmatpush.msra.mxu0 %v2056
    %2307 = vmatpush.msra.mxu0 %v2052
    %2308 = vmatpush.msra.mxu0 %v2048
    %2309 = vmatpush.msra.mxu0 %v2044
    %2310 = vmatpush.msra.mxu0 %v2040
    %2311 = vmatpush.msra.mxu0 %v2036
    %2312 = vmatpush.msra.mxu0 %v2032
    %2313 = vmatpush.msra.mxu0 %v2028
    %2314 = vmatpush.msra.mxu0 %v2024
    %2315 = vmatpush.msra.mxu0 %v2020
    %2316 = vmatpush.msra.mxu0 %v2016
    %2317 = vmatmul.f32.gmra.mxu0 %v2235
    %v2318 = vpop.f32.mrf.mxu0
    %v2319 = vadd.f32 0.0, %v2318
    %2320 = vdwg.mxu0
    %v2321 = vadd.f32 %v2237, %v2259
    %v2322 = vadd.f32 %v2238, %v2279
    %v2323 = vadd.f32 %v2239, %v2299
    %v2324 = vadd.f32 %v2240, %v2319
    %v2325 = vxor.u32 %v2321, 2147483648
    %v2326 = vmul.f32 %v2325, 1.442695
    %v2327 = vpow.pop %v2326
    %v2328 = vadd.f32 %v2327, 1.0
    %v2329 = vrcp.pop %v2328
    %v2330 = vmul.f32 %v2328, %v2329
    %v2331 = vsub.f32 1.0, %v2330
    %v2332 = vmul.f32 %v2329, %v2331
    %v2333 = vadd.f32 %v2329, %v2332
    %vm2334 = vweird.f32 %v2328
    %vm2335 = vweird.f32 %v2329
    %vm2336 = vmor %vm2334, %vm2335
    %v2337 = vsel %vm2336, %v2329, %v2333
    %v2338 = vand.u32 2147483647, %v2328
    %vm2339 = vcmp.eq.f32.partialorder %v2338, 8.507059e+37
    %v2340 = vand.u32 %v2328, 2147483648
    %v2341 = vor.u32 1.1754944e-38, %v2340
    %v2342 = vsel %vm2339, %v2341, %v2337
    %v2343 = vmul.f32 1.0, %v2342
    %v2344 = vxor.u32 %v2322, 2147483648
    %v2345 = vmul.f32 %v2344, 1.442695
    %v2346 = vpow.pop %v2345
    %v2347 = vadd.f32 %v2346, 1.0
    %v2348 = vrcp.pop %v2347
    %v2349 = vmul.f32 %v2347, %v2348
    %v2350 = vsub.f32 1.0, %v2349
    %v2351 = vmul.f32 %v2348, %v2350
    %v2352 = vadd.f32 %v2348, %v2351
    %vm2353 = vweird.f32 %v2347
    %vm2354 = vweird.f32 %v2348
    %vm2355 = vmor %vm2353, %vm2354
    %v2356 = vsel %vm2355, %v2348, %v2352
    %v2357 = vand.u32 2147483647, %v2347
    %vm2358 = vcmp.eq.f32.partialorder %v2357, 8.507059e+37
    %v2359 = vand.u32 %v2347, 2147483648
    %v2360 = vor.u32 1.1754944e-38, %v2359
    %v2361 = vsel %vm2358, %v2360, %v2356
    %v2362 = vmul.f32 1.0, %v2361
    %v2363 = vtanh.pop %v2323
    %v2364 = vxor.u32 %v2324, 2147483648
    %v2365 = vmul.f32 %v2364, 1.442695
    %v2366 = vpow.pop %v2365
    %v2367 = vadd.f32 %v2366, 1.0
    %v2368 = vrcp.pop %v2367
    %v2369 = vmul.f32 %v2367, %v2368
    %v2370 = vsub.f32 1.0, %v2369
    %v2371 = vmul.f32 %v2368, %v2370
    %v2372 = vadd.f32 %v2368, %v2371
    %vm2373 = vweird.f32 %v2367
    %vm2374 = vweird.f32 %v2368
    %vm2375 = vmor %vm2373, %vm2374
    %v2376 = vsel %vm2375, %v2368, %v2372
    %v2377 = vand.u32 2147483647, %v2367
    %vm2378 = vcmp.eq.f32.partialorder %v2377, 8.507059e+37
    %v2379 = vand.u32 %v2367, 2147483648
    %v2380 = vor.u32 1.1754944e-38, %v2379
    %v2381 = vsel %vm2378, %v2380, %v2376
    %v2382 = vmul.f32 1.0, %v2381
    %v2383 = vmul.f32 %v2362, %v2236
    %v2384 = vmul.f32 %v2343, %v2363
    %v2385 = vadd.f32 %v2383, %v2384
    %v2386 = vtanh.pop %v2385
    %v2387 = vmul.f32 %v2382, %v2386
    %2388 = vst [vmem:[%s2079] sm:$0xff] %v2385
    %2389 = vst [vmem:[%s2077] sm:$0xff] %v2387
    %2390 = vst [vmem:[%s783] sm:$0xff] %v2387
    %v2391 = vld [vmem:[%s2077] sm:$0xff]
    %v2392 = vld [vmem:[%s2079] sm:$0xff]
    %v2393 = vld [vmem:[%s787] sm:$0xff]
    %v2394 = vld [vmem:[%s787 + $0x8] sm:$0xff]
    %v2395 = vld [vmem:[%s787 + $0x10] sm:$0xff]
    %v2396 = vld [vmem:[%s787 + $0x18] sm:$0xff]
    %2397 = vmatpush.msra.mxu0 %v2073
    %2398 = vmatpush.msra.mxu0 %v2069
    %2399 = vmatpush.msra.mxu0 %v2065
    %2400 = vmatpush.msra.mxu0 %v2061
    %2401 = vmatpush.msra.mxu0 %v2057
    %2402 = vmatpush.msra.mxu0 %v2053
    %2403 = vmatpush.msra.mxu0 %v2049
    %2404 = vmatpush.msra.mxu0 %v2045
    %2405 = vmatpush.msra.mxu0 %v2041
    %2406 = vmatpush.msra.mxu0 %v2037
    %2407 = vmatpush.msra.mxu0 %v2033
    %2408 = vmatpush.msra.mxu0 %v2029
    %2409 = vmatpush.msra.mxu0 %v2025
    %2410 = vmatpush.msra.mxu0 %v2021
    %2411 = vmatpush.msra.mxu0 %v2017
    %2412 = vmatpush.msra.mxu0 %v2013
    %2413 = vmatmul.f32.gmra.mxu0 %v2391
    %v2414 = vpop.f32.mrf.mxu0
    %v2415 = vadd.f32 0.0, %v2414
    %2416 = vdwg.mxu0
    %2417 = vmatpush.msra.mxu0 %v2074
    %2418 = vmatpush.msra.mxu0 %v2070
    %2419 = vmatpush.msra.mxu0 %v2066
    %2420 = vmatpush.msra.mxu0 %v2062
    %2421 = vmatpush.msra.mxu0 %v2058
    %2422 = vmatpush.msra.mxu0 %v2054
    %2423 = vmatpush.msra.mxu0 %v2050
    %2424 = vmatpush.msra.mxu0 %v2046
    %2425 = vmatpush.msra.mxu0 %v2042
    %2426 = vmatpush.msra.mxu0 %v2038
    %2427 = vmatpush.msra.mxu0 %v2034
    %2428 = vmatpush.msra.mxu0 %v2030
    %2429 = vmatpush.msra.mxu0 %v2026
    %2430 = vmatpush.msra.mxu0 %v2022
    %2431 = vmatpush.msra.mxu0 %v2018
    %2432 = vmatpush.msra.mxu0 %v2014
    %2433 = vmatmul.f32.gmra.mxu0 %v2391
    %v2434 = vpop.f32.mrf.mxu0
    %v2435 = vadd.f32 0.0, %v2434
    %2436 = vdwg.mxu0
    %2437 = vmatpush.msra.mxu0 %v2075
    %2438 = vmatpush.msra.mxu0 %v2071
    %2439 = vmatpush.msra.mxu0 %v2067
    %2440 = vmatpush.msra.mxu0 %v2063
    %2441 = vmatpush.msra.mxu0 %v2059
    %2442 = vmatpush.msra.mxu0 %v2055
    %2443 = vmatpush.msra.mxu0 %v2051
    %2444 = vmatpush.msra.mxu0 %v2047
    %2445 = vmatpush.msra.mxu0 %v2043
    %2446 = vmatpush.msra.mxu0 %v2039
    %2447 = vmatpush.msra.mxu0 %v2035
    %2448 = vmatpush.msra.mxu0 %v2031
    %2449 = vmatpush.msra.mxu0 %v2027
    %2450 = vmatpush.msra.mxu0 %v2023
    %2451 = vmatpush.msra.mxu0 %v2019
    %2452 = vmatpush.msra.mxu0 %v2015
    %2453 = vmatmul.f32.gmra.mxu0 %v2391
    %v2454 = vpop.f32.mrf.mxu0
    %v2455 = vadd.f32 0.0, %v2454
    %2456 = vdwg.mxu0
    %2457 = vmatpush.msra.mxu0 %v2076
    %2458 = vmatpush.msra.mxu0 %v2072
    %2459 = vmatpush.msra.mxu0 %v2068
    %2460 = vmatpush.msra.mxu0 %v2064
    %2461 = vmatpush.msra.mxu0 %v2060
    %2462 = vmatpush.msra.mxu0 %v2056
    %2463 = vmatpush.msra.mxu0 %v2052
    %2464 = vmatpush.msra.mxu0 %v2048
    %2465 = vmatpush.msra.mxu0 %v2044
    %2466 = vmatpush.msra.mxu0 %v2040
    %2467 = vmatpush.msra.mxu0 %v2036
    %2468 = vmatpush.msra.mxu0 %v2032
    %2469 = vmatpush.msra.mxu0 %v2028
    %2470 = vmatpush.msra.mxu0 %v2024
    %2471 = vmatpush.msra.mxu0 %v2020
    %2472 = vmatpush.msra.mxu0 %v2016
    %2473 = vmatmul.f32.gmra.mxu0 %v2391
    %v2474 = vpop.f32.mrf.mxu0
    %v2475 = vadd.f32 0.0, %v2474
    %2476 = vdwg.mxu0
    %v2477 = vadd.f32 %v2393, %v2415
    %v2478 = vadd.f32 %v2394, %v2435
    %v2479 = vadd.f32 %v2395, %v2455
    %v2480 = vadd.f32 %v2396, %v2475
    %v2481 = vxor.u32 %v2477, 2147483648
    %v2482 = vmul.f32 %v2481, 1.442695
    %v2483 = vpow.pop %v2482
    %v2484 = vadd.f32 %v2483, 1.0
    %v2485 = vrcp.pop %v2484
    %v2486 = vmul.f32 %v2484, %v2485
    %v2487 = vsub.f32 1.0, %v2486
    %v2488 = vmul.f32 %v2485, %v2487
    %v2489 = vadd.f32 %v2485, %v2488
    %vm2490 = vweird.f32 %v2484
    %vm2491 = vweird.f32 %v2485
    %vm2492 = vmor %vm2490, %vm2491
    %v2493 = vsel %vm2492, %v2485, %v2489
    %v2494 = vand.u32 2147483647, %v2484
    %vm2495 = vcmp.eq.f32.partialorder %v2494, 8.507059e+37
    %v2496 = vand.u32 %v2484, 2147483648
    %v2497 = vor.u32 1.1754944e-38, %v2496
    %v2498 = vsel %vm2495, %v2497, %v2493
    %v2499 = vmul.f32 1.0, %v2498
    %v2500 = vxor.u32 %v2478, 2147483648
    %v2501 = vmul.f32 %v2500, 1.442695
    %v2502 = vpow.pop %v2501
    %v2503 = vadd.f32 %v2502, 1.0
    %v2504 = vrcp.pop %v2503
    %v2505 = vmul.f32 %v2503, %v2504
    %v2506 = vsub.f32 1.0, %v2505
    %v2507 = vmul.f32 %v2504, %v2506
    %v2508 = vadd.f32 %v2504, %v2507
    %vm2509 = vweird.f32 %v2503
    %vm2510 = vweird.f32 %v2504
    %vm2511 = vmor %vm2509, %vm2510
    %v2512 = vsel %vm2511, %v2504, %v2508
    %v2513 = vand.u32 2147483647, %v2503
    %vm2514 = vcmp.eq.f32.partialorder %v2513, 8.507059e+37
    %v2515 = vand.u32 %v2503, 2147483648
    %v2516 = vor.u32 1.1754944e-38, %v2515
    %v2517 = vsel %vm2514, %v2516, %v2512
    %v2518 = vmul.f32 1.0, %v2517
    %v2519 = vtanh.pop %v2479
    %v2520 = vxor.u32 %v2480, 2147483648
    %v2521 = vmul.f32 %v2520, 1.442695
    %v2522 = vpow.pop %v2521
    %v2523 = vadd.f32 %v2522, 1.0
    %v2524 = vrcp.pop %v2523
    %v2525 = vmul.f32 %v2523, %v2524
    %v2526 = vsub.f32 1.0, %v2525
    %v2527 = vmul.f32 %v2524, %v2526
    %v2528 = vadd.f32 %v2524, %v2527
    %vm2529 = vweird.f32 %v2523
    %vm2530 = vweird.f32 %v2524
    %vm2531 = vmor %vm2529, %vm2530
    %v2532 = vsel %vm2531, %v2524, %v2528
    %v2533 = vand.u32 2147483647, %v2523
    %vm2534 = vcmp.eq.f32.partialorder %v2533, 8.507059e+37
    %v2535 = vand.u32 %v2523, 2147483648
    %v2536 = vor.u32 1.1754944e-38, %v2535
    %v2537 = vsel %vm2534, %v2536, %v2532
    %v2538 = vmul.f32 1.0, %v2537
    %v2539 = vmul.f32 %v2518, %v2392
    %v2540 = vmul.f32 %v2499, %v2519
    %v2541 = vadd.f32 %v2539, %v2540
    %v2542 = vtanh.pop %v2541
    %v2543 = vmul.f32 %v2538, %v2542
    %2544 = vst [vmem:[%s2079] sm:$0xff] %v2541
    %2545 = vst [vmem:[%s2077] sm:$0xff] %v2543
    %2546 = vst [vmem:[%s941] sm:$0xff] %v2543
    %v2547 = vld [vmem:[%s2077] sm:$0xff]
    %v2548 = vld [vmem:[%s2079] sm:$0xff]
    %v2549 = vld [vmem:[%s945] sm:$0xff]
    %v2550 = vld [vmem:[%s945 + $0x8] sm:$0xff]
    %v2551 = vld [vmem:[%s945 + $0x10] sm:$0xff]
    %v2552 = vld [vmem:[%s945 + $0x18] sm:$0xff]
    %2553 = vmatpush.msra.mxu0 %v2073
    %2554 = vmatpush.msra.mxu0 %v2069
    %2555 = vmatpush.msra.mxu0 %v2065
    %2556 = vmatpush.msra.mxu0 %v2061
    %2557 = vmatpush.msra.mxu0 %v2057
    %2558 = vmatpush.msra.mxu0 %v2053
    %2559 = vmatpush.msra.mxu0 %v2049
    %2560 = vmatpush.msra.mxu0 %v2045
    %2561 = vmatpush.msra.mxu0 %v2041
    %2562 = vmatpush.msra.mxu0 %v2037
    %2563 = vmatpush.msra.mxu0 %v2033
    %2564 = vmatpush.msra.mxu0 %v2029
    %2565 = vmatpush.msra.mxu0 %v2025
    %2566 = vmatpush.msra.mxu0 %v2021
    %2567 = vmatpush.msra.mxu0 %v2017
    %2568 = vmatpush.msra.mxu0 %v2013
    %2569 = vmatmul.f32.gmra.mxu0 %v2547
    %v2570 = vpop.f32.mrf.mxu0
    %v2571 = vadd.f32 0.0, %v2570
    %2572 = vdwg.mxu0
    %2573 = vmatpush.msra.mxu0 %v2074
    %2574 = vmatpush.msra.mxu0 %v2070
    %2575 = vmatpush.msra.mxu0 %v2066
    %2576 = vmatpush.msra.mxu0 %v2062
    %2577 = vmatpush.msra.mxu0 %v2058
    %2578 = vmatpush.msra.mxu0 %v2054
    %2579 = vmatpush.msra.mxu0 %v2050
    %2580 = vmatpush.msra.mxu0 %v2046
    %2581 = vmatpush.msra.mxu0 %v2042
    %2582 = vmatpush.msra.mxu0 %v2038
    %2583 = vmatpush.msra.mxu0 %v2034
    %2584 = vmatpush.msra.mxu0 %v2030
    %2585 = vmatpush.msra.mxu0 %v2026
    %2586 = vmatpush.msra.mxu0 %v2022
    %2587 = vmatpush.msra.mxu0 %v2018
    %2588 = vmatpush.msra.mxu0 %v2014
    %2589 = vmatmul.f32.gmra.mxu0 %v2547
    %v2590 = vpop.f32.mrf.mxu0
    %v2591 = vadd.f32 0.0, %v2590
    %2592 = vdwg.mxu0
    %2593 = vmatpush.msra.mxu0 %v2075
    %2594 = vmatpush.msra.mxu0 %v2071
    %2595 = vmatpush.msra.mxu0 %v2067
    %2596 = vmatpush.msra.mxu0 %v2063
    %2597 = vmatpush.msra.mxu0 %v2059
    %2598 = vmatpush.msra.mxu0 %v2055
    %2599 = vmatpush.msra.mxu0 %v2051
    %2600 = vmatpush.msra.mxu0 %v2047
    %2601 = vmatpush.msra.mxu0 %v2043
    %2602 = vmatpush.msra.mxu0 %v2039
    %2603 = vmatpush.msra.mxu0 %v2035
    %2604 = vmatpush.msra.mxu0 %v2031
    %2605 = vmatpush.msra.mxu0 %v2027
    %2606 = vmatpush.msra.mxu0 %v2023
    %2607 = vmatpush.msra.mxu0 %v2019
    %2608 = vmatpush.msra.mxu0 %v2015
    %2609 = vmatmul.f32.gmra.mxu0 %v2547
    %v2610 = vpop.f32.mrf.mxu0
    %v2611 = vadd.f32 0.0, %v2610
    %2612 = vdwg.mxu0
    %2613 = vmatpush.msra.mxu0 %v2076
    %2614 = vmatpush.msra.mxu0 %v2072
    %2615 = vmatpush.msra.mxu0 %v2068
    %2616 = vmatpush.msra.mxu0 %v2064
    %2617 = vmatpush.msra.mxu0 %v2060
    %2618 = vmatpush.msra.mxu0 %v2056
    %2619 = vmatpush.msra.mxu0 %v2052
    %2620 = vmatpush.msra.mxu0 %v2048
    %2621 = vmatpush.msra.mxu0 %v2044
    %2622 = vmatpush.msra.mxu0 %v2040
    %2623 = vmatpush.msra.mxu0 %v2036
    %2624 = vmatpush.msra.mxu0 %v2032
    %2625 = vmatpush.msra.mxu0 %v2028
    %2626 = vmatpush.msra.mxu0 %v2024
    %2627 = vmatpush.msra.mxu0 %v2020
    %2628 = vmatpush.msra.mxu0 %v2016
    %2629 = vmatmul.f32.gmra.mxu0 %v2547
    %v2630 = vpop.f32.mrf.mxu0
    %v2631 = vadd.f32 0.0, %v2630
    %2632 = vdwg.mxu0
    %v2633 = vadd.f32 %v2549, %v2571
    %v2634 = vadd.f32 %v2550, %v2591
    %v2635 = vadd.f32 %v2551, %v2611
    %v2636 = vadd.f32 %v2552, %v2631
    %v2637 = vxor.u32 %v2633, 2147483648
    %v2638 = vmul.f32 %v2637, 1.442695
    %v2639 = vpow.pop %v2638
    %v2640 = vadd.f32 %v2639, 1.0
    %v2641 = vrcp.pop %v2640
    %v2642 = vmul.f32 %v2640, %v2641
    %v2643 = vsub.f32 1.0, %v2642
    %v2644 = vmul.f32 %v2641, %v2643
    %v2645 = vadd.f32 %v2641, %v2644
    %vm2646 = vweird.f32 %v2640
    %vm2647 = vweird.f32 %v2641
    %vm2648 = vmor %vm2646, %vm2647
    %v2649 = vsel %vm2648, %v2641, %v2645
    %v2650 = vand.u32 2147483647, %v2640
    %vm2651 = vcmp.eq.f32.partialorder %v2650, 8.507059e+37
    %v2652 = vand.u32 %v2640, 2147483648
    %v2653 = vor.u32 1.1754944e-38, %v2652
    %v2654 = vsel %vm2651, %v2653, %v2649
    %v2655 = vmul.f32 1.0, %v2654
    %v2656 = vxor.u32 %v2634, 2147483648
    %v2657 = vmul.f32 %v2656, 1.442695
    %v2658 = vpow.pop %v2657
    %v2659 = vadd.f32 %v2658, 1.0
    %v2660 = vrcp.pop %v2659
    %v2661 = vmul.f32 %v2659, %v2660
    %v2662 = vsub.f32 1.0, %v2661
    %v2663 = vmul.f32 %v2660, %v2662
    %v2664 = vadd.f32 %v2660, %v2663
    %vm2665 = vweird.f32 %v2659
    %vm2666 = vweird.f32 %v2660
    %vm2667 = vmor %vm2665, %vm2666
    %v2668 = vsel %vm2667, %v2660, %v2664
    %v2669 = vand.u32 2147483647, %v2659
    %vm2670 = vcmp.eq.f32.partialorder %v2669, 8.507059e+37
    %v2671 = vand.u32 %v2659, 2147483648
    %v2672 = vor.u32 1.1754944e-38, %v2671
    %v2673 = vsel %vm2670, %v2672, %v2668
    %v2674 = vmul.f32 1.0, %v2673
    %v2675 = vtanh.pop %v2635
    %v2676 = vxor.u32 %v2636, 2147483648
    %v2677 = vmul.f32 %v2676, 1.442695
    %v2678 = vpow.pop %v2677
    %v2679 = vadd.f32 %v2678, 1.0
    %v2680 = vrcp.pop %v2679
    %v2681 = vmul.f32 %v2679, %v2680
    %v2682 = vsub.f32 1.0, %v2681
    %v2683 = vmul.f32 %v2680, %v2682
    %v2684 = vadd.f32 %v2680, %v2683
    %vm2685 = vweird.f32 %v2679
    %vm2686 = vweird.f32 %v2680
    %vm2687 = vmor %vm2685, %vm2686
    %v2688 = vsel %vm2687, %v2680, %v2684
    %v2689 = vand.u32 2147483647, %v2679
    %vm2690 = vcmp.eq.f32.partialorder %v2689, 8.507059e+37
    %v2691 = vand.u32 %v2679, 2147483648
    %v2692 = vor.u32 1.1754944e-38, %v2691
    %v2693 = vsel %vm2690, %v2692, %v2688
    %v2694 = vmul.f32 1.0, %v2693
    %v2695 = vmul.f32 %v2674, %v2548
    %v2696 = vmul.f32 %v2655, %v2675
    %v2697 = vadd.f32 %v2695, %v2696
    %v2698 = vtanh.pop %v2697
    %v2699 = vmul.f32 %v2694, %v2698
    %2700 = vst [vmem:[%s2079] sm:$0xff] %v2697
    %2701 = vst [vmem:[%s2077] sm:$0xff] %v2699
    %2702 = vst [vmem:[%s1099] sm:$0xff] %v2699
    %v2703 = vld [vmem:[%s2077] sm:$0xff]
    %v2704 = vld [vmem:[%s2079] sm:$0xff]
    %v2705 = vld [vmem:[%s1103] sm:$0xff]
    %v2706 = vld [vmem:[%s1103 + $0x8] sm:$0xff]
    %v2707 = vld [vmem:[%s1103 + $0x10] sm:$0xff]
    %v2708 = vld [vmem:[%s1103 + $0x18] sm:$0xff]
    %2709 = vmatpush.msra.mxu0 %v2073
    %2710 = vmatpush.msra.mxu0 %v2069
    %2711 = vmatpush.msra.mxu0 %v2065
    %2712 = vmatpush.msra.mxu0 %v2061
    %2713 = vmatpush.msra.mxu0 %v2057
    %2714 = vmatpush.msra.mxu0 %v2053
    %2715 = vmatpush.msra.mxu0 %v2049
    %2716 = vmatpush.msra.mxu0 %v2045
    %2717 = vmatpush.msra.mxu0 %v2041
    %2718 = vmatpush.msra.mxu0 %v2037
    %2719 = vmatpush.msra.mxu0 %v2033
    %2720 = vmatpush.msra.mxu0 %v2029
    %2721 = vmatpush.msra.mxu0 %v2025
    %2722 = vmatpush.msra.mxu0 %v2021
    %2723 = vmatpush.msra.mxu0 %v2017
    %2724 = vmatpush.msra.mxu0 %v2013
    %2725 = vmatmul.f32.gmra.mxu0 %v2703
    %v2726 = vpop.f32.mrf.mxu0
    %v2727 = vadd.f32 0.0, %v2726
    %2728 = vdwg.mxu0
    %2729 = vmatpush.msra.mxu0 %v2074
    %2730 = vmatpush.msra.mxu0 %v2070
    %2731 = vmatpush.msra.mxu0 %v2066
    %2732 = vmatpush.msra.mxu0 %v2062
    %2733 = vmatpush.msra.mxu0 %v2058
    %2734 = vmatpush.msra.mxu0 %v2054
    %2735 = vmatpush.msra.mxu0 %v2050
    %2736 = vmatpush.msra.mxu0 %v2046
    %2737 = vmatpush.msra.mxu0 %v2042
    %2738 = vmatpush.msra.mxu0 %v2038
    %2739 = vmatpush.msra.mxu0 %v2034
    %2740 = vmatpush.msra.mxu0 %v2030
    %2741 = vmatpush.msra.mxu0 %v2026
    %2742 = vmatpush.msra.mxu0 %v2022
    %2743 = vmatpush.msra.mxu0 %v2018
    %2744 = vmatpush.msra.mxu0 %v2014
    %2745 = vmatmul.f32.gmra.mxu0 %v2703
    %v2746 = vpop.f32.mrf.mxu0
    %v2747 = vadd.f32 0.0, %v2746
    %2748 = vdwg.mxu0
    %2749 = vmatpush.msra.mxu0 %v2075
    %2750 = vmatpush.msra.mxu0 %v2071
    %2751 = vmatpush.msra.mxu0 %v2067
    %2752 = vmatpush.msra.mxu0 %v2063
    %2753 = vmatpush.msra.mxu0 %v2059
    %2754 = vmatpush.msra.mxu0 %v2055
    %2755 = vmatpush.msra.mxu0 %v2051
    %2756 = vmatpush.msra.mxu0 %v2047
    %2757 = vmatpush.msra.mxu0 %v2043
    %2758 = vmatpush.msra.mxu0 %v2039
    %2759 = vmatpush.msra.mxu0 %v2035
    %2760 = vmatpush.msra.mxu0 %v2031
    %2761 = vmatpush.msra.mxu0 %v2027
    %2762 = vmatpush.msra.mxu0 %v2023
    %2763 = vmatpush.msra.mxu0 %v2019
    %2764 = vmatpush.msra.mxu0 %v2015
    %2765 = vmatmul.f32.gmra.mxu0 %v2703
    %v2766 = vpop.f32.mrf.mxu0
    %v2767 = vadd.f32 0.0, %v2766
    %2768 = vdwg.mxu0
    %2769 = vmatpush.msra.mxu0 %v2076
    %2770 = vmatpush.msra.mxu0 %v2072
    %2771 = vmatpush.msra.mxu0 %v2068
    %2772 = vmatpush.msra.mxu0 %v2064
    %2773 = vmatpush.msra.mxu0 %v2060
    %2774 = vmatpush.msra.mxu0 %v2056
    %2775 = vmatpush.msra.mxu0 %v2052
    %2776 = vmatpush.msra.mxu0 %v2048
    %2777 = vmatpush.msra.mxu0 %v2044
    %2778 = vmatpush.msra.mxu0 %v2040
    %2779 = vmatpush.msra.mxu0 %v2036
    %2780 = vmatpush.msra.mxu0 %v2032
    %2781 = vmatpush.msra.mxu0 %v2028
    %2782 = vmatpush.msra.mxu0 %v2024
    %2783 = vmatpush.msra.mxu0 %v2020
    %2784 = vmatpush.msra.mxu0 %v2016
    %2785 = vmatmul.f32.gmra.mxu0 %v2703
    %v2786 = vpop.f32.mrf.mxu0
    %v2787 = vadd.f32 0.0, %v2786
    %2788 = vdwg.mxu0
    %v2789 = vadd.f32 %v2705, %v2727
    %v2790 = vadd.f32 %v2706, %v2747
    %v2791 = vadd.f32 %v2707, %v2767
    %v2792 = vadd.f32 %v2708, %v2787
    %v2793 = vxor.u32 %v2789, 2147483648
    %v2794 = vmul.f32 %v2793, 1.442695
    %v2795 = vpow.pop %v2794
    %v2796 = vadd.f32 %v2795, 1.0
    %v2797 = vrcp.pop %v2796
    %v2798 = vmul.f32 %v2796, %v2797
    %v2799 = vsub.f32 1.0, %v2798
    %v2800 = vmul.f32 %v2797, %v2799
    %v2801 = vadd.f32 %v2797, %v2800
    %vm2802 = vweird.f32 %v2796
    %vm2803 = vweird.f32 %v2797
    %vm2804 = vmor %vm2802, %vm2803
    %v2805 = vsel %vm2804, %v2797, %v2801
    %v2806 = vand.u32 2147483647, %v2796
    %vm2807 = vcmp.eq.f32.partialorder %v2806, 8.507059e+37
    %v2808 = vand.u32 %v2796, 2147483648
    %v2809 = vor.u32 1.1754944e-38, %v2808
    %v2810 = vsel %vm2807, %v2809, %v2805
    %v2811 = vmul.f32 1.0, %v2810
    %v2812 = vxor.u32 %v2790, 2147483648
    %v2813 = vmul.f32 %v2812, 1.442695
    %v2814 = vpow.pop %v2813
    %v2815 = vadd.f32 %v2814, 1.0
    %v2816 = vrcp.pop %v2815
    %v2817 = vmul.f32 %v2815, %v2816
    %v2818 = vsub.f32 1.0, %v2817
    %v2819 = vmul.f32 %v2816, %v2818
    %v2820 = vadd.f32 %v2816, %v2819
    %vm2821 = vweird.f32 %v2815
    %vm2822 = vweird.f32 %v2816
    %vm2823 = vmor %vm2821, %vm2822
    %v2824 = vsel %vm2823, %v2816, %v2820
    %v2825 = vand.u32 2147483647, %v2815
    %vm2826 = vcmp.eq.f32.partialorder %v2825, 8.507059e+37
    %v2827 = vand.u32 %v2815, 2147483648
    %v2828 = vor.u32 1.1754944e-38, %v2827
    %v2829 = vsel %vm2826, %v2828, %v2824
    %v2830 = vmul.f32 1.0, %v2829
    %v2831 = vtanh.pop %v2791
    %v2832 = vxor.u32 %v2792, 2147483648
    %v2833 = vmul.f32 %v2832, 1.442695
    %v2834 = vpow.pop %v2833
    %v2835 = vadd.f32 %v2834, 1.0
    %v2836 = vrcp.pop %v2835
    %v2837 = vmul.f32 %v2835, %v2836
    %v2838 = vsub.f32 1.0, %v2837
    %v2839 = vmul.f32 %v2836, %v2838
    %v2840 = vadd.f32 %v2836, %v2839
    %vm2841 = vweird.f32 %v2835
    %vm2842 = vweird.f32 %v2836
    %vm2843 = vmor %vm2841, %vm2842
    %v2844 = vsel %vm2843, %v2836, %v2840
    %v2845 = vand.u32 2147483647, %v2835
    %vm2846 = vcmp.eq.f32.partialorder %v2845, 8.507059e+37
    %v2847 = vand.u32 %v2835, 2147483648
    %v2848 = vor.u32 1.1754944e-38, %v2847
    %v2849 = vsel %vm2846, %v2848, %v2844
    %v2850 = vmul.f32 1.0, %v2849
    %v2851 = vmul.f32 %v2830, %v2704
    %v2852 = vmul.f32 %v2811, %v2831
    %v2853 = vadd.f32 %v2851, %v2852
    %v2854 = vtanh.pop %v2853
    %v2855 = vmul.f32 %v2850, %v2854
    %2856 = vst [vmem:[%s2079] sm:$0xff] %v2853
    %2857 = vst [vmem:[%s2077] sm:$0xff] %v2855
    %2858 = vst [vmem:[%s1257] sm:$0xff] %v2855
    %v2859 = vld [vmem:[%s2077] sm:$0xff]
    %v2860 = vld [vmem:[%s2079] sm:$0xff]
    %v2861 = vld [vmem:[%s1261] sm:$0xff]
    %v2862 = vld [vmem:[%s1261 + $0x8] sm:$0xff]
    %v2863 = vld [vmem:[%s1261 + $0x10] sm:$0xff]
    %v2864 = vld [vmem:[%s1261 + $0x18] sm:$0xff]
    %2865 = vmatpush.msra.mxu0 %v2073
    %2866 = vmatpush.msra.mxu0 %v2069
    %2867 = vmatpush.msra.mxu0 %v2065
    %2868 = vmatpush.msra.mxu0 %v2061
    %2869 = vmatpush.msra.mxu0 %v2057
    %2870 = vmatpush.msra.mxu0 %v2053
    %2871 = vmatpush.msra.mxu0 %v2049
    %2872 = vmatpush.msra.mxu0 %v2045
    %2873 = vmatpush.msra.mxu0 %v2041
    %2874 = vmatpush.msra.mxu0 %v2037
    %2875 = vmatpush.msra.mxu0 %v2033
    %2876 = vmatpush.msra.mxu0 %v2029
    %2877 = vmatpush.msra.mxu0 %v2025
    %2878 = vmatpush.msra.mxu0 %v2021
    %2879 = vmatpush.msra.mxu0 %v2017
    %2880 = vmatpush.msra.mxu0 %v2013
    %2881 = vmatmul.f32.gmra.mxu0 %v2859
    %v2882 = vpop.f32.mrf.mxu0
    %v2883 = vadd.f32 0.0, %v2882
    %2884 = vdwg.mxu0
    %2885 = vmatpush.msra.mxu0 %v2074
    %2886 = vmatpush.msra.mxu0 %v2070
    %2887 = vmatpush.msra.mxu0 %v2066
    %2888 = vmatpush.msra.mxu0 %v2062
    %2889 = vmatpush.msra.mxu0 %v2058
    %2890 = vmatpush.msra.mxu0 %v2054
    %2891 = vmatpush.msra.mxu0 %v2050
    %2892 = vmatpush.msra.mxu0 %v2046
    %2893 = vmatpush.msra.mxu0 %v2042
    %2894 = vmatpush.msra.mxu0 %v2038
    %2895 = vmatpush.msra.mxu0 %v2034
    %2896 = vmatpush.msra.mxu0 %v2030
    %2897 = vmatpush.msra.mxu0 %v2026
    %2898 = vmatpush.msra.mxu0 %v2022
    %2899 = vmatpush.msra.mxu0 %v2018
    %2900 = vmatpush.msra.mxu0 %v2014
    %2901 = vmatmul.f32.gmra.mxu0 %v2859
    %v2902 = vpop.f32.mrf.mxu0
    %v2903 = vadd.f32 0.0, %v2902
    %2904 = vdwg.mxu0
    %2905 = vmatpush.msra.mxu0 %v2075
    %2906 = vmatpush.msra.mxu0 %v2071
    %2907 = vmatpush.msra.mxu0 %v2067
    %2908 = vmatpush.msra.mxu0 %v2063
    %2909 = vmatpush.msra.mxu0 %v2059
    %2910 = vmatpush.msra.mxu0 %v2055
    %2911 = vmatpush.msra.mxu0 %v2051
    %2912 = vmatpush.msra.mxu0 %v2047
    %2913 = vmatpush.msra.mxu0 %v2043
    %2914 = vmatpush.msra.mxu0 %v2039
    %2915 = vmatpush.msra.mxu0 %v2035
    %2916 = vmatpush.msra.mxu0 %v2031
    %2917 = vmatpush.msra.mxu0 %v2027
    %2918 = vmatpush.msra.mxu0 %v2023
    %2919 = vmatpush.msra.mxu0 %v2019
    %2920 = vmatpush.msra.mxu0 %v2015
    %2921 = vmatmul.f32.gmra.mxu0 %v2859
    %v2922 = vpop.f32.mrf.mxu0
    %v2923 = vadd.f32 0.0, %v2922
    %2924 = vdwg.mxu0
    %2925 = vmatpush.msra.mxu0 %v2076
    %2926 = vmatpush.msra.mxu0 %v2072
    %2927 = vmatpush.msra.mxu0 %v2068
    %2928 = vmatpush.msra.mxu0 %v2064
    %2929 = vmatpush.msra.mxu0 %v2060
    %2930 = vmatpush.msra.mxu0 %v2056
    %2931 = vmatpush.msra.mxu0 %v2052
    %2932 = vmatpush.msra.mxu0 %v2048
    %2933 = vmatpush.msra.mxu0 %v2044
    %2934 = vmatpush.msra.mxu0 %v2040
    %2935 = vmatpush.msra.mxu0 %v2036
    %2936 = vmatpush.msra.mxu0 %v2032
    %2937 = vmatpush.msra.mxu0 %v2028
    %2938 = vmatpush.msra.mxu0 %v2024
    %2939 = vmatpush.msra.mxu0 %v2020
    %2940 = vmatpush.msra.mxu0 %v2016
    %2941 = vmatmul.f32.gmra.mxu0 %v2859
    %v2942 = vpop.f32.mrf.mxu0
    %v2943 = vadd.f32 0.0, %v2942
    %2944 = vdwg.mxu0
    %v2945 = vadd.f32 %v2861, %v2883
    %v2946 = vadd.f32 %v2862, %v2903
    %v2947 = vadd.f32 %v2863, %v2923
    %v2948 = vadd.f32 %v2864, %v2943
    %v2949 = vxor.u32 %v2945, 2147483648
    %v2950 = vmul.f32 %v2949, 1.442695
    %v2951 = vpow.pop %v2950
    %v2952 = vadd.f32 %v2951, 1.0
    %v2953 = vrcp.pop %v2952
    %v2954 = vmul.f32 %v2952, %v2953
    %v2955 = vsub.f32 1.0, %v2954
    %v2956 = vmul.f32 %v2953, %v2955
    %v2957 = vadd.f32 %v2953, %v2956
    %vm2958 = vweird.f32 %v2952
    %vm2959 = vweird.f32 %v2953
    %vm2960 = vmor %vm2958, %vm2959
    %v2961 = vsel %vm2960, %v2953, %v2957
    %v2962 = vand.u32 2147483647, %v2952
    %vm2963 = vcmp.eq.f32.partialorder %v2962, 8.507059e+37
    %v2964 = vand.u32 %v2952, 2147483648
    %v2965 = vor.u32 1.1754944e-38, %v2964
    %v2966 = vsel %vm2963, %v2965, %v2961
    %v2967 = vmul.f32 1.0, %v2966
    %v2968 = vxor.u32 %v2946, 2147483648
    %v2969 = vmul.f32 %v2968, 1.442695
    %v2970 = vpow.pop %v2969
    %v2971 = vadd.f32 %v2970, 1.0
    %v2972 = vrcp.pop %v2971
    %v2973 = vmul.f32 %v2971, %v2972
    %v2974 = vsub.f32 1.0, %v2973
    %v2975 = vmul.f32 %v2972, %v2974
    %v2976 = vadd.f32 %v2972, %v2975
    %vm2977 = vweird.f32 %v2971
    %vm2978 = vweird.f32 %v2972
    %vm2979 = vmor %vm2977, %vm2978
    %v2980 = vsel %vm2979, %v2972, %v2976
    %v2981 = vand.u32 2147483647, %v2971
    %vm2982 = vcmp.eq.f32.partialorder %v2981, 8.507059e+37
    %v2983 = vand.u32 %v2971, 2147483648
    %v2984 = vor.u32 1.1754944e-38, %v2983
    %v2985 = vsel %vm2982, %v2984, %v2980
    %v2986 = vmul.f32 1.0, %v2985
    %v2987 = vtanh.pop %v2947
    %v2988 = vxor.u32 %v2948, 2147483648
    %v2989 = vmul.f32 %v2988, 1.442695
    %v2990 = vpow.pop %v2989
    %v2991 = vadd.f32 %v2990, 1.0
    %v2992 = vrcp.pop %v2991
    %v2993 = vmul.f32 %v2991, %v2992
    %v2994 = vsub.f32 1.0, %v2993
    %v2995 = vmul.f32 %v2992, %v2994
    %v2996 = vadd.f32 %v2992, %v2995
    %vm2997 = vweird.f32 %v2991
    %vm2998 = vweird.f32 %v2992
    %vm2999 = vmor %vm2997, %vm2998
    %v3000 = vsel %vm2999, %v2992, %v2996
    %v3001 = vand.u32 2147483647, %v2991
    %vm3002 = vcmp.eq.f32.partialorder %v3001, 8.507059e+37
    %v3003 = vand.u32 %v2991, 2147483648
    %v3004 = vor.u32 1.1754944e-38, %v3003
    %v3005 = vsel %vm3002, %v3004, %v3000
    %v3006 = vmul.f32 1.0, %v3005
    %v3007 = vmul.f32 %v2986, %v2860
    %v3008 = vmul.f32 %v2967, %v2987
    %v3009 = vadd.f32 %v3007, %v3008
    %v3010 = vtanh.pop %v3009
    %v3011 = vmul.f32 %v3006, %v3010
    %3012 = vst [vmem:[%s2079] sm:$0xff] %v3009
    %3013 = vst [vmem:[%s2077] sm:$0xff] %v3011
    %3014 = vst [vmem:[%s1415] sm:$0xff] %v3011
    %v3015 = vld [vmem:[%s2077] sm:$0xff]
    %v3016 = vld [vmem:[%s2079] sm:$0xff]
    %v3017 = vld [vmem:[%s1419] sm:$0xff]
    %v3018 = vld [vmem:[%s1419 + $0x8] sm:$0xff]
    %v3019 = vld [vmem:[%s1419 + $0x10] sm:$0xff]
    %v3020 = vld [vmem:[%s1419 + $0x18] sm:$0xff]
    %3021 = vmatpush.msra.mxu0 %v2073
    %3022 = vmatpush.msra.mxu0 %v2069
    %3023 = vmatpush.msra.mxu0 %v2065
    %3024 = vmatpush.msra.mxu0 %v2061
    %3025 = vmatpush.msra.mxu0 %v2057
    %3026 = vmatpush.msra.mxu0 %v2053
    %3027 = vmatpush.msra.mxu0 %v2049
    %3028 = vmatpush.msra.mxu0 %v2045
    %3029 = vmatpush.msra.mxu0 %v2041
    %3030 = vmatpush.msra.mxu0 %v2037
    %3031 = vmatpush.msra.mxu0 %v2033
    %3032 = vmatpush.msra.mxu0 %v2029
    %3033 = vmatpush.msra.mxu0 %v2025
    %3034 = vmatpush.msra.mxu0 %v2021
    %3035 = vmatpush.msra.mxu0 %v2017
    %3036 = vmatpush.msra.mxu0 %v2013
    %3037 = vmatmul.f32.gmra.mxu0 %v3015
    %v3038 = vpop.f32.mrf.mxu0
    %v3039 = vadd.f32 0.0, %v3038
    %3040 = vdwg.mxu0
    %3041 = vmatpush.msra.mxu0 %v2074
    %3042 = vmatpush.msra.mxu0 %v2070
    %3043 = vmatpush.msra.mxu0 %v2066
    %3044 = vmatpush.msra.mxu0 %v2062
    %3045 = vmatpush.msra.mxu0 %v2058
    %3046 = vmatpush.msra.mxu0 %v2054
    %3047 = vmatpush.msra.mxu0 %v2050
    %3048 = vmatpush.msra.mxu0 %v2046
    %3049 = vmatpush.msra.mxu0 %v2042
    %3050 = vmatpush.msra.mxu0 %v2038
    %3051 = vmatpush.msra.mxu0 %v2034
    %3052 = vmatpush.msra.mxu0 %v2030
    %3053 = vmatpush.msra.mxu0 %v2026
    %3054 = vmatpush.msra.mxu0 %v2022
    %3055 = vmatpush.msra.mxu0 %v2018
    %3056 = vmatpush.msra.mxu0 %v2014
    %3057 = vmatmul.f32.gmra.mxu0 %v3015
    %v3058 = vpop.f32.mrf.mxu0
    %v3059 = vadd.f32 0.0, %v3058
    %3060 = vdwg.mxu0
    %3061 = vmatpush.msra.mxu0 %v2075
    %3062 = vmatpush.msra.mxu0 %v2071
    %3063 = vmatpush.msra.mxu0 %v2067
    %3064 = vmatpush.msra.mxu0 %v2063
    %3065 = vmatpush.msra.mxu0 %v2059
    %3066 = vmatpush.msra.mxu0 %v2055
    %3067 = vmatpush.msra.mxu0 %v2051
    %3068 = vmatpush.msra.mxu0 %v2047
    %3069 = vmatpush.msra.mxu0 %v2043
    %3070 = vmatpush.msra.mxu0 %v2039
    %3071 = vmatpush.msra.mxu0 %v2035
    %3072 = vmatpush.msra.mxu0 %v2031
    %3073 = vmatpush.msra.mxu0 %v2027
    %3074 = vmatpush.msra.mxu0 %v2023
    %3075 = vmatpush.msra.mxu0 %v2019
    %3076 = vmatpush.msra.mxu0 %v2015
    %3077 = vmatmul.f32.gmra.mxu0 %v3015
    %v3078 = vpop.f32.mrf.mxu0
    %v3079 = vadd.f32 0.0, %v3078
    %3080 = vdwg.mxu0
    %3081 = vmatpush.msra.mxu0 %v2076
    %3082 = vmatpush.msra.mxu0 %v2072
    %3083 = vmatpush.msra.mxu0 %v2068
    %3084 = vmatpush.msra.mxu0 %v2064
    %3085 = vmatpush.msra.mxu0 %v2060
    %3086 = vmatpush.msra.mxu0 %v2056
    %3087 = vmatpush.msra.mxu0 %v2052
    %3088 = vmatpush.msra.mxu0 %v2048
    %3089 = vmatpush.msra.mxu0 %v2044
    %3090 = vmatpush.msra.mxu0 %v2040
    %3091 = vmatpush.msra.mxu0 %v2036
    %3092 = vmatpush.msra.mxu0 %v2032
    %3093 = vmatpush.msra.mxu0 %v2028
    %3094 = vmatpush.msra.mxu0 %v2024
    %3095 = vmatpush.msra.mxu0 %v2020
    %3096 = vmatpush.msra.mxu0 %v2016
    %3097 = vmatmul.f32.gmra.mxu0 %v3015
    %v3098 = vpop.f32.mrf.mxu0
    %v3099 = vadd.f32 0.0, %v3098
    %3100 = vdwg.mxu0
    %v3101 = vadd.f32 %v3017, %v3039
    %v3102 = vadd.f32 %v3018, %v3059
    %v3103 = vadd.f32 %v3019, %v3079
    %v3104 = vadd.f32 %v3020, %v3099
    %v3105 = vxor.u32 %v3101, 2147483648
    %v3106 = vmul.f32 %v3105, 1.442695
    %v3107 = vpow.pop %v3106
    %v3108 = vadd.f32 %v3107, 1.0
    %v3109 = vrcp.pop %v3108
    %v3110 = vmul.f32 %v3108, %v3109
    %v3111 = vsub.f32 1.0, %v3110
    %v3112 = vmul.f32 %v3109, %v3111
    %v3113 = vadd.f32 %v3109, %v3112
    %vm3114 = vweird.f32 %v3108
    %vm3115 = vweird.f32 %v3109
    %vm3116 = vmor %vm3114, %vm3115
    %v3117 = vsel %vm3116, %v3109, %v3113
    %v3118 = vand.u32 2147483647, %v3108
    %vm3119 = vcmp.eq.f32.partialorder %v3118, 8.507059e+37
    %v3120 = vand.u32 %v3108, 2147483648
    %v3121 = vor.u32 1.1754944e-38, %v3120
    %v3122 = vsel %vm3119, %v3121, %v3117
    %v3123 = vmul.f32 1.0, %v3122
    %v3124 = vxor.u32 %v3102, 2147483648
    %v3125 = vmul.f32 %v3124, 1.442695
    %v3126 = vpow.pop %v3125
    %v3127 = vadd.f32 %v3126, 1.0
    %v3128 = vrcp.pop %v3127
    %v3129 = vmul.f32 %v3127, %v3128
    %v3130 = vsub.f32 1.0, %v3129
    %v3131 = vmul.f32 %v3128, %v3130
    %v3132 = vadd.f32 %v3128, %v3131
    %vm3133 = vweird.f32 %v3127
    %vm3134 = vweird.f32 %v3128
    %vm3135 = vmor %vm3133, %vm3134
    %v3136 = vsel %vm3135, %v3128, %v3132
    %v3137 = vand.u32 2147483647, %v3127
    %vm3138 = vcmp.eq.f32.partialorder %v3137, 8.507059e+37
    %v3139 = vand.u32 %v3127, 2147483648
    %v3140 = vor.u32 1.1754944e-38, %v3139
    %v3141 = vsel %vm3138, %v3140, %v3136
    %v3142 = vmul.f32 1.0, %v3141
    %v3143 = vtanh.pop %v3103
    %v3144 = vxor.u32 %v3104, 2147483648
    %v3145 = vmul.f32 %v3144, 1.442695
    %v3146 = vpow.pop %v3145
    %v3147 = vadd.f32 %v3146, 1.0
    %v3148 = vrcp.pop %v3147
    %v3149 = vmul.f32 %v3147, %v3148
    %v3150 = vsub.f32 1.0, %v3149
    %v3151 = vmul.f32 %v3148, %v3150
    %v3152 = vadd.f32 %v3148, %v3151
    %vm3153 = vweird.f32 %v3147
    %vm3154 = vweird.f32 %v3148
    %vm3155 = vmor %vm3153, %vm3154
    %v3156 = vsel %vm3155, %v3148, %v3152
    %v3157 = vand.u32 2147483647, %v3147
    %vm3158 = vcmp.eq.f32.partialorder %v3157, 8.507059e+37
    %v3159 = vand.u32 %v3147, 2147483648
    %v3160 = vor.u32 1.1754944e-38, %v3159
    %v3161 = vsel %vm3158, %v3160, %v3156
    %v3162 = vmul.f32 1.0, %v3161
    %v3163 = vmul.f32 %v3142, %v3016
    %v3164 = vmul.f32 %v3123, %v3143
    %v3165 = vadd.f32 %v3163, %v3164
    %v3166 = vtanh.pop %v3165
    %v3167 = vmul.f32 %v3162, %v3166
    %3168 = vst [vmem:[%s2079] sm:$0xff] %v3165
    %3169 = vst [vmem:[%s2077] sm:$0xff] %v3167
    %3170 = vst [vmem:[%s1573] sm:$0xff] %v3167
    %v3171 = vld [vmem:[%s2077] sm:$0xff]
    %v3172 = vld [vmem:[%s2079] sm:$0xff]
    %v3173 = vld [vmem:[%s1577] sm:$0xff]
    %v3174 = vld [vmem:[%s1577 + $0x8] sm:$0xff]
    %v3175 = vld [vmem:[%s1577 + $0x10] sm:$0xff]
    %v3176 = vld [vmem:[%s1577 + $0x18] sm:$0xff]
    %3177 = vmatpush.msra.mxu0 %v2073
    %3178 = vmatpush.msra.mxu0 %v2069
    %3179 = vmatpush.msra.mxu0 %v2065
    %3180 = vmatpush.msra.mxu0 %v2061
    %3181 = vmatpush.msra.mxu0 %v2057
    %3182 = vmatpush.msra.mxu0 %v2053
    %3183 = vmatpush.msra.mxu0 %v2049
    %3184 = vmatpush.msra.mxu0 %v2045
    %3185 = vmatpush.msra.mxu0 %v2041
    %3186 = vmatpush.msra.mxu0 %v2037
    %3187 = vmatpush.msra.mxu0 %v2033
    %3188 = vmatpush.msra.mxu0 %v2029
    %3189 = vmatpush.msra.mxu0 %v2025
    %3190 = vmatpush.msra.mxu0 %v2021
    %3191 = vmatpush.msra.mxu0 %v2017
    %3192 = vmatpush.msra.mxu0 %v2013
    %3193 = vmatmul.f32.gmra.mxu0 %v3171
    %v3194 = vpop.f32.mrf.mxu0
    %v3195 = vadd.f32 0.0, %v3194
    %3196 = vdwg.mxu0
    %3197 = vmatpush.msra.mxu0 %v2074
    %3198 = vmatpush.msra.mxu0 %v2070
    %3199 = vmatpush.msra.mxu0 %v2066
    %3200 = vmatpush.msra.mxu0 %v2062
    %3201 = vmatpush.msra.mxu0 %v2058
    %3202 = vmatpush.msra.mxu0 %v2054
    %3203 = vmatpush.msra.mxu0 %v2050
    %3204 = vmatpush.msra.mxu0 %v2046
    %3205 = vmatpush.msra.mxu0 %v2042
    %3206 = vmatpush.msra.mxu0 %v2038
    %3207 = vmatpush.msra.mxu0 %v2034
    %3208 = vmatpush.msra.mxu0 %v2030
    %3209 = vmatpush.msra.mxu0 %v2026
    %3210 = vmatpush.msra.mxu0 %v2022
    %3211 = vmatpush.msra.mxu0 %v2018
    %3212 = vmatpush.msra.mxu0 %v2014
    %3213 = vmatmul.f32.gmra.mxu0 %v3171
    %v3214 = vpop.f32.mrf.mxu0
    %v3215 = vadd.f32 0.0, %v3214
    %3216 = vdwg.mxu0
    %3217 = vmatpush.msra.mxu0 %v2075
    %3218 = vmatpush.msra.mxu0 %v2071
    %3219 = vmatpush.msra.mxu0 %v2067
    %3220 = vmatpush.msra.mxu0 %v2063
    %3221 = vmatpush.msra.mxu0 %v2059
    %3222 = vmatpush.msra.mxu0 %v2055
    %3223 = vmatpush.msra.mxu0 %v2051
    %3224 = vmatpush.msra.mxu0 %v2047
    %3225 = vmatpush.msra.mxu0 %v2043
    %3226 = vmatpush.msra.mxu0 %v2039
    %3227 = vmatpush.msra.mxu0 %v2035
    %3228 = vmatpush.msra.mxu0 %v2031
    %3229 = vmatpush.msra.mxu0 %v2027
    %3230 = vmatpush.msra.mxu0 %v2023
    %3231 = vmatpush.msra.mxu0 %v2019
    %3232 = vmatpush.msra.mxu0 %v2015
    %3233 = vmatmul.f32.gmra.mxu0 %v3171
    %v3234 = vpop.f32.mrf.mxu0
    %v3235 = vadd.f32 0.0, %v3234
    %3236 = vdwg.mxu0
    %3237 = vmatpush.msra.mxu0 %v2076
    %3238 = vmatpush.msra.mxu0 %v2072
    %3239 = vmatpush.msra.mxu0 %v2068
    %3240 = vmatpush.msra.mxu0 %v2064
    %3241 = vmatpush.msra.mxu0 %v2060
    %3242 = vmatpush.msra.mxu0 %v2056
    %3243 = vmatpush.msra.mxu0 %v2052
    %3244 = vmatpush.msra.mxu0 %v2048
    %3245 = vmatpush.msra.mxu0 %v2044
    %3246 = vmatpush.msra.mxu0 %v2040
    %3247 = vmatpush.msra.mxu0 %v2036
    %3248 = vmatpush.msra.mxu0 %v2032
    %3249 = vmatpush.msra.mxu0 %v2028
    %3250 = vmatpush.msra.mxu0 %v2024
    %3251 = vmatpush.msra.mxu0 %v2020
    %3252 = vmatpush.msra.mxu0 %v2016
    %3253 = vmatmul.f32.gmra.mxu0 %v3171
    %v3254 = vpop.f32.mrf.mxu0
    %v3255 = vadd.f32 0.0, %v3254
    %3256 = vdwg.mxu0
    %v3257 = vadd.f32 %v3173, %v3195
    %v3258 = vadd.f32 %v3174, %v3215
    %v3259 = vadd.f32 %v3175, %v3235
    %v3260 = vadd.f32 %v3176, %v3255
    %v3261 = vxor.u32 %v3257, 2147483648
    %v3262 = vmul.f32 %v3261, 1.442695
    %v3263 = vpow.pop %v3262
    %v3264 = vadd.f32 %v3263, 1.0
    %v3265 = vrcp.pop %v3264
    %v3266 = vmul.f32 %v3264, %v3265
    %v3267 = vsub.f32 1.0, %v3266
    %v3268 = vmul.f32 %v3265, %v3267
    %v3269 = vadd.f32 %v3265, %v3268
    %vm3270 = vweird.f32 %v3264
    %vm3271 = vweird.f32 %v3265
    %vm3272 = vmor %vm3270, %vm3271
    %v3273 = vsel %vm3272, %v3265, %v3269
    %v3274 = vand.u32 2147483647, %v3264
    %vm3275 = vcmp.eq.f32.partialorder %v3274, 8.507059e+37
    %v3276 = vand.u32 %v3264, 2147483648
    %v3277 = vor.u32 1.1754944e-38, %v3276
    %v3278 = vsel %vm3275, %v3277, %v3273
    %v3279 = vmul.f32 1.0, %v3278
    %v3280 = vxor.u32 %v3258, 2147483648
    %v3281 = vmul.f32 %v3280, 1.442695
    %v3282 = vpow.pop %v3281
    %v3283 = vadd.f32 %v3282, 1.0
    %v3284 = vrcp.pop %v3283
    %v3285 = vmul.f32 %v3283, %v3284
    %v3286 = vsub.f32 1.0, %v3285
    %v3287 = vmul.f32 %v3284, %v3286
    %v3288 = vadd.f32 %v3284, %v3287
    %vm3289 = vweird.f32 %v3283
    %vm3290 = vweird.f32 %v3284
    %vm3291 = vmor %vm3289, %vm3290
    %v3292 = vsel %vm3291, %v3284, %v3288
    %v3293 = vand.u32 2147483647, %v3283
    %vm3294 = vcmp.eq.f32.partialorder %v3293, 8.507059e+37
    %v3295 = vand.u32 %v3283, 2147483648
    %v3296 = vor.u32 1.1754944e-38, %v3295
    %v3297 = vsel %vm3294, %v3296, %v3292
    %v3298 = vmul.f32 1.0, %v3297
    %v3299 = vtanh.pop %v3259
    %v3300 = vxor.u32 %v3260, 2147483648
    %v3301 = vmul.f32 %v3300, 1.442695
    %v3302 = vpow.pop %v3301
    %v3303 = vadd.f32 %v3302, 1.0
    %v3304 = vrcp.pop %v3303
    %v3305 = vmul.f32 %v3303, %v3304
    %v3306 = vsub.f32 1.0, %v3305
    %v3307 = vmul.f32 %v3304, %v3306
    %v3308 = vadd.f32 %v3304, %v3307
    %vm3309 = vweird.f32 %v3303
    %vm3310 = vweird.f32 %v3304
    %vm3311 = vmor %vm3309, %vm3310
    %v3312 = vsel %vm3311, %v3304, %v3308
    %v3313 = vand.u32 2147483647, %v3303
    %vm3314 = vcmp.eq.f32.partialorder %v3313, 8.507059e+37
    %v3315 = vand.u32 %v3303, 2147483648
    %v3316 = vor.u32 1.1754944e-38, %v3315
    %v3317 = vsel %vm3314, %v3316, %v3312
    %v3318 = vmul.f32 1.0, %v3317
    %v3319 = vmul.f32 %v3298, %v3172
    %v3320 = vmul.f32 %v3279, %v3299
    %v3321 = vadd.f32 %v3319, %v3320
    %v3322 = vtanh.pop %v3321
    %v3323 = vmul.f32 %v3318, %v3322
    %3324 = vst [vmem:[%s2079] sm:$0xff] %v3321
    %3325 = vst [vmem:[%s2077] sm:$0xff] %v3323
    %3326 = vst [vmem:[%s1731] sm:$0xff] %v3323
    // Predicated region
    $region58: #{tpu_custom_call.1} parent=1 // pred_check
      %p3327 = pneg %p121
    $region59: #{tpu_custom_call.1} parent=1 // pred_check_branch
      %3329 = sbr.rel (%p3327) target = $region61
    $region60: #{tpu_custom_call.1} parent=1 // pred_region
      %v3330 = vld [vmem:[%s2077] sm:$0xff]
      %v3331 = vld [vmem:[#allocation15] sm:$0xff]
      %v3332 = vld [vmem:[#allocation15 + $0x8] sm:$0xff]
      %v3333 = vld [vmem:[#allocation15 + $0x10] sm:$0xff]
      %v3334 = vld [vmem:[#allocation15 + $0x18] sm:$0xff]
      %v3335 = vld [vmem:[#allocation15 + $0x20] sm:$0xff]
      %v3336 = vld [vmem:[#allocation15 + $0x28] sm:$0xff]
      %v3337 = vld [vmem:[#allocation15 + $0x30] sm:$0xff]
      %v3338 = vld [vmem:[#allocation15 + $0x38] sm:$0xff]
      %v3339 = vld [vmem:[#allocation15 + $0x40] sm:$0xff]
      %v3340 = vld [vmem:[#allocation15 + $0x48] sm:$0xff]
      %v3341 = vld [vmem:[#allocation15 + $0x50] sm:$0xff]
      %v3342 = vld [vmem:[#allocation15 + $0x58] sm:$0xff]
      %v3343 = vld [vmem:[#allocation15 + $0x60] sm:$0xff]
      %v3344 = vld [vmem:[#allocation15 + $0x68] sm:$0xff]
      %v3345 = vld [vmem:[#allocation15 + $0x70] sm:$0xff]
      %v3346 = vld [vmem:[#allocation15 + $0x78] sm:$0xff]
      %v3347 = vld [vmem:[%s6] sm:$0x1]
      %v3349 = vperm.slane %v3347, 0
      %3351 = vmatpush.msra.mxu0 %v3346
      %3352 = vmatpush.msra.mxu0 %v3345
      %3353 = vmatpush.msra.mxu0 %v3344
      %3354 = vmatpush.msra.mxu0 %v3343
      %3355 = vmatpush.msra.mxu0 %v3342
      %3356 = vmatpush.msra.mxu0 %v3341
      %3357 = vmatpush.msra.mxu0 %v3340
      %3358 = vmatpush.msra.mxu0 %v3339
      %3359 = vmatpush.msra.mxu0 %v3338
      %3360 = vmatpush.msra.mxu0 %v3337
      %3361 = vmatpush.msra.mxu0 %v3336
      %3362 = vmatpush.msra.mxu0 %v3335
      %3363 = vmatpush.msra.mxu0 %v3334
      %3364 = vmatpush.msra.mxu0 %v3333
      %3365 = vmatpush.msra.mxu0 %v3332
      %3366 = vmatpush.msra.mxu0 %v3331
      %3367 = vmatmul.f32.gmra.mxu0 %v3330
      %v3368 = vpop.f32.mrf.mxu0
      %v3369 = vadd.f32 %v3349, %v3368
      %3370 = vdwg.mxu0
      %3371 = vst [vmem:[#allocation17] sm:$0xff] %v3369
    $region61: #{tpu_custom_call.1} parent=1 // pred_fallthru
      _
    // Predicated region
    $region62: #{tpu_custom_call.1} parent=1 // pred_check
      _
    $region63: #{tpu_custom_call.1} parent=1 // pred_check_branch
      %3373 = sbr.rel (0) target = $region65
    $region64: #{tpu_custom_call.1} parent=1 // pred_region
      %3375 = vsyncadd [#allocation8], 0
      %s3377 = sshll.u32 [#allocation17], 4
      %s3378 = int_to_ptr.vmem [resolvable:$true] %s3377
      %s3379 = sshll.u32 %s7, 4
      %s3380 = int_to_ptr.hbm [resolvable:$true] %s3379
      %3382 = dma.vmem_to_hbm [thread:$0]  %s3378, 128, %s3380, [#allocation8]
    $region65: #{tpu_custom_call.1} parent=1 // pred_fallthru
      _
    // Predicated region
    $region66: #{tpu_custom_call.1} parent=1 // pred_check
      _
    $region67: #{tpu_custom_call.1} parent=1 // pred_check_branch
      %3384 = sbr.rel (0) target = $region69
    $region68: #{tpu_custom_call.1} parent=1 // pred_region
      %3386 = dma.done [#allocation8], 128
    $region69: #{tpu_custom_call.1} parent=1 // pred_fallthru
      _
    %3387 = vsyncpa [#allocation7], 1
    %3388 = vsyncpa [#allocation10], 1
    %3389 = vsyncpa [#allocation13], 1
    %3390 = vsyncpa [#allocation16], 1
    %3391 = vsyncpa [#allocation8], 1

</llo_original>
